<compile_context>
chip_gen: v6e
topology: v6e:2x2x1
jax: 0.10.0
libtpu: 0.0.40
codegen_flags: <defaults>
</compile_context>

<pallas_src>
import functools

import jax
import jax.numpy as jnp
from jax.experimental import pallas as pl
from jax.experimental.pallas import tpu as pltpu


# ----------------------------------------------------------------------------
# Pallas kernel: Bw windows of (N tokens, C channels) attention per grid step
# ----------------------------------------------------------------------------
def window_attn_kernel(x_ref, wqkv_ref, wprojh_ref, bproj_ref, bias_ref, o_ref,
                       *, num_heads, head_dim):
    Bw, N, C = x_ref.shape
    hd = head_dim

    # One QKV matmul for all Bw windows in this step: (Bw*N, C) @ (C, 3C).
    # Weights are bf16; accumulate in f32 on the MXU.
    x2 = x_ref[...].reshape(Bw * N, C).astype(jnp.bfloat16)
    qkv = jnp.dot(x2, wqkv_ref[...], preferred_element_type=jnp.float32)   # (Bw*N, 3C) f32

    acc = jnp.zeros((Bw * N, C), jnp.float32)
    for h in range(num_heads):
        # 1/sqrt(hd) scale is already folded into the q columns of wqkv.
        q = qkv[:, h * hd:(h + 1) * hd].reshape(Bw, N, hd).astype(jnp.bfloat16)
        k = qkv[:, C + h * hd:C + (h + 1) * hd].reshape(Bw, N, hd).astype(jnp.bfloat16)
        v = qkv[:, 2 * C + h * hd:2 * C + (h + 1) * hd].reshape(Bw, N, hd).astype(jnp.bfloat16)

        # Batched over the Bw windows; f32 scores.
        s = jnp.einsum("bnd,bmd->bnm", q, k,
                       preferred_element_type=jnp.float32)                 # (Bw, N, N)
        s = s + bias_ref[h]                                                # relative position bias
        s = s - jnp.max(s, axis=-1, keepdims=True)
        p = jnp.exp(s)                                                     # softmax kept in f32
        p = p * pl.reciprocal(jnp.sum(p, axis=-1, keepdims=True), approx=True)

        oh = jnp.einsum("bnm,bmd->bnd", p.astype(jnp.bfloat16), v,
                        preferred_element_type=jnp.float32)                # (Bw, N, hd)

        # Accumulate this head's projection: identical to concat(heads) @ wproj,
        # but avoids the lane-concat of 8-wide head outputs.
        acc = acc + jnp.dot(oh.reshape(Bw * N, hd).astype(jnp.bfloat16),
                            wprojh_ref[h], preferred_element_type=jnp.float32)

    out = acc + bproj_ref[...]
    o_ref[...] = out.reshape(Bw, N, C).astype(o_ref.dtype)


def _windows_per_step(num_windows):
    # Batch windows to amortize per-step overhead, but keep >= 2 grid steps
    # when possible so v7x's two TensorCores both get work.
    if num_windows % 2 == 0 and num_windows >= 4:
        return num_windows // 2
    return num_windows


def pallas_window_attention(xw, kparams, num_heads):
    """xw: (num_windows, N, C) f32. Returns (num_windows, N, C) f32."""
    B_, N, C = xw.shape
    nH = num_heads
    hd = C // nH
    Bw = _windows_per_step(B_)
    assert B_ % Bw == 0
    steps = B_ // Bw

    kernel = functools.partial(window_attn_kernel, num_heads=nH, head_dim=hd)
    return pl.pallas_call(
        kernel,
        out_shape=jax.ShapeDtypeStruct((B_, N, C), xw.dtype),
        grid=(steps,),
        in_specs=[
            pl.BlockSpec((Bw, N, C), lambda i: (i, 0, 0)),      # x windows
            pl.BlockSpec((C, 3 * C), lambda i: (0, 0)),         # qkv weight (bf16, q cols pre-scaled)
            pl.BlockSpec((nH, hd, C), lambda i: (0, 0, 0)),     # per-head proj row blocks (bf16)
            pl.BlockSpec((1, C), lambda i: (0, 0)),             # proj bias (f32)
            pl.BlockSpec((nH, N, N), lambda i: (0, 0, 0)),      # relative position bias (f32)
        ],
        out_specs=pl.BlockSpec((Bw, N, C), lambda i: (i, 0, 0)),
        compiler_params=pltpu.CompilerParams(dimension_semantics=("parallel",)),
    )(xw, kparams["wqkv"], kparams["wprojh"], kparams["bproj"], kparams["bias"])


# ----------------------------------------------------------------------------
# Parameter setup (plain JAX glue)
# ----------------------------------------------------------------------------
def relative_position_index(wh, ww):
    coords = jnp.stack(jnp.meshgrid(jnp.arange(wh), jnp.arange(ww), indexing="ij"))  # (2, wh, ww)
    coords_flat = coords.reshape(2, -1)                                              # (2, N)
    rel = coords_flat[:, :, None] - coords_flat[:, None, :]                          # (2, N, N)
    rel = rel.transpose(1, 2, 0)                                                     # (N, N, 2)
    rel = rel.at[:, :, 0].add(wh - 1)
    rel = rel.at[:, :, 1].add(ww - 1)
    rel = rel.at[:, :, 0].multiply(2 * ww - 1)
    return rel.sum(-1)                                                               # (N, N)


def make_window_attn_params(key, dim, window, num_heads):
    """Canonical (reference) parameters for one WindowAttention block.

    Note: PyTorch inits the relative_position_bias_table to zeros; small random
    values are used here so the bias path is actually exercised.
    """
    wh, ww = window
    k1, k2, k3, k4 = jax.random.split(key, 4)
    wqkv = 0.05 * jax.random.normal(k1, (dim, 3 * dim), jnp.float32)   # applied as x @ wqkv
    wproj = 0.05 * jax.random.normal(k2, (dim, dim), jnp.float32)
    bproj = 0.05 * jax.random.normal(k3, (1, dim), jnp.float32)
    table = 0.05 * jax.random.normal(k4, ((2 * wh - 1) * (2 * ww - 1), num_heads), jnp.float32)
    idx = relative_position_index(wh, ww)                               # (N, N)
    bias = jnp.take(table, idx.reshape(-1), axis=0)                     # (N*N, nH)
    bias = bias.reshape(wh * ww, wh * ww, num_heads).transpose(2, 0, 1) # (nH, N, N)
    return {"wqkv": wqkv, "wproj": wproj, "bproj": bproj, "bias": bias}


def prepare_kernel_params(p, dim, num_heads):
    """One-time parameter transforms for the Pallas kernel:
       - fold 1/sqrt(head_dim) into the q columns of the QKV weight,
       - split the proj weight into per-head (hd, C) row blocks,
       - cast matmul weights to bf16 (bias terms stay f32)."""
    C = dim
    hd = C // num_heads
    scale = hd ** (-0.5)
    wqkv = jnp.concatenate([p["wqkv"][:, :C] * scale, p["wqkv"][:, C:]], axis=1)
    wprojh = p["wproj"].reshape(num_heads, hd, C)
    return {
        "wqkv": wqkv.astype(jnp.bfloat16),
        "wprojh": wprojh.astype(jnp.bfloat16),
        "bproj": p["bproj"].astype(jnp.float32),
        "bias": p["bias"].astype(jnp.float32),
    }


# ----------------------------------------------------------------------------
# Full SpatialAwareSelfAttention forward
# ----------------------------------------------------------------------------
def spatial_aware_self_attention(x, win_params, glob_params, num_heads, window_size):
    B, H, W, C = x.shape
    ws = window_size

    win_kparams = prepare_kernel_params(win_params, C, num_heads)

    # window_partition: (B, H, W, C) -> (B*nW, ws*ws, C)
    xw = x.reshape(B, H // ws, ws, W // ws, ws, C)
    xw = xw.transpose(0, 1, 3, 2, 4, 5).reshape(-1, ws * ws, C)

    yw = pallas_window_attention(xw, win_kparams, num_heads)

    # window_reverse
    y = yw.reshape(B, H // ws, W // ws, ws, ws, C)
    y = y.transpose(0, 1, 3, 2, 4, 5).reshape(B, H, W, C)

    # Global branch: adaptive_avg_pool2d((1,1)) over the *post-window-attention*
    # output y (matches the PyTorch module). With a single token, softmax == 1
    # identically, so WindowAttention degenerates exactly to (xg @ Wv) @ Wproj + b
    # (the q.k scores and relative-position bias are dead). Fused plain JAX instead
    # of a second pallas_call with ~zero useful work.
    xg = jnp.mean(y, axis=(1, 2))                                   # (B, C)
    wv = glob_params["wqkv"][:, 2 * C:3 * C]                        # (C, C) v columns
    yg = (xg @ wv) @ glob_params["wproj"] + glob_params["bproj"]    # (B, C)
    return y + yg[:, None, None, :]


# ----------------------------------------------------------------------------
# Pure-JAX reference (for correctness check)
# ----------------------------------------------------------------------------
def window_attention_ref(xw, p, num_heads):
    B_, N, C = xw.shape
    hd = C // num_heads
    scale = hd ** (-0.5)
    qkv = xw @ p["wqkv"]                                                 # (B_, N, 3C)
    qkv = qkv.reshape(B_, N, 3, num_heads, hd).transpose(2, 0, 3, 1, 4)
    q, k, v = qkv[0] * scale, qkv[1], qkv[2]
    attn = jnp.einsum("bhnd,bhmd->bhnm", q, k) + p["bias"][None]
    attn = jax.nn.softmax(attn, axis=-1)
    out = jnp.einsum("bhnm,bhmd->bhnd", attn, v).transpose(0, 2, 1, 3).reshape(B_, N, C)
    return out @ p["wproj"] + p["bproj"]


def spatial_aware_ref(x, win_params, glob_params, num_heads, window_size):
    B, H, W, C = x.shape
    ws = window_size
    xw = x.reshape(B, H // ws, ws, W // ws, ws, C).transpose(0, 1, 3, 2, 4, 5).reshape(-1, ws * ws, C)
    yw = window_attention_ref(xw, win_params, num_heads)
    y = yw.reshape(B, H // ws, W // ws, ws, ws, C).transpose(0, 1, 3, 2, 4, 5).reshape(B, H, W, C)
    xg = jnp.mean(y, axis=(1, 2)).reshape(B, 1, C)
    yg = window_attention_ref(xg, glob_params, num_heads)
    return y + yg.reshape(B, 1, 1, C)


if __name__ == "__main__":
    # Small shapes: B=2, H=W=16, dim=32, num_heads=4, window_size=8 -> N=64 tokens/window,
    # 8 windows total -> 4 windows per grid step, grid=(2,).
    B, H, W, C = 2, 16, 16, 32
    num_heads, window_size = 4, 8

    key = jax.random.PRNGKey(0)
    kx, kw, kg = jax.random.split(key, 3)
    x = jax.random.normal(kx, (B, H, W, C), jnp.float32)

    win_params = make_window_attn_params(kw, C, (window_size, window_size), num_heads)
    glob_params = make_window_attn_params(kg, C, (1, 1), num_heads)

    out = spatial_aware_self_attention(x, win_params, glob_params, num_heads, window_size)
    out = jax.block_until_ready(out)

    ref = spatial_aware_ref(x, win_params, glob_params, num_heads, window_size)
    assert out.shape == (B, H, W, C)
    # Tolerance accounts for bf16 MXU matmul inputs + approximate-reciprocal softmax.
    assert jnp.allclose(out, ref, atol=1e-2, rtol=1e-2), "Pallas output mismatch vs JAX reference"

    print("KERNEL_OK")
</pallas_src>

<mosaic_0001>
module attributes {stable_mosaic.version = 11 : i64} {
  func.func @window_attn_kernel(%arg0: i32, %arg1: memref<4x64x32xf32, #tpu.memory_space<vmem>>, %arg2: memref<32x96xbf16, #tpu.memory_space<vmem>>, %arg3: memref<4x8x32xbf16, #tpu.memory_space<vmem>>, %arg4: memref<1x32xf32, #tpu.memory_space<vmem>>, %arg5: memref<4x64x64xf32, #tpu.memory_space<vmem>>, %arg6: memref<4x64x32xf32, #tpu.memory_space<vmem>>) attributes {dimension_semantics = [#tpu.dimension_semantics<parallel>], iteration_bounds = array<i64: 2>, scalar_prefetch = 0 : i64, scratch_operands = 0 : i64, tpu.core_type = #tpu.core_type<tc>, window_params = [{transform_indices = @transform_0, window_bounds = array<i64: 4, 64, 32>}, {pipeline_mode = #tpu.pipeline_mode<synchronous>, transform_indices = @transform_1, window_bounds = array<i64: 32, 96>}, {pipeline_mode = #tpu.pipeline_mode<synchronous>, transform_indices = @transform_2, window_bounds = array<i64: 4, 8, 32>}, {pipeline_mode = #tpu.pipeline_mode<synchronous>, transform_indices = @transform_3, window_bounds = array<i64: 1, 32>}, {pipeline_mode = #tpu.pipeline_mode<synchronous>, transform_indices = @transform_4, window_bounds = array<i64: 4, 64, 64>}, {transform_indices = @transform_5, window_bounds = array<i64: 4, 64, 32>}]} {
    %c0 = arith.constant 0 : index
    %c0_0 = arith.constant 0 : index
    %c0_1 = arith.constant 0 : index
    %0 = vector.load %arg1[%c0, %c0_0, %c0_1] : memref<4x64x32xf32, #tpu.memory_space<vmem>>, vector<4x64x32xf32>
    %1 = vector.shape_cast %0 : vector<4x64x32xf32> to vector<256x32xf32>
    %2 = arith.truncf %1 : vector<256x32xf32> to vector<256x32xbf16>
    %c0_2 = arith.constant 0 : index
    %c0_3 = arith.constant 0 : index
    %3 = vector.load %arg2[%c0_2, %c0_3] : memref<32x96xbf16, #tpu.memory_space<vmem>>, vector<32x96xbf16>
    %cst = arith.constant dense<0.000000e+00> : vector<256x96xf32>
    %4 = tpu.matmul %2, %3, %cst {dimension_numbers = #tpu.dot_dimension_numbers<[1], [0], [0], [1], [0, 0, 1, 1], [], []>} : vector<256x32xbf16>, vector<32x96xbf16>, vector<256x96xf32> -> vector<256x96xf32>
    %cst_4 = arith.constant 0.000000e+00 : f32
    %5 = vector.broadcast %cst_4 : f32 to vector<256x32xf32>
    %6 = vector.extract_strided_slice %4 {offsets = [0, 0], sizes = [256, 8], strides = [1, 1]} : vector<256x96xf32> to vector<256x8xf32>
    %7 = vector.shape_cast %6 : vector<256x8xf32> to vector<4x64x8xf32>
    %8 = arith.truncf %7 : vector<4x64x8xf32> to vector<4x64x8xbf16>
    %9 = vector.extract_strided_slice %4 {offsets = [0, 32], sizes = [256, 8], strides = [1, 1]} : vector<256x96xf32> to vector<256x8xf32>
    %10 = vector.shape_cast %9 : vector<256x8xf32> to vector<4x64x8xf32>
    %11 = arith.truncf %10 : vector<4x64x8xf32> to vector<4x64x8xbf16>
    %12 = vector.extract_strided_slice %4 {offsets = [0, 64], sizes = [256, 8], strides = [1, 1]} : vector<256x96xf32> to vector<256x8xf32>
    %13 = vector.shape_cast %12 : vector<256x8xf32> to vector<4x64x8xf32>
    %14 = arith.truncf %13 : vector<4x64x8xf32> to vector<4x64x8xbf16>
    "tpu.trace_start"() <{level = 10 : i32, message = "bnd,bmd->bnm"}> : () -> ()
    %cst_5 = arith.constant dense<0.000000e+00> : vector<4x64x64xf32>
    %15 = tpu.matmul %8, %11, %cst_5 {dimension_numbers = #tpu.dot_dimension_numbers<[2], [2], [1], [1], [0, 0, 0, 1, 1, 1], [0], [0]>} : vector<4x64x8xbf16>, vector<4x64x8xbf16>, vector<4x64x64xf32> -> vector<4x64x64xf32>
    "tpu.trace_stop"() : () -> ()
    %c0_6 = arith.constant 0 : index
    %c0_7 = arith.constant 0 : index
    %c0_8 = arith.constant 0 : index
    %16 = vector.load %arg5[%c0_6, %c0_7, %c0_8] : memref<4x64x64xf32, #tpu.memory_space<vmem>>, vector<1x64x64xf32>
    %17 = vector.shape_cast %16 : vector<1x64x64xf32> to vector<64x64xf32>
    %18 = vector.shape_cast %17 : vector<64x64xf32> to vector<1x64x64xf32>
    %19 = vector.broadcast %18 : vector<1x64x64xf32> to vector<4x64x64xf32>
    %20 = arith.addf %15, %19 : vector<4x64x64xf32>
    %cst_9 = arith.constant dense<0xFF800000> : vector<4x64xf32>
    %21 = vector.multi_reduction <maximumf>, %20, %cst_9 [2] : vector<4x64x64xf32> to vector<4x64xf32>
    %22 = vector.shape_cast %21 : vector<4x64xf32> to vector<4x64x1xf32>
    %23 = vector.broadcast %22 : vector<4x64x1xf32> to vector<4x64x64xf32>
    %24 = arith.subf %20, %23 : vector<4x64x64xf32>
    %25 = math.exp %24 : vector<4x64x64xf32>
    %cst_10 = arith.constant dense<0.000000e+00> : vector<4x64xf32>
    %26 = vector.multi_reduction <add>, %25, %cst_10 [2] : vector<4x64x64xf32> to vector<4x64xf32>
    %27 = vector.shape_cast %26 : vector<4x64xf32> to vector<4x64x1xf32>
    %28 = tpu.reciprocal %27 {approx = true} : vector<4x64x1xf32> -> vector<4x64x1xf32>
    %29 = vector.broadcast %28 : vector<4x64x1xf32> to vector<4x64x64xf32>
    %30 = arith.mulf %25, %29 : vector<4x64x64xf32>
    %31 = arith.truncf %30 : vector<4x64x64xf32> to vector<4x64x64xbf16>
    "tpu.trace_start"() <{level = 10 : i32, message = "bnm,bmd->bnd"}> : () -> ()
    %cst_11 = arith.constant dense<0.000000e+00> : vector<4x64x8xf32>
    %32 = tpu.matmul %31, %14, %cst_11 {dimension_numbers = #tpu.dot_dimension_numbers<[2], [1], [1], [2], [0, 0, 0, 1, 1, 2], [0], [0]>} : vector<4x64x64xbf16>, vector<4x64x8xbf16>, vector<4x64x8xf32> -> vector<4x64x8xf32>
    "tpu.trace_stop"() : () -> ()
    %33 = vector.shape_cast %32 : vector<4x64x8xf32> to vector<256x8xf32>
    %34 = arith.truncf %33 : vector<256x8xf32> to vector<256x8xbf16>
    %c0_12 = arith.constant 0 : index
    %c0_13 = arith.constant 0 : index
    %c0_14 = arith.constant 0 : index
    %35 = vector.load %arg3[%c0_12, %c0_13, %c0_14] : memref<4x8x32xbf16, #tpu.memory_space<vmem>>, vector<1x8x32xbf16>
    %36 = vector.shape_cast %35 : vector<1x8x32xbf16> to vector<8x32xbf16>
    %cst_15 = arith.constant dense<0.000000e+00> : vector<256x32xf32>
    %37 = tpu.matmul %34, %36, %cst_15 {dimension_numbers = #tpu.dot_dimension_numbers<[1], [0], [0], [1], [0, 0, 1, 1], [], []>} : vector<256x8xbf16>, vector<8x32xbf16>, vector<256x32xf32> -> vector<256x32xf32>
    %38 = arith.addf %5, %37 : vector<256x32xf32>
    %39 = vector.extract_strided_slice %4 {offsets = [0, 8], sizes = [256, 8], strides = [1, 1]} : vector<256x96xf32> to vector<256x8xf32>
    %40 = vector.shape_cast %39 : vector<256x8xf32> to vector<4x64x8xf32>
    %41 = arith.truncf %40 : vector<4x64x8xf32> to vector<4x64x8xbf16>
    %42 = vector.extract_strided_slice %4 {offsets = [0, 40], sizes = [256, 8], strides = [1, 1]} : vector<256x96xf32> to vector<256x8xf32>
    %43 = vector.shape_cast %42 : vector<256x8xf32> to vector<4x64x8xf32>
    %44 = arith.truncf %43 : vector<4x64x8xf32> to vector<4x64x8xbf16>
    %45 = vector.extract_strided_slice %4 {offsets = [0, 72], sizes = [256, 8], strides = [1, 1]} : vector<256x96xf32> to vector<256x8xf32>
    %46 = vector.shape_cast %45 : vector<256x8xf32> to vector<4x64x8xf32>
    %47 = arith.truncf %46 : vector<4x64x8xf32> to vector<4x64x8xbf16>
    "tpu.trace_start"() <{level = 10 : i32, message = "bnd,bmd->bnm"}> : () -> ()
    %cst_16 = arith.constant dense<0.000000e+00> : vector<4x64x64xf32>
    %48 = tpu.matmul %41, %44, %cst_16 {dimension_numbers = #tpu.dot_dimension_numbers<[2], [2], [1], [1], [0, 0, 0, 1, 1, 1], [0], [0]>} : vector<4x64x8xbf16>, vector<4x64x8xbf16>, vector<4x64x64xf32> -> vector<4x64x64xf32>
    "tpu.trace_stop"() : () -> ()
    %c1 = arith.constant 1 : index
    %c0_17 = arith.constant 0 : index
    %c0_18 = arith.constant 0 : index
    %49 = vector.load %arg5[%c1, %c0_17, %c0_18] : memref<4x64x64xf32, #tpu.memory_space<vmem>>, vector<1x64x64xf32>
    %50 = vector.shape_cast %49 : vector<1x64x64xf32> to vector<64x64xf32>
    %51 = vector.shape_cast %50 : vector<64x64xf32> to vector<1x64x64xf32>
    %52 = vector.broadcast %51 : vector<1x64x64xf32> to vector<4x64x64xf32>
    %53 = arith.addf %48, %52 : vector<4x64x64xf32>
    %cst_19 = arith.constant dense<0xFF800000> : vector<4x64xf32>
    %54 = vector.multi_reduction <maximumf>, %53, %cst_19 [2] : vector<4x64x64xf32> to vector<4x64xf32>
    %55 = vector.shape_cast %54 : vector<4x64xf32> to vector<4x64x1xf32>
    %56 = vector.broadcast %55 : vector<4x64x1xf32> to vector<4x64x64xf32>
    %57 = arith.subf %53, %56 : vector<4x64x64xf32>
    %58 = math.exp %57 : vector<4x64x64xf32>
    %cst_20 = arith.constant dense<0.000000e+00> : vector<4x64xf32>
    %59 = vector.multi_reduction <add>, %58, %cst_20 [2] : vector<4x64x64xf32> to vector<4x64xf32>
    %60 = vector.shape_cast %59 : vector<4x64xf32> to vector<4x64x1xf32>
    %61 = tpu.reciprocal %60 {approx = true} : vector<4x64x1xf32> -> vector<4x64x1xf32>
    %62 = vector.broadcast %61 : vector<4x64x1xf32> to vector<4x64x64xf32>
    %63 = arith.mulf %58, %62 : vector<4x64x64xf32>
    %64 = arith.truncf %63 : vector<4x64x64xf32> to vector<4x64x64xbf16>
    "tpu.trace_start"() <{level = 10 : i32, message = "bnm,bmd->bnd"}> : () -> ()
    %cst_21 = arith.constant dense<0.000000e+00> : vector<4x64x8xf32>
    %65 = tpu.matmul %64, %47, %cst_21 {dimension_numbers = #tpu.dot_dimension_numbers<[2], [1], [1], [2], [0, 0, 0, 1, 1, 2], [0], [0]>} : vector<4x64x64xbf16>, vector<4x64x8xbf16>, vector<4x64x8xf32> -> vector<4x64x8xf32>
    "tpu.trace_stop"() : () -> ()
    %66 = vector.shape_cast %65 : vector<4x64x8xf32> to vector<256x8xf32>
    %67 = arith.truncf %66 : vector<256x8xf32> to vector<256x8xbf16>
    %c1_22 = arith.constant 1 : index
    %c0_23 = arith.constant 0 : index
    %c0_24 = arith.constant 0 : index
    %68 = vector.load %arg3[%c1_22, %c0_23, %c0_24] : memref<4x8x32xbf16, #tpu.memory_space<vmem>>, vector<1x8x32xbf16>
    %69 = vector.shape_cast %68 : vector<1x8x32xbf16> to vector<8x32xbf16>
    %cst_25 = arith.constant dense<0.000000e+00> : vector<256x32xf32>
    %70 = tpu.matmul %67, %69, %cst_25 {dimension_numbers = #tpu.dot_dimension_numbers<[1], [0], [0], [1], [0, 0, 1, 1], [], []>} : vector<256x8xbf16>, vector<8x32xbf16>, vector<256x32xf32> -> vector<256x32xf32>
    %71 = arith.addf %38, %70 : vector<256x32xf32>
    %72 = vector.extract_strided_slice %4 {offsets = [0, 16], sizes = [256, 8], strides = [1, 1]} : vector<256x96xf32> to vector<256x8xf32>
    %73 = vector.shape_cast %72 : vector<256x8xf32> to vector<4x64x8xf32>
    %74 = arith.truncf %73 : vector<4x64x8xf32> to vector<4x64x8xbf16>
    %75 = vector.extract_strided_slice %4 {offsets = [0, 48], sizes = [256, 8], strides = [1, 1]} : vector<256x96xf32> to vector<256x8xf32>
    %76 = vector.shape_cast %75 : vector<256x8xf32> to vector<4x64x8xf32>
    %77 = arith.truncf %76 : vector<4x64x8xf32> to vector<4x64x8xbf16>
    %78 = vector.extract_strided_slice %4 {offsets = [0, 80], sizes = [256, 8], strides = [1, 1]} : vector<256x96xf32> to vector<256x8xf32>
    %79 = vector.shape_cast %78 : vector<256x8xf32> to vector<4x64x8xf32>
    %80 = arith.truncf %79 : vector<4x64x8xf32> to vector<4x64x8xbf16>
    "tpu.trace_start"() <{level = 10 : i32, message = "bnd,bmd->bnm"}> : () -> ()
    %cst_26 = arith.constant dense<0.000000e+00> : vector<4x64x64xf32>
    %81 = tpu.matmul %74, %77, %cst_26 {dimension_numbers = #tpu.dot_dimension_numbers<[2], [2], [1], [1], [0, 0, 0, 1, 1, 1], [0], [0]>} : vector<4x64x8xbf16>, vector<4x64x8xbf16>, vector<4x64x64xf32> -> vector<4x64x64xf32>
    "tpu.trace_stop"() : () -> ()
    %c2 = arith.constant 2 : index
    %c0_27 = arith.constant 0 : index
    %c0_28 = arith.constant 0 : index
    %82 = vector.load %arg5[%c2, %c0_27, %c0_28] : memref<4x64x64xf32, #tpu.memory_space<vmem>>, vector<1x64x64xf32>
    %83 = vector.shape_cast %82 : vector<1x64x64xf32> to vector<64x64xf32>
    %84 = vector.shape_cast %83 : vector<64x64xf32> to vector<1x64x64xf32>
    %85 = vector.broadcast %84 : vector<1x64x64xf32> to vector<4x64x64xf32>
    %86 = arith.addf %81, %85 : vector<4x64x64xf32>
    %cst_29 = arith.constant dense<0xFF800000> : vector<4x64xf32>
    %87 = vector.multi_reduction <maximumf>, %86, %cst_29 [2] : vector<4x64x64xf32> to vector<4x64xf32>
    %88 = vector.shape_cast %87 : vector<4x64xf32> to vector<4x64x1xf32>
    %89 = vector.broadcast %88 : vector<4x64x1xf32> to vector<4x64x64xf32>
    %90 = arith.subf %86, %89 : vector<4x64x64xf32>
    %91 = math.exp %90 : vector<4x64x64xf32>
    %cst_30 = arith.constant dense<0.000000e+00> : vector<4x64xf32>
    %92 = vector.multi_reduction <add>, %91, %cst_30 [2] : vector<4x64x64xf32> to vector<4x64xf32>
    %93 = vector.shape_cast %92 : vector<4x64xf32> to vector<4x64x1xf32>
    %94 = tpu.reciprocal %93 {approx = true} : vector<4x64x1xf32> -> vector<4x64x1xf32>
    %95 = vector.broadcast %94 : vector<4x64x1xf32> to vector<4x64x64xf32>
    %96 = arith.mulf %91, %95 : vector<4x64x64xf32>
    %97 = arith.truncf %96 : vector<4x64x64xf32> to vector<4x64x64xbf16>
    "tpu.trace_start"() <{level = 10 : i32, message = "bnm,bmd->bnd"}> : () -> ()
    %cst_31 = arith.constant dense<0.000000e+00> : vector<4x64x8xf32>
    %98 = tpu.matmul %97, %80, %cst_31 {dimension_numbers = #tpu.dot_dimension_numbers<[2], [1], [1], [2], [0, 0, 0, 1, 1, 2], [0], [0]>} : vector<4x64x64xbf16>, vector<4x64x8xbf16>, vector<4x64x8xf32> -> vector<4x64x8xf32>
    "tpu.trace_stop"() : () -> ()
    %99 = vector.shape_cast %98 : vector<4x64x8xf32> to vector<256x8xf32>
    %100 = arith.truncf %99 : vector<256x8xf32> to vector<256x8xbf16>
    %c2_32 = arith.constant 2 : index
    %c0_33 = arith.constant 0 : index
    %c0_34 = arith.constant 0 : index
    %101 = vector.load %arg3[%c2_32, %c0_33, %c0_34] : memref<4x8x32xbf16, #tpu.memory_space<vmem>>, vector<1x8x32xbf16>
    %102 = vector.shape_cast %101 : vector<1x8x32xbf16> to vector<8x32xbf16>
    %cst_35 = arith.constant dense<0.000000e+00> : vector<256x32xf32>
    %103 = tpu.matmul %100, %102, %cst_35 {dimension_numbers = #tpu.dot_dimension_numbers<[1], [0], [0], [1], [0, 0, 1, 1], [], []>} : vector<256x8xbf16>, vector<8x32xbf16>, vector<256x32xf32> -> vector<256x32xf32>
    %104 = arith.addf %71, %103 : vector<256x32xf32>
    %105 = vector.extract_strided_slice %4 {offsets = [0, 24], sizes = [256, 8], strides = [1, 1]} : vector<256x96xf32> to vector<256x8xf32>
    %106 = vector.shape_cast %105 : vector<256x8xf32> to vector<4x64x8xf32>
    %107 = arith.truncf %106 : vector<4x64x8xf32> to vector<4x64x8xbf16>
    %108 = vector.extract_strided_slice %4 {offsets = [0, 56], sizes = [256, 8], strides = [1, 1]} : vector<256x96xf32> to vector<256x8xf32>
    %109 = vector.shape_cast %108 : vector<256x8xf32> to vector<4x64x8xf32>
    %110 = arith.truncf %109 : vector<4x64x8xf32> to vector<4x64x8xbf16>
    %111 = vector.extract_strided_slice %4 {offsets = [0, 88], sizes = [256, 8], strides = [1, 1]} : vector<256x96xf32> to vector<256x8xf32>
    %112 = vector.shape_cast %111 : vector<256x8xf32> to vector<4x64x8xf32>
    %113 = arith.truncf %112 : vector<4x64x8xf32> to vector<4x64x8xbf16>
    "tpu.trace_start"() <{level = 10 : i32, message = "bnd,bmd->bnm"}> : () -> ()
    %cst_36 = arith.constant dense<0.000000e+00> : vector<4x64x64xf32>
    %114 = tpu.matmul %107, %110, %cst_36 {dimension_numbers = #tpu.dot_dimension_numbers<[2], [2], [1], [1], [0, 0, 0, 1, 1, 1], [0], [0]>} : vector<4x64x8xbf16>, vector<4x64x8xbf16>, vector<4x64x64xf32> -> vector<4x64x64xf32>
    "tpu.trace_stop"() : () -> ()
    %c3 = arith.constant 3 : index
    %c0_37 = arith.constant 0 : index
    %c0_38 = arith.constant 0 : index
    %115 = vector.load %arg5[%c3, %c0_37, %c0_38] : memref<4x64x64xf32, #tpu.memory_space<vmem>>, vector<1x64x64xf32>
    %116 = vector.shape_cast %115 : vector<1x64x64xf32> to vector<64x64xf32>
    %117 = vector.shape_cast %116 : vector<64x64xf32> to vector<1x64x64xf32>
    %118 = vector.broadcast %117 : vector<1x64x64xf32> to vector<4x64x64xf32>
    %119 = arith.addf %114, %118 : vector<4x64x64xf32>
    %cst_39 = arith.constant dense<0xFF800000> : vector<4x64xf32>
    %120 = vector.multi_reduction <maximumf>, %119, %cst_39 [2] : vector<4x64x64xf32> to vector<4x64xf32>
    %121 = vector.shape_cast %120 : vector<4x64xf32> to vector<4x64x1xf32>
    %122 = vector.broadcast %121 : vector<4x64x1xf32> to vector<4x64x64xf32>
    %123 = arith.subf %119, %122 : vector<4x64x64xf32>
    %124 = math.exp %123 : vector<4x64x64xf32>
    %cst_40 = arith.constant dense<0.000000e+00> : vector<4x64xf32>
    %125 = vector.multi_reduction <add>, %124, %cst_40 [2] : vector<4x64x64xf32> to vector<4x64xf32>
    %126 = vector.shape_cast %125 : vector<4x64xf32> to vector<4x64x1xf32>
    %127 = tpu.reciprocal %126 {approx = true} : vector<4x64x1xf32> -> vector<4x64x1xf32>
    %128 = vector.broadcast %127 : vector<4x64x1xf32> to vector<4x64x64xf32>
    %129 = arith.mulf %124, %128 : vector<4x64x64xf32>
    %130 = arith.truncf %129 : vector<4x64x64xf32> to vector<4x64x64xbf16>
    "tpu.trace_start"() <{level = 10 : i32, message = "bnm,bmd->bnd"}> : () -> ()
    %cst_41 = arith.constant dense<0.000000e+00> : vector<4x64x8xf32>
    %131 = tpu.matmul %130, %113, %cst_41 {dimension_numbers = #tpu.dot_dimension_numbers<[2], [1], [1], [2], [0, 0, 0, 1, 1, 2], [0], [0]>} : vector<4x64x64xbf16>, vector<4x64x8xbf16>, vector<4x64x8xf32> -> vector<4x64x8xf32>
    "tpu.trace_stop"() : () -> ()
    %132 = vector.shape_cast %131 : vector<4x64x8xf32> to vector<256x8xf32>
    %133 = arith.truncf %132 : vector<256x8xf32> to vector<256x8xbf16>
    %c3_42 = arith.constant 3 : index
    %c0_43 = arith.constant 0 : index
    %c0_44 = arith.constant 0 : index
    %134 = vector.load %arg3[%c3_42, %c0_43, %c0_44] : memref<4x8x32xbf16, #tpu.memory_space<vmem>>, vector<1x8x32xbf16>
    %135 = vector.shape_cast %134 : vector<1x8x32xbf16> to vector<8x32xbf16>
    %cst_45 = arith.constant dense<0.000000e+00> : vector<256x32xf32>
    %136 = tpu.matmul %133, %135, %cst_45 {dimension_numbers = #tpu.dot_dimension_numbers<[1], [0], [0], [1], [0, 0, 1, 1], [], []>} : vector<256x8xbf16>, vector<8x32xbf16>, vector<256x32xf32> -> vector<256x32xf32>
    %137 = arith.addf %104, %136 : vector<256x32xf32>
    %c0_46 = arith.constant 0 : index
    %c0_47 = arith.constant 0 : index
    %138 = vector.load %arg4[%c0_46, %c0_47] : memref<1x32xf32, #tpu.memory_space<vmem>>, vector<1x32xf32>
    %139 = vector.broadcast %138 : vector<1x32xf32> to vector<256x32xf32>
    %140 = arith.addf %137, %139 : vector<256x32xf32>
    %141 = vector.shape_cast %140 : vector<256x32xf32> to vector<4x64x32xf32>
    %c0_48 = arith.constant 0 : index
    %c0_49 = arith.constant 0 : index
    %c0_50 = arith.constant 0 : index
    %142 = vector.load %arg6[%c0_48, %c0_49, %c0_50] : memref<4x64x32xf32, #tpu.memory_space<vmem>>, vector<4x64x32xf32>
    tpu.vector_store %arg6[%c0_48, %c0_49, %c0_50], %141 {strides = array<i32>} : memref<4x64x32xf32, #tpu.memory_space<vmem>>, vector<4x64x32xf32>,
    return
  }
  func.func @transform_0(%arg0: i32) -> (i32, i32, i32) {
    %c0_i32 = arith.constant 0 : i32
    %c0_i32_0 = arith.constant 0 : i32
    %c0_i32_1 = arith.constant 0 : i32
    return %arg0, %c0_i32, %c0_i32_0 : i32, i32, i32
  }
  func.func @transform_1(%arg0: i32) -> (i32, i32) {
    %c0_i32 = arith.constant 0 : i32
    %c0_i32_0 = arith.constant 0 : i32
    %c0_i32_1 = arith.constant 0 : i32
    return %c0_i32, %c0_i32_0 : i32, i32
  }
  func.func @transform_2(%arg0: i32) -> (i32, i32, i32) {
    %c0_i32 = arith.constant 0 : i32
    %c0_i32_0 = arith.constant 0 : i32
    %c0_i32_1 = arith.constant 0 : i32
    %c0_i32_2 = arith.constant 0 : i32
    return %c0_i32, %c0_i32_0, %c0_i32_1 : i32, i32, i32
  }
  func.func @transform_3(%arg0: i32) -> (i32, i32) {
    %c0_i32 = arith.constant 0 : i32
    %c0_i32_0 = arith.constant 0 : i32
    %c0_i32_1 = arith.constant 0 : i32
    return %c0_i32, %c0_i32_0 : i32, i32
  }
  func.func @transform_4(%arg0: i32) -> (i32, i32, i32) {
    %c0_i32 = arith.constant 0 : i32
    %c0_i32_0 = arith.constant 0 : i32
    %c0_i32_1 = arith.constant 0 : i32
    %c0_i32_2 = arith.constant 0 : i32
    return %c0_i32, %c0_i32_0, %c0_i32_1 : i32, i32, i32
  }
  func.func @transform_5(%arg0: i32) -> (i32, i32, i32) {
    %c0_i32 = arith.constant 0 : i32
    %c0_i32_0 = arith.constant 0 : i32
    %c0_i32_1 = arith.constant 0 : i32
    return %arg0, %c0_i32, %c0_i32_0 : i32, i32, i32
  }
}

</mosaic_0001>

<llo_original>
// kernel: tpu_custom_call.1
$region0: #{tpu_custom_call.1}
  #allocation0 [shape = 'u32[]', space=smem, size = 0x4, offset = 0x4, fixed_abs, tag = 'smem constant byte address 0x4 - core index']
  #allocation1 [shape = 'u32[144,128]{1,0:T(1,128)}', space=vmem, size = 0x12000, scoped, tag = 'internal scratch']
  %s0 = inlined_call_operand.vmem [shape: f32[8,64,32], index: 0, kind: input, shape index: {}]
  %s1 = inlined_call_operand.vmem [shape: bf16[32,96], index: 1, kind: input, shape index: {}]
  %s2 = inlined_call_operand.vmem [shape: bf16[4,8,32], index: 2, kind: input, shape index: {}]
  %s3 = inlined_call_operand.vmem [shape: f32[1,32], index: 3, kind: input, shape index: {}]
  %s4 = inlined_call_operand.vmem [shape: f32[4,64,64], index: 4, kind: input, shape index: {}]
  %s5 = inlined_call_operand.vmem [shape: f32[8,64,32], index: 5, kind: output, shape index: {}]
  %s6 = sld [smem:[#allocation0]]
  $region53: #{tpu_custom_call.1} parent=0
    _
  %s8 = ssub.s32 1, %s6
  %s9 = scalar_select 0, %s8, %s6
  loop: start=0, step=1, limit=4
  $region2: #{tpu_custom_call.1} parent=0 // loop_pre_header
    _
  $region3: #{tpu_custom_call.1} parent=0 // loop_header
    %s11 = sphi 0, %s15
    %p12 = scmp.ge.s32.totalorder %s11, 4
    %s21 = sphi 0, %s23
    %s24 = sphi 0, %s21
    %s25 = sphi 0, %s24
    %s41 = sphi 0, %s25
    %s45 = sphi 0, %s45
    %s47 = sphi 0, %s45
    %s48 = sphi 0, %s47
    %s62 = sphi 0, %s48
    %s66 = sphi 0, %s66
    %s68 = sphi 0, %s66
    %s69 = sphi 0, %s68
    %s83 = sphi 0, %s69
    %s87 = sphi 0, %s87
    %s89 = sphi 0, %s87
    %s90 = sphi 0, %s89
    %s104 = sphi 0, %s90
    %s108 = sphi 0, %s108
    %s110 = sphi 0, %s108
    %s111 = sphi 0, %s110
    %s125 = sphi 0, %s111
    %s131 = sphi 0, %s133
    %s134 = sphi 0, %s131
    %s135 = sphi 0, %s134
    %s151 = sphi 0, %s135
  $region4: #{tpu_custom_call.1} parent=0 // loop_header_branch
    %14 = sbr.rel (%p12) target = $region8
  $region5: #{tpu_custom_call.1} parent=0 // loop_body
    %s16 = ssub.s32 %s11, 1
    %s17 = ssub.s32 %s11, 2
    %s18 = sadd.s32 %s11, 1
    %s19 = ssub.s32 %s11, %s18
    %p20 = scmp.eq.s32.totalorder %s19, 0
    %s22 = sadd.s32 %s21, 1
    %s23 = scalar_select %p20, %s21, %s22
    %p26 = pneg %p20
    %p27 = scmp.eq.s32.totalorder %s11, 1
    %p28 = por %p26, %p27
    %p29 = scmp.ne.s32.totalorder %s21, %s24
    %p30 = scmp.eq.s32.totalorder %s11, 0
    %p31 = por %p29, %p30
    %p32 = scmp.ne.s32.totalorder %s21, %s24
    %p33 = scmp.eq.s32.totalorder %s16, 1
    %p34 = por %p32, %p33
    %p35 = scmp.ne.s32.totalorder %s24, %s25
    %p36 = scmp.eq.s32.totalorder %s16, 0
    %p37 = por %p35, %p36
    %p38 = scmp.ne.s32.totalorder %s24, %s25
    %p39 = scmp.eq.s32.totalorder %s17, 1
    %p40 = por %p38, %p39
    %p42 = scmp.ne.s32.totalorder %s25, %s41
    %p43 = scmp.eq.s32.totalorder %s17, 0
    %p44 = por %p42, %p43
    %s46 = sadd.s32 %s45, 1
    %p49 = scmp.eq.s32.totalorder %s11, 1
    %p50 = scmp.ne.s32.totalorder %s45, %s47
    %p51 = scmp.eq.s32.totalorder %s11, 0
    %p52 = por %p50, %p51
    %p53 = scmp.ne.s32.totalorder %s45, %s47
    %p54 = scmp.eq.s32.totalorder %s16, 1
    %p55 = por %p53, %p54
    %p56 = scmp.ne.s32.totalorder %s47, %s48
    %p57 = scmp.eq.s32.totalorder %s16, 0
    %p58 = por %p56, %p57
    %p59 = scmp.ne.s32.totalorder %s47, %s48
    %p60 = scmp.eq.s32.totalorder %s17, 1
    %p61 = por %p59, %p60
    %p63 = scmp.ne.s32.totalorder %s48, %s62
    %p64 = scmp.eq.s32.totalorder %s17, 0
    %p65 = por %p63, %p64
    %s67 = sadd.s32 %s66, 1
    %p70 = scmp.eq.s32.totalorder %s11, 1
    %p71 = scmp.ne.s32.totalorder %s66, %s68
    %p72 = scmp.eq.s32.totalorder %s11, 0
    %p73 = por %p71, %p72
    %p74 = scmp.ne.s32.totalorder %s66, %s68
    %p75 = scmp.eq.s32.totalorder %s16, 1
    %p76 = por %p74, %p75
    %p77 = scmp.ne.s32.totalorder %s68, %s69
    %p78 = scmp.eq.s32.totalorder %s16, 0
    %p79 = por %p77, %p78
    %p80 = scmp.ne.s32.totalorder %s68, %s69
    %p81 = scmp.eq.s32.totalorder %s17, 1
    %p82 = por %p80, %p81
    %p84 = scmp.ne.s32.totalorder %s69, %s83
    %p85 = scmp.eq.s32.totalorder %s17, 0
    %p86 = por %p84, %p85
    %s88 = sadd.s32 %s87, 1
    %p91 = scmp.eq.s32.totalorder %s11, 1
    %p92 = scmp.ne.s32.totalorder %s87, %s89
    %p93 = scmp.eq.s32.totalorder %s11, 0
    %p94 = por %p92, %p93
    %p95 = scmp.ne.s32.totalorder %s87, %s89
    %p96 = scmp.eq.s32.totalorder %s16, 1
    %p97 = por %p95, %p96
    %p98 = scmp.ne.s32.totalorder %s89, %s90
    %p99 = scmp.eq.s32.totalorder %s16, 0
    %p100 = por %p98, %p99
    %p101 = scmp.ne.s32.totalorder %s89, %s90
    %p102 = scmp.eq.s32.totalorder %s17, 1
    %p103 = por %p101, %p102
    %p105 = scmp.ne.s32.totalorder %s90, %s104
    %p106 = scmp.eq.s32.totalorder %s17, 0
    %p107 = por %p105, %p106
    %s109 = sadd.s32 %s108, 1
    %p112 = scmp.eq.s32.totalorder %s11, 1
    %p113 = scmp.ne.s32.totalorder %s108, %s110
    %p114 = scmp.eq.s32.totalorder %s11, 0
    %p115 = por %p113, %p114
    %p116 = scmp.ne.s32.totalorder %s108, %s110
    %p117 = scmp.eq.s32.totalorder %s16, 1
    %p118 = por %p116, %p117
    %p119 = scmp.ne.s32.totalorder %s110, %s111
    %p120 = scmp.eq.s32.totalorder %s16, 0
    %p121 = por %p119, %p120
    %p122 = scmp.ne.s32.totalorder %s110, %s111
    %p123 = scmp.eq.s32.totalorder %s17, 1
    %p124 = por %p122, %p123
    %p126 = scmp.ne.s32.totalorder %s111, %s125
    %p127 = scmp.eq.s32.totalorder %s17, 0
    %p128 = por %p126, %p127
    %s129 = ssub.s32 %s11, %s18
    %p130 = scmp.eq.s32.totalorder %s129, 0
    %s132 = sadd.s32 %s131, 1
    %s133 = scalar_select %p130, %s131, %s132
    %p136 = pneg %p130
    %p137 = scmp.eq.s32.totalorder %s11, 1
    %p138 = por %p136, %p137
    %p139 = scmp.ne.s32.totalorder %s131, %s134
    %p140 = scmp.eq.s32.totalorder %s11, 0
    %p141 = por %p139, %p140
    %p142 = scmp.ne.s32.totalorder %s131, %s134
    %p143 = scmp.eq.s32.totalorder %s16, 1
    %p144 = por %p142, %p143
    %p145 = scmp.ne.s32.totalorder %s134, %s135
    %p146 = scmp.eq.s32.totalorder %s16, 0
    %p147 = por %p145, %p146
    %p148 = scmp.ne.s32.totalorder %s134, %s135
    %p149 = scmp.eq.s32.totalorder %s17, 1
    %p150 = por %p148, %p149
    %p152 = scmp.ne.s32.totalorder %s135, %s151
    %p153 = scmp.eq.s32.totalorder %s17, 0
    %p154 = por %p152, %p153
    %p155 = scmp.le.s32.totalorder 1, %s11
    %p156 = scmp.lt.s32.totalorder %s11, 3
    %p157 = pnand %p155, %p156
    %p158 = pneg %p157
    // Predicated region
    $region9: #{tpu_custom_call.1} parent=5 // pred_check
      _
    $region10: #{tpu_custom_call.1} parent=5 // pred_check_branch
      %160 = sbr.rel (%p157) target = $region12
    $region11: #{tpu_custom_call.1} parent=5 // pred_region
      %s161 = ssub.s32 %s11, 1
      // Predicated region
      $region13: #{tpu_custom_call.1} parent=11 // pred_check
        %p162 = pneg %p58
      $region14: #{tpu_custom_call.1} parent=11 // pred_check_branch
        %164 = sbr.rel (%p162) target = $region16
      $region15: #{tpu_custom_call.1} parent=11 // pred_region
        _
      $region16: #{tpu_custom_call.1} parent=11 // pred_fallthru
        _
      // Predicated region
      $region17: #{tpu_custom_call.1} parent=11 // pred_check
        %p165 = pneg %p79
      $region18: #{tpu_custom_call.1} parent=11 // pred_check_branch
        %167 = sbr.rel (%p165) target = $region20
      $region19: #{tpu_custom_call.1} parent=11 // pred_region
        _
      $region20: #{tpu_custom_call.1} parent=11 // pred_fallthru
        _
      // Predicated region
      $region21: #{tpu_custom_call.1} parent=11 // pred_check
        %p168 = pneg %p100
      $region22: #{tpu_custom_call.1} parent=11 // pred_check_branch
        %170 = sbr.rel (%p168) target = $region24
      $region23: #{tpu_custom_call.1} parent=11 // pred_region
        _
      $region24: #{tpu_custom_call.1} parent=11 // pred_fallthru
        _
      // Predicated region
      $region25: #{tpu_custom_call.1} parent=11 // pred_check
        %p171 = pneg %p121
      $region26: #{tpu_custom_call.1} parent=11 // pred_check_branch
        %173 = sbr.rel (%p171) target = $region28
      $region27: #{tpu_custom_call.1} parent=11 // pred_region
        _
      $region28: #{tpu_custom_call.1} parent=11 // pred_fallthru
        _
    $region12: #{tpu_custom_call.1} parent=5 // pred_fallthru
      _
    %p174 = scmp.lt.s32.totalorder %s11, 2
    // Predicated region
    $region29: #{tpu_custom_call.1} parent=5 // pred_check
      %p175 = pneg %p174
    $region30: #{tpu_custom_call.1} parent=5 // pred_check_branch
      %177 = sbr.rel (%p175) target = $region32
    $region31: #{tpu_custom_call.1} parent=5 // pred_region
      // Predicated region
      $region33: #{tpu_custom_call.1} parent=31 // pred_check
        %p178 = pneg %p31
      $region34: #{tpu_custom_call.1} parent=31 // pred_check_branch
        %180 = sbr.rel (%p178) target = $region36
      $region35: #{tpu_custom_call.1} parent=31 // pred_region
        %s181 = smul.u32 4, %s11
        %p182 = scmp.lt.s32.totalorder %s181, 7
        %s183 = scalar_select %p182, %s181, 7
        %s184 = smul.addr %s183, 8
        %s185 = smul.addr %s184, 8
        %s186 = scalar_lea.vmem %s0, %s185
        %s187 = smul.u32 4, %s11
      $region36: #{tpu_custom_call.1} parent=31 // pred_fallthru
        _
    $region32: #{tpu_custom_call.1} parent=5 // pred_fallthru
      _
    %p188 = scmp.le.s32.totalorder 1, %s11
    %p189 = scmp.lt.s32.totalorder %s11, 3
    %p190 = pnand %p188, %p189
    %p191 = pneg %p190
    // Predicated region
    $region37: #{tpu_custom_call.1} parent=5 // pred_check
      _
    $region38: #{tpu_custom_call.1} parent=5 // pred_check_branch
      %193 = sbr.rel (%p190) target = $region40
    $region39: #{tpu_custom_call.1} parent=5 // pred_region
      %s194 = ssub.s32 %s11, 1
      %s195 = smul.u32 4, %s16
      %p196 = scmp.lt.s32.totalorder %s195, 7
      %s197 = scalar_select %p196, %s195, 7
      %s198 = smul.addr %s197, 8
      %s199 = smul.addr %s198, 8
      %s200 = scalar_lea.vmem %s0, %s199
      %p201 = pneg %p37
      %p202 = pneg %p34
      %p203 = pneg %p58
      %p204 = pneg %p55
      %p205 = pneg %p79
      %p206 = pneg %p76
      %p207 = pneg %p100
      %p208 = pneg %p97
      %p209 = pneg %p121
      %p210 = pneg %p118
      %p211 = pneg %p147
      %p212 = pneg %p144
      %s213 = smul.u32 4, %s16
      %p214 = scmp.lt.s32.totalorder %s213, 7
      %s215 = scalar_select %p214, %s213, 7
      %s216 = smul.addr %s215, 8
      %s217 = smul.addr %s216, 8
      %s218 = scalar_lea.vmem %s5, %s217
      %s219 = smul.u32 4, %s16
      %p220 = scmp.lt.s32.totalorder %s219, 7
      %s221 = scalar_select %p220, %s219, 7
      %s222 = smul.addr %s221, 8
      %s223 = smul.addr %s222, 8
      %s224 = scalar_lea.vmem %s0, %s223
      %s225 = smul.u32 4, %s16
      %s226 = smul.u32 4, %s16
      %p227 = scmp.lt.s32.totalorder %s226, 7
      %s228 = scalar_select %p227, %s226, 7
      %s229 = smul.addr %s228, 8
      %s230 = smul.addr %s229, 8
      %s231 = scalar_lea.vmem %s5, %s230
      %s232 = smul.u32 4, %s16
      %v234 = vld [vmem:[%s224] sm:$0xff]
      %v235 = vld [vmem:[%s224 + $0x8] sm:$0xff]
      %v236 = vld [vmem:[%s224 + $0x10] sm:$0xff]
      %v237 = vld [vmem:[%s224 + $0x18] sm:$0xff]
      %v238 = vld [vmem:[%s224 + $0x20] sm:$0xff]
      %v239 = vld [vmem:[%s224 + $0x28] sm:$0xff]
      %v240 = vld [vmem:[%s224 + $0x30] sm:$0xff]
      %v241 = vld [vmem:[%s224 + $0x38] sm:$0xff]
      %v242 = vld [vmem:[%s224 + $0x40] sm:$0xff]
      %v243 = vld [vmem:[%s224 + $0x48] sm:$0xff]
      %v244 = vld [vmem:[%s224 + $0x50] sm:$0xff]
      %v245 = vld [vmem:[%s224 + $0x58] sm:$0xff]
      %v246 = vld [vmem:[%s224 + $0x60] sm:$0xff]
      %v247 = vld [vmem:[%s224 + $0x68] sm:$0xff]
      %v248 = vld [vmem:[%s224 + $0x70] sm:$0xff]
      %v249 = vld [vmem:[%s224 + $0x78] sm:$0xff]
      %v250 = vld [vmem:[%s224 + $0x80] sm:$0xff]
      %v251 = vld [vmem:[%s224 + $0x88] sm:$0xff]
      %v252 = vld [vmem:[%s224 + $0x90] sm:$0xff]
      %v253 = vld [vmem:[%s224 + $0x98] sm:$0xff]
      %v254 = vld [vmem:[%s224 + $0xa0] sm:$0xff]
      %v255 = vld [vmem:[%s224 + $0xa8] sm:$0xff]
      %v256 = vld [vmem:[%s224 + $0xb0] sm:$0xff]
      %v257 = vld [vmem:[%s224 + $0xb8] sm:$0xff]
      %v258 = vld [vmem:[%s224 + $0xc0] sm:$0xff]
      %v259 = vld [vmem:[%s224 + $0xc8] sm:$0xff]
      %v260 = vld [vmem:[%s224 + $0xd0] sm:$0xff]
      %v261 = vld [vmem:[%s224 + $0xd8] sm:$0xff]
      %v262 = vld [vmem:[%s224 + $0xe0] sm:$0xff]
      %v263 = vld [vmem:[%s224 + $0xe8] sm:$0xff]
      %v264 = vld [vmem:[%s224 + $0xf0] sm:$0xff]
      %v265 = vld [vmem:[%s224 + $0xf8] sm:$0xff]
      %v266 = vpack.c.bf16 %v235, %v234
      %v267 = vpack.c.bf16 %v237, %v236
      %v268 = vpack.c.bf16 %v239, %v238
      %v269 = vpack.c.bf16 %v241, %v240
      %v270 = vpack.c.bf16 %v243, %v242
      %v271 = vpack.c.bf16 %v245, %v244
      %v272 = vpack.c.bf16 %v247, %v246
      %v273 = vpack.c.bf16 %v249, %v248
      %v274 = vpack.c.bf16 %v251, %v250
      %v275 = vpack.c.bf16 %v253, %v252
      %v276 = vpack.c.bf16 %v255, %v254
      %v277 = vpack.c.bf16 %v257, %v256
      %v278 = vpack.c.bf16 %v259, %v258
      %v279 = vpack.c.bf16 %v261, %v260
      %v280 = vpack.c.bf16 %v263, %v262
      %v281 = vpack.c.bf16 %v265, %v264
      %v282 = vld [vmem:[%s1] sm:$0xf]
      %v283 = vld [vmem:[%s1 + $0x4] sm:$0xf]
      %v284 = vld [vmem:[%s1 + $0x8] sm:$0xf]
      %v285 = vld [vmem:[%s1 + $0xc] sm:$0xf]
      %v290 = vunpack.c.l.b16 %v282
      %v291 = vunpack.c.l.b16 %v283
      %v292 = vunpack.c.l.b16 %v284
      %v293 = vunpack.c.l.b16 %v285
      %v294 = vpack.c.b16 %v291, %v290
      %v295 = vpack.c.b16 %v293, %v292
      %vm298 = vcmask 261120
      %v300 = vsel %vm298, %v266, 0
      %v303 = vsel %vm298, %v267, 0
      %v306 = vsel %vm298, %v268, 0
      %v309 = vsel %vm298, %v269, 0
      %v312 = vsel %vm298, %v270, 0
      %v315 = vsel %vm298, %v271, 0
      %v318 = vsel %vm298, %v272, 0
      %v321 = vsel %vm298, %v273, 0
      %v324 = vsel %vm298, %v274, 0
      %v327 = vsel %vm298, %v275, 0
      %v330 = vsel %vm298, %v276, 0
      %v333 = vsel %vm298, %v277, 0
      %v336 = vsel %vm298, %v278, 0
      %v339 = vsel %vm298, %v279, 0
      %v342 = vsel %vm298, %v280, 0
      %v345 = vsel %vm298, %v281, 0
      %347 = vmatprep.subr.bf16.mxu0 0
      %348 = vmatpush1.bf16.msra.mxu0 0
      %349 = vmatprep.subr.bf16.mxu0 0
      %350 = vmatpush1.bf16.msra.mxu0 0
      %351 = vmatprep.subr.bf16.mxu0 0
      %352 = vmatpush1.bf16.msra.mxu0 0
      %353 = vmatprep.subr.bf16.mxu0 0
      %354 = vmatpush1.bf16.msra.mxu0 0
      %355 = vmatprep.subr.bf16.mxu0 0
      %356 = vmatpush1.bf16.msra.mxu0 0
      %357 = vmatprep.subr.bf16.mxu0 0
      %358 = vmatpush1.bf16.msra.mxu0 0
      %359 = vmatprep.subr.bf16.mxu0 0
      %360 = vmatpush1.bf16.msra.mxu0 %v295
      %361 = vmatprep.subr.bf16.mxu0 0
      %362 = vmatpush1.bf16.msra.mxu0 %v294
      %363 = vmatprep.subr.bf16.mxu0 0
      %364 = vmatpush2.bf16.msra.mxu0 0
      %365 = vmatprep.subr.bf16.mxu0 0
      %366 = vmatpush2.bf16.msra.mxu0 0
      %367 = vmatprep.subr.bf16.mxu0 0
      %368 = vmatpush2.bf16.msra.mxu0 0
      %369 = vmatprep.subr.bf16.mxu0 0
      %370 = vmatpush2.bf16.msra.mxu0 0
      %371 = vmatprep.subr.bf16.mxu0 0
      %372 = vmatpush2.bf16.msra.mxu0 0
      %373 = vmatprep.subr.bf16.mxu0 0
      %374 = vmatpush2.bf16.msra.mxu0 0
      %375 = vmatprep.subr.bf16.mxu0 0
      %376 = vmatpush2.bf16.msra.mxu0 0
      %377 = vmatprep.subr.bf16.mxu0 0
      %378 = vmatpush2.bf16.msra.mxu0 0
      %379 = vmatprep.mubr.bf16.mxu0 0
      %380 = vmatmul.mubr.bf16.gmra.mxu0 %v300
      %v381 = vpop.f32.mrf.mxu0
      %v382 = vadd.f32 0.0, %v381
      %v383 = vpop.f32.mrf.mxu0
      %v384 = vpop.f32.mrf.mxu0
      %v385 = vadd.f32 0.0, %v384
      %v386 = vpop.f32.mrf.mxu0
      %387 = vmatprep.mubr.bf16.mxu0 0
      %388 = vmatmul.mubr.bf16.gmra.mxu0 %v303
      %v389 = vpop.f32.mrf.mxu0
      %v390 = vadd.f32 0.0, %v389
      %v391 = vpop.f32.mrf.mxu0
      %v392 = vpop.f32.mrf.mxu0
      %v393 = vadd.f32 0.0, %v392
      %v394 = vpop.f32.mrf.mxu0
      %395 = vmatprep.mubr.bf16.mxu0 0
      %396 = vmatmul.mubr.bf16.gmra.mxu0 %v306
      %v397 = vpop.f32.mrf.mxu0
      %v398 = vadd.f32 0.0, %v397
      %v399 = vpop.f32.mrf.mxu0
      %v400 = vpop.f32.mrf.mxu0
      %v401 = vadd.f32 0.0, %v400
      %v402 = vpop.f32.mrf.mxu0
      %403 = vmatprep.mubr.bf16.mxu0 0
      %404 = vmatmul.mubr.bf16.gmra.mxu0 %v309
      %v405 = vpop.f32.mrf.mxu0
      %v406 = vadd.f32 0.0, %v405
      %v407 = vpop.f32.mrf.mxu0
      %v408 = vpop.f32.mrf.mxu0
      %v409 = vadd.f32 0.0, %v408
      %v410 = vpop.f32.mrf.mxu0
      %411 = vmatprep.mubr.bf16.mxu0 0
      %412 = vmatmul.mubr.bf16.gmra.mxu0 %v312
      %v413 = vpop.f32.mrf.mxu0
      %v414 = vadd.f32 0.0, %v413
      %v415 = vpop.f32.mrf.mxu0
      %v416 = vpop.f32.mrf.mxu0
      %v417 = vadd.f32 0.0, %v416
      %v418 = vpop.f32.mrf.mxu0
      %419 = vmatprep.mubr.bf16.mxu0 0
      %420 = vmatmul.mubr.bf16.gmra.mxu0 %v315
      %v421 = vpop.f32.mrf.mxu0
      %v422 = vadd.f32 0.0, %v421
      %v423 = vpop.f32.mrf.mxu0
      %v424 = vpop.f32.mrf.mxu0
      %v425 = vadd.f32 0.0, %v424
      %v426 = vpop.f32.mrf.mxu0
      %427 = vmatprep.mubr.bf16.mxu0 0
      %428 = vmatmul.mubr.bf16.gmra.mxu0 %v318
      %v429 = vpop.f32.mrf.mxu0
      %v430 = vadd.f32 0.0, %v429
      %v431 = vpop.f32.mrf.mxu0
      %v432 = vpop.f32.mrf.mxu0
      %v433 = vadd.f32 0.0, %v432
      %v434 = vpop.f32.mrf.mxu0
      %435 = vmatprep.mubr.bf16.mxu0 0
      %436 = vmatmul.mubr.bf16.gmra.mxu0 %v321
      %v437 = vpop.f32.mrf.mxu0
      %v438 = vadd.f32 0.0, %v437
      %v439 = vpop.f32.mrf.mxu0
      %v440 = vpop.f32.mrf.mxu0
      %v441 = vadd.f32 0.0, %v440
      %v442 = vpop.f32.mrf.mxu0
      %443 = vmatprep.mubr.bf16.mxu0 0
      %444 = vmatmul.mubr.bf16.gmra.mxu0 %v324
      %v445 = vpop.f32.mrf.mxu0
      %v446 = vadd.f32 0.0, %v445
      %v447 = vpop.f32.mrf.mxu0
      %v448 = vpop.f32.mrf.mxu0
      %v449 = vadd.f32 0.0, %v448
      %v450 = vpop.f32.mrf.mxu0
      %451 = vmatprep.mubr.bf16.mxu0 0
      %452 = vmatmul.mubr.bf16.gmra.mxu0 %v327
      %v453 = vpop.f32.mrf.mxu0
      %v454 = vadd.f32 0.0, %v453
      %v455 = vpop.f32.mrf.mxu0
      %v456 = vpop.f32.mrf.mxu0
      %v457 = vadd.f32 0.0, %v456
      %v458 = vpop.f32.mrf.mxu0
      %459 = vmatprep.mubr.bf16.mxu0 0
      %460 = vmatmul.mubr.bf16.gmra.mxu0 %v330
      %v461 = vpop.f32.mrf.mxu0
      %v462 = vadd.f32 0.0, %v461
      %v463 = vpop.f32.mrf.mxu0
      %v464 = vpop.f32.mrf.mxu0
      %v465 = vadd.f32 0.0, %v464
      %v466 = vpop.f32.mrf.mxu0
      %467 = vmatprep.mubr.bf16.mxu0 0
      %468 = vmatmul.mubr.bf16.gmra.mxu0 %v333
      %v469 = vpop.f32.mrf.mxu0
      %v470 = vadd.f32 0.0, %v469
      %v471 = vpop.f32.mrf.mxu0
      %v472 = vpop.f32.mrf.mxu0
      %v473 = vadd.f32 0.0, %v472
      %v474 = vpop.f32.mrf.mxu0
      %475 = vmatprep.mubr.bf16.mxu0 0
      %476 = vmatmul.mubr.bf16.gmra.mxu0 %v336
      %v477 = vpop.f32.mrf.mxu0
      %v478 = vadd.f32 0.0, %v477
      %v479 = vpop.f32.mrf.mxu0
      %v480 = vpop.f32.mrf.mxu0
      %v481 = vadd.f32 0.0, %v480
      %v482 = vpop.f32.mrf.mxu0
      %483 = vmatprep.mubr.bf16.mxu0 0
      %484 = vmatmul.mubr.bf16.gmra.mxu0 %v339
      %v485 = vpop.f32.mrf.mxu0
      %v486 = vadd.f32 0.0, %v485
      %v487 = vpop.f32.mrf.mxu0
      %v488 = vpop.f32.mrf.mxu0
      %v489 = vadd.f32 0.0, %v488
      %v490 = vpop.f32.mrf.mxu0
      %491 = vmatprep.mubr.bf16.mxu0 0
      %492 = vmatmul.mubr.bf16.gmra.mxu0 %v342
      %v493 = vpop.f32.mrf.mxu0
      %v494 = vadd.f32 0.0, %v493
      %v495 = vpop.f32.mrf.mxu0
      %v496 = vpop.f32.mrf.mxu0
      %v497 = vadd.f32 0.0, %v496
      %v498 = vpop.f32.mrf.mxu0
      %499 = vmatprep.mubr.bf16.mxu0 0
      %500 = vmatmul.mubr.bf16.gmra.mxu0 %v345
      %v501 = vpop.f32.mrf.mxu0
      %v502 = vadd.f32 0.0, %v501
      %v503 = vpop.f32.mrf.mxu0
      %v504 = vpop.f32.mrf.mxu0
      %v505 = vadd.f32 0.0, %v504
      %v506 = vpop.f32.mrf.mxu0
      %507 = vdwg.mxu0
      %v508 = vpack.c.bf16 %v385, %v382
      %v509 = vpack.c.bf16 %v393, %v390
      %v510 = vpack.c.bf16 %v401, %v398
      %v511 = vpack.c.bf16 %v409, %v406
      %v512 = vpack.c.bf16 %v417, %v414
      %v513 = vpack.c.bf16 %v425, %v422
      %v514 = vpack.c.bf16 %v433, %v430
      %v515 = vpack.c.bf16 %v441, %v438
      %v516 = vpack.c.bf16 %v449, %v446
      %v517 = vpack.c.bf16 %v457, %v454
      %v518 = vpack.c.bf16 %v465, %v462
      %v519 = vpack.c.bf16 %v473, %v470
      %v520 = vpack.c.bf16 %v481, %v478
      %v521 = vpack.c.bf16 %v489, %v486
      %v522 = vpack.c.bf16 %v497, %v494
      %v523 = vpack.c.bf16 %v505, %v502
      %v524 = vld [vmem:[%s4] sm:$0xff]
      %v525 = vld [vmem:[%s4 + $0x8] sm:$0xff]
      %v526 = vld [vmem:[%s4 + $0x10] sm:$0xff]
      %v527 = vld [vmem:[%s4 + $0x18] sm:$0xff]
      %v528 = vld [vmem:[%s4 + $0x20] sm:$0xff]
      %v529 = vld [vmem:[%s4 + $0x28] sm:$0xff]
      %v530 = vld [vmem:[%s4 + $0x30] sm:$0xff]
      %v531 = vld [vmem:[%s4 + $0x38] sm:$0xff]
      %536 = vrot.lane.b32.xlu0 %v508, 96
      %v537 = vpop.permute.xlu0 %536
      %538 = vrot.lane.b32.xlu0 %v509, 96
      %v539 = vpop.permute.xlu0 %538
      %540 = vrot.lane.b32.xlu0 %v510, 96
      %v541 = vpop.permute.xlu0 %540
      %542 = vrot.lane.b32.xlu0 %v511, 96
      %v543 = vpop.permute.xlu0 %542
      %vm544 = vcmask 64512
      %v546 = vsel %vm544, %v508, 0
      %v549 = vsel %vm544, %v509, 0
      %v552 = vsel %vm544, %v510, 0
      %v555 = vsel %vm544, %v511, 0
      %v558 = vsel %vm544, %v537, 0
      %v561 = vsel %vm544, %v539, 0
      %v564 = vsel %vm544, %v541, 0
      %v567 = vsel %vm544, %v543, 0
      %569 = vmatprep.subr.bf16.mxu0 0
      %570 = vmatpush1.bf16.xpose.msra.mxu0 0
      %571 = vmatprep.subr.bf16.mxu0 0
      %572 = vmatpush1.bf16.xpose.msra.mxu0 0
      %573 = vmatprep.subr.bf16.mxu0 0
      %574 = vmatpush1.bf16.xpose.msra.mxu0 0
      %575 = vmatprep.subr.bf16.mxu0 0
      %576 = vmatpush1.bf16.xpose.msra.mxu0 0
      %577 = vmatprep.subr.bf16.mxu0 0
      %578 = vmatpush1.bf16.xpose.msra.mxu0 %v567
      %579 = vmatprep.subr.bf16.mxu0 0
      %580 = vmatpush1.bf16.xpose.msra.mxu0 %v564
      %581 = vmatprep.subr.bf16.mxu0 0
      %582 = vmatpush1.bf16.xpose.msra.mxu0 %v561
      %583 = vmatprep.subr.bf16.mxu0 0
      %584 = vmatpush1.bf16.xpose.msra.mxu0 %v558
      %585 = vmatprep.subr.bf16.mxu0 0
      %586 = vmatpush2.bf16.xpose.msra.mxu0 0
      %587 = vmatprep.subr.bf16.mxu0 0
      %588 = vmatpush2.bf16.xpose.msra.mxu0 0
      %589 = vmatprep.subr.bf16.mxu0 0
      %590 = vmatpush2.bf16.xpose.msra.mxu0 0
      %591 = vmatprep.subr.bf16.mxu0 0
      %592 = vmatpush2.bf16.xpose.msra.mxu0 0
      %593 = vmatprep.subr.bf16.mxu0 0
      %594 = vmatpush2.bf16.xpose.msra.mxu0 0
      %595 = vmatprep.subr.bf16.mxu0 0
      %596 = vmatpush2.bf16.xpose.msra.mxu0 0
      %597 = vmatprep.subr.bf16.mxu0 0
      %598 = vmatpush2.bf16.xpose.msra.mxu0 0
      %599 = vmatprep.subr.bf16.mxu0 0
      %600 = vmatpush2.bf16.xpose.msra.mxu0 0
      %601 = vmatprep.mubr.bf16.mxu0 0
      %602 = vmatmul.mubr.bf16.gmra.mxu0 %v546
      %v603 = vpop.f32.mrf.mxu0
      %v604 = vadd.f32 %v524, %v603
      %v605 = vpop.f32.mrf.mxu0
      %v606 = vpop.f32.mrf.mxu0
      %v607 = vadd.f32 %v525, %v606
      %v608 = vpop.f32.mrf.mxu0
      %609 = vmatprep.mubr.bf16.mxu0 0
      %610 = vmatmul.mubr.bf16.gmra.mxu0 %v549
      %v611 = vpop.f32.mrf.mxu0
      %v612 = vadd.f32 %v526, %v611
      %v613 = vpop.f32.mrf.mxu0
      %v614 = vpop.f32.mrf.mxu0
      %v615 = vadd.f32 %v527, %v614
      %v616 = vpop.f32.mrf.mxu0
      %617 = vmatprep.mubr.bf16.mxu0 0
      %618 = vmatmul.mubr.bf16.gmra.mxu0 %v552
      %v619 = vpop.f32.mrf.mxu0
      %v620 = vadd.f32 %v528, %v619
      %v621 = vpop.f32.mrf.mxu0
      %v622 = vpop.f32.mrf.mxu0
      %v623 = vadd.f32 %v529, %v622
      %v624 = vpop.f32.mrf.mxu0
      %625 = vmatprep.mubr.bf16.mxu0 0
      %626 = vmatmul.mubr.bf16.gmra.mxu0 %v555
      %v627 = vpop.f32.mrf.mxu0
      %v628 = vadd.f32 %v530, %v627
      %v629 = vpop.f32.mrf.mxu0
      %v630 = vpop.f32.mrf.mxu0
      %v631 = vadd.f32 %v531, %v630
      %v632 = vpop.f32.mrf.mxu0
      %633 = vdwg.mxu0
      %638 = vrot.lane.b32.xlu0 %v512, 96
      %v639 = vpop.permute.xlu0 %638
      %640 = vrot.lane.b32.xlu0 %v513, 96
      %v641 = vpop.permute.xlu0 %640
      %642 = vrot.lane.b32.xlu0 %v514, 96
      %v643 = vpop.permute.xlu0 %642
      %644 = vrot.lane.b32.xlu0 %v515, 96
      %v645 = vpop.permute.xlu0 %644
      %v647 = vsel %vm544, %v512, 0
      %v650 = vsel %vm544, %v513, 0
      %v653 = vsel %vm544, %v514, 0
      %v656 = vsel %vm544, %v515, 0
      %v659 = vsel %vm544, %v639, 0
      %v662 = vsel %vm544, %v641, 0
      %v665 = vsel %vm544, %v643, 0
      %v668 = vsel %vm544, %v645, 0
      %670 = vmatprep.subr.bf16.mxu0 0
      %671 = vmatpush1.bf16.xpose.msra.mxu0 0
      %672 = vmatprep.subr.bf16.mxu0 0
      %673 = vmatpush1.bf16.xpose.msra.mxu0 0
      %674 = vmatprep.subr.bf16.mxu0 0
      %675 = vmatpush1.bf16.xpose.msra.mxu0 0
      %676 = vmatprep.subr.bf16.mxu0 0
      %677 = vmatpush1.bf16.xpose.msra.mxu0 0
      %678 = vmatprep.subr.bf16.mxu0 0
      %679 = vmatpush1.bf16.xpose.msra.mxu0 %v668
      %680 = vmatprep.subr.bf16.mxu0 0
      %681 = vmatpush1.bf16.xpose.msra.mxu0 %v665
      %682 = vmatprep.subr.bf16.mxu0 0
      %683 = vmatpush1.bf16.xpose.msra.mxu0 %v662
      %684 = vmatprep.subr.bf16.mxu0 0
      %685 = vmatpush1.bf16.xpose.msra.mxu0 %v659
      %686 = vmatprep.subr.bf16.mxu0 0
      %687 = vmatpush2.bf16.xpose.msra.mxu0 0
      %688 = vmatprep.subr.bf16.mxu0 0
      %689 = vmatpush2.bf16.xpose.msra.mxu0 0
      %690 = vmatprep.subr.bf16.mxu0 0
      %691 = vmatpush2.bf16.xpose.msra.mxu0 0
      %692 = vmatprep.subr.bf16.mxu0 0
      %693 = vmatpush2.bf16.xpose.msra.mxu0 0
      %694 = vmatprep.subr.bf16.mxu0 0
      %695 = vmatpush2.bf16.xpose.msra.mxu0 0
      %696 = vmatprep.subr.bf16.mxu0 0
      %697 = vmatpush2.bf16.xpose.msra.mxu0 0
      %698 = vmatprep.subr.bf16.mxu0 0
      %699 = vmatpush2.bf16.xpose.msra.mxu0 0
      %700 = vmatprep.subr.bf16.mxu0 0
      %701 = vmatpush2.bf16.xpose.msra.mxu0 0
      %702 = vmatprep.mubr.bf16.mxu0 0
      %703 = vmatmul.mubr.bf16.gmra.mxu0 %v647
      %v704 = vpop.f32.mrf.mxu0
      %v705 = vadd.f32 %v524, %v704
      %v706 = vpop.f32.mrf.mxu0
      %v707 = vpop.f32.mrf.mxu0
      %v708 = vadd.f32 %v525, %v707
      %v709 = vpop.f32.mrf.mxu0
      %710 = vmatprep.mubr.bf16.mxu0 0
      %711 = vmatmul.mubr.bf16.gmra.mxu0 %v650
      %v712 = vpop.f32.mrf.mxu0
      %v713 = vadd.f32 %v526, %v712
      %v714 = vpop.f32.mrf.mxu0
      %v715 = vpop.f32.mrf.mxu0
      %v716 = vadd.f32 %v527, %v715
      %v717 = vpop.f32.mrf.mxu0
      %718 = vmatprep.mubr.bf16.mxu0 0
      %719 = vmatmul.mubr.bf16.gmra.mxu0 %v653
      %v720 = vpop.f32.mrf.mxu0
      %v721 = vadd.f32 %v528, %v720
      %v722 = vpop.f32.mrf.mxu0
      %v723 = vpop.f32.mrf.mxu0
      %v724 = vadd.f32 %v529, %v723
      %v725 = vpop.f32.mrf.mxu0
      %726 = vmatprep.mubr.bf16.mxu0 0
      %727 = vmatmul.mubr.bf16.gmra.mxu0 %v656
      %v728 = vpop.f32.mrf.mxu0
      %v729 = vadd.f32 %v530, %v728
      %v730 = vpop.f32.mrf.mxu0
      %v731 = vpop.f32.mrf.mxu0
      %v732 = vadd.f32 %v531, %v731
      %v733 = vpop.f32.mrf.mxu0
      %734 = vdwg.mxu0
      %739 = vrot.lane.b32.xlu0 %v516, 96
      %v740 = vpop.permute.xlu0 %739
      %741 = vrot.lane.b32.xlu0 %v517, 96
      %v742 = vpop.permute.xlu0 %741
      %743 = vrot.lane.b32.xlu0 %v518, 96
      %v744 = vpop.permute.xlu0 %743
      %745 = vrot.lane.b32.xlu0 %v519, 96
      %v746 = vpop.permute.xlu0 %745
      %v748 = vsel %vm544, %v516, 0
      %v751 = vsel %vm544, %v517, 0
      %v754 = vsel %vm544, %v518, 0
      %v757 = vsel %vm544, %v519, 0
      %v760 = vsel %vm544, %v740, 0
      %v763 = vsel %vm544, %v742, 0
      %v766 = vsel %vm544, %v744, 0
      %v769 = vsel %vm544, %v746, 0
      %771 = vmatprep.subr.bf16.mxu0 0
      %772 = vmatpush1.bf16.xpose.msra.mxu0 0
      %773 = vmatprep.subr.bf16.mxu0 0
      %774 = vmatpush1.bf16.xpose.msra.mxu0 0
      %775 = vmatprep.subr.bf16.mxu0 0
      %776 = vmatpush1.bf16.xpose.msra.mxu0 0
      %777 = vmatprep.subr.bf16.mxu0 0
      %778 = vmatpush1.bf16.xpose.msra.mxu0 0
      %779 = vmatprep.subr.bf16.mxu0 0
      %780 = vmatpush1.bf16.xpose.msra.mxu0 %v769
      %781 = vmatprep.subr.bf16.mxu0 0
      %782 = vmatpush1.bf16.xpose.msra.mxu0 %v766
      %783 = vmatprep.subr.bf16.mxu0 0
      %784 = vmatpush1.bf16.xpose.msra.mxu0 %v763
      %785 = vmatprep.subr.bf16.mxu0 0
      %786 = vmatpush1.bf16.xpose.msra.mxu0 %v760
      %787 = vmatprep.subr.bf16.mxu0 0
      %788 = vmatpush2.bf16.xpose.msra.mxu0 0
      %789 = vmatprep.subr.bf16.mxu0 0
      %790 = vmatpush2.bf16.xpose.msra.mxu0 0
      %791 = vmatprep.subr.bf16.mxu0 0
      %792 = vmatpush2.bf16.xpose.msra.mxu0 0
      %793 = vmatprep.subr.bf16.mxu0 0
      %794 = vmatpush2.bf16.xpose.msra.mxu0 0
      %795 = vmatprep.subr.bf16.mxu0 0
      %796 = vmatpush2.bf16.xpose.msra.mxu0 0
      %797 = vmatprep.subr.bf16.mxu0 0
      %798 = vmatpush2.bf16.xpose.msra.mxu0 0
      %799 = vmatprep.subr.bf16.mxu0 0
      %800 = vmatpush2.bf16.xpose.msra.mxu0 0
      %801 = vmatprep.subr.bf16.mxu0 0
      %802 = vmatpush2.bf16.xpose.msra.mxu0 0
      %803 = vmatprep.mubr.bf16.mxu0 0
      %804 = vmatmul.mubr.bf16.gmra.mxu0 %v748
      %v805 = vpop.f32.mrf.mxu0
      %v806 = vadd.f32 %v524, %v805
      %v807 = vpop.f32.mrf.mxu0
      %v808 = vpop.f32.mrf.mxu0
      %v809 = vadd.f32 %v525, %v808
      %v810 = vpop.f32.mrf.mxu0
      %811 = vmatprep.mubr.bf16.mxu0 0
      %812 = vmatmul.mubr.bf16.gmra.mxu0 %v751
      %v813 = vpop.f32.mrf.mxu0
      %v814 = vadd.f32 %v526, %v813
      %v815 = vpop.f32.mrf.mxu0
      %v816 = vpop.f32.mrf.mxu0
      %v817 = vadd.f32 %v527, %v816
      %v818 = vpop.f32.mrf.mxu0
      %819 = vmatprep.mubr.bf16.mxu0 0
      %820 = vmatmul.mubr.bf16.gmra.mxu0 %v754
      %v821 = vpop.f32.mrf.mxu0
      %v822 = vadd.f32 %v528, %v821
      %v823 = vpop.f32.mrf.mxu0
      %v824 = vpop.f32.mrf.mxu0
      %v825 = vadd.f32 %v529, %v824
      %v826 = vpop.f32.mrf.mxu0
      %827 = vmatprep.mubr.bf16.mxu0 0
      %828 = vmatmul.mubr.bf16.gmra.mxu0 %v757
      %v829 = vpop.f32.mrf.mxu0
      %v830 = vadd.f32 %v530, %v829
      %v831 = vpop.f32.mrf.mxu0
      %v832 = vpop.f32.mrf.mxu0
      %v833 = vadd.f32 %v531, %v832
      %v834 = vpop.f32.mrf.mxu0
      %835 = vdwg.mxu0
      %840 = vrot.lane.b32.xlu0 %v520, 96
      %v841 = vpop.permute.xlu0 %840
      %842 = vrot.lane.b32.xlu0 %v521, 96
      %v843 = vpop.permute.xlu0 %842
      %844 = vrot.lane.b32.xlu0 %v522, 96
      %v845 = vpop.permute.xlu0 %844
      %846 = vrot.lane.b32.xlu0 %v523, 96
      %v847 = vpop.permute.xlu0 %846
      %v849 = vsel %vm544, %v520, 0
      %v852 = vsel %vm544, %v521, 0
      %v855 = vsel %vm544, %v522, 0
      %v858 = vsel %vm544, %v523, 0
      %v861 = vsel %vm544, %v841, 0
      %v864 = vsel %vm544, %v843, 0
      %v867 = vsel %vm544, %v845, 0
      %v870 = vsel %vm544, %v847, 0
      %872 = vmatprep.subr.bf16.mxu0 0
      %873 = vmatpush1.bf16.xpose.msra.mxu0 0
      %874 = vmatprep.subr.bf16.mxu0 0
      %875 = vmatpush1.bf16.xpose.msra.mxu0 0
      %876 = vmatprep.subr.bf16.mxu0 0
      %877 = vmatpush1.bf16.xpose.msra.mxu0 0
      %878 = vmatprep.subr.bf16.mxu0 0
      %879 = vmatpush1.bf16.xpose.msra.mxu0 0
      %880 = vmatprep.subr.bf16.mxu0 0
      %881 = vmatpush1.bf16.xpose.msra.mxu0 %v870
      %882 = vmatprep.subr.bf16.mxu0 0
      %883 = vmatpush1.bf16.xpose.msra.mxu0 %v867
      %884 = vmatprep.subr.bf16.mxu0 0
      %885 = vmatpush1.bf16.xpose.msra.mxu0 %v864
      %886 = vmatprep.subr.bf16.mxu0 0
      %887 = vmatpush1.bf16.xpose.msra.mxu0 %v861
      %888 = vmatprep.subr.bf16.mxu0 0
      %889 = vmatpush2.bf16.xpose.msra.mxu0 0
      %890 = vmatprep.subr.bf16.mxu0 0
      %891 = vmatpush2.bf16.xpose.msra.mxu0 0
      %892 = vmatprep.subr.bf16.mxu0 0
      %893 = vmatpush2.bf16.xpose.msra.mxu0 0
      %894 = vmatprep.subr.bf16.mxu0 0
      %895 = vmatpush2.bf16.xpose.msra.mxu0 0
      %896 = vmatprep.subr.bf16.mxu0 0
      %897 = vmatpush2.bf16.xpose.msra.mxu0 0
      %898 = vmatprep.subr.bf16.mxu0 0
      %899 = vmatpush2.bf16.xpose.msra.mxu0 0
      %900 = vmatprep.subr.bf16.mxu0 0
      %901 = vmatpush2.bf16.xpose.msra.mxu0 0
      %902 = vmatprep.subr.bf16.mxu0 0
      %903 = vmatpush2.bf16.xpose.msra.mxu0 0
      %904 = vmatprep.mubr.bf16.mxu0 0
      %905 = vmatmul.mubr.bf16.gmra.mxu0 %v849
      %v906 = vpop.f32.mrf.mxu0
      %v907 = vadd.f32 %v524, %v906
      %v908 = vpop.f32.mrf.mxu0
      %v909 = vpop.f32.mrf.mxu0
      %v910 = vadd.f32 %v525, %v909
      %v911 = vpop.f32.mrf.mxu0
      %912 = vmatprep.mubr.bf16.mxu0 0
      %913 = vmatmul.mubr.bf16.gmra.mxu0 %v852
      %v914 = vpop.f32.mrf.mxu0
      %v915 = vadd.f32 %v526, %v914
      %v916 = vpop.f32.mrf.mxu0
      %v917 = vpop.f32.mrf.mxu0
      %v918 = vadd.f32 %v527, %v917
      %v919 = vpop.f32.mrf.mxu0
      %920 = vmatprep.mubr.bf16.mxu0 0
      %921 = vmatmul.mubr.bf16.gmra.mxu0 %v855
      %v922 = vpop.f32.mrf.mxu0
      %v923 = vadd.f32 %v528, %v922
      %v924 = vpop.f32.mrf.mxu0
      %v925 = vpop.f32.mrf.mxu0
      %v926 = vadd.f32 %v529, %v925
      %v927 = vpop.f32.mrf.mxu0
      %928 = vmatprep.mubr.bf16.mxu0 0
      %929 = vmatmul.mubr.bf16.gmra.mxu0 %v858
      %v930 = vpop.f32.mrf.mxu0
      %v931 = vadd.f32 %v530, %v930
      %v932 = vpop.f32.mrf.mxu0
      %v933 = vpop.f32.mrf.mxu0
      %v934 = vadd.f32 %v531, %v933
      %v935 = vpop.f32.mrf.mxu0
      %936 = vdwg.mxu0
      %vm937 = vcmask 523264
      %v938 = vsel %vm937, %v604, -inf
      %939 = vmax.xlane.f32.xlu0 %v938
      %v940 = vpop.xlane.xlu0 %939
      %v941 = vsel %vm937, %v607, -inf
      %942 = vmax.xlane.f32.xlu0 %v941
      %v943 = vpop.xlane.xlu0 %942
      %v944 = vsel %vm937, %v612, -inf
      %945 = vmax.xlane.f32.xlu0 %v944
      %v946 = vpop.xlane.xlu0 %945
      %v947 = vsel %vm937, %v615, -inf
      %948 = vmax.xlane.f32.xlu0 %v947
      %v949 = vpop.xlane.xlu0 %948
      %v950 = vsel %vm937, %v620, -inf
      %951 = vmax.xlane.f32.xlu0 %v950
      %v952 = vpop.xlane.xlu0 %951
      %v953 = vsel %vm937, %v623, -inf
      %954 = vmax.xlane.f32.xlu0 %v953
      %v955 = vpop.xlane.xlu0 %954
      %v956 = vsel %vm937, %v628, -inf
      %957 = vmax.xlane.f32.xlu0 %v956
      %v958 = vpop.xlane.xlu0 %957
      %v959 = vsel %vm937, %v631, -inf
      %960 = vmax.xlane.f32.xlu0 %v959
      %v961 = vpop.xlane.xlu0 %960
      %v962 = vsel %vm937, %v705, -inf
      %963 = vmax.xlane.f32.xlu0 %v962
      %v964 = vpop.xlane.xlu0 %963
      %v965 = vsel %vm937, %v708, -inf
      %966 = vmax.xlane.f32.xlu0 %v965
      %v967 = vpop.xlane.xlu0 %966
      %v968 = vsel %vm937, %v713, -inf
      %969 = vmax.xlane.f32.xlu0 %v968
      %v970 = vpop.xlane.xlu0 %969
      %v971 = vsel %vm937, %v716, -inf
      %972 = vmax.xlane.f32.xlu0 %v971
      %v973 = vpop.xlane.xlu0 %972
      %v974 = vsel %vm937, %v721, -inf
      %975 = vmax.xlane.f32.xlu0 %v974
      %v976 = vpop.xlane.xlu0 %975
      %v977 = vsel %vm937, %v724, -inf
      %978 = vmax.xlane.f32.xlu0 %v977
      %v979 = vpop.xlane.xlu0 %978
      %v980 = vsel %vm937, %v729, -inf
      %981 = vmax.xlane.f32.xlu0 %v980
      %v982 = vpop.xlane.xlu0 %981
      %v983 = vsel %vm937, %v732, -inf
      %984 = vmax.xlane.f32.xlu0 %v983
      %v985 = vpop.xlane.xlu0 %984
      %v986 = vsel %vm937, %v806, -inf
      %987 = vmax.xlane.f32.xlu0 %v986
      %v988 = vpop.xlane.xlu0 %987
      %v989 = vsel %vm937, %v809, -inf
      %990 = vmax.xlane.f32.xlu0 %v989
      %v991 = vpop.xlane.xlu0 %990
      %v992 = vsel %vm937, %v814, -inf
      %993 = vmax.xlane.f32.xlu0 %v992
      %v994 = vpop.xlane.xlu0 %993
      %v995 = vsel %vm937, %v817, -inf
      %996 = vmax.xlane.f32.xlu0 %v995
      %v997 = vpop.xlane.xlu0 %996
      %v998 = vsel %vm937, %v822, -inf
      %999 = vmax.xlane.f32.xlu0 %v998
      %v1000 = vpop.xlane.xlu0 %999
      %v1001 = vsel %vm937, %v825, -inf
      %1002 = vmax.xlane.f32.xlu0 %v1001
      %v1003 = vpop.xlane.xlu0 %1002
      %v1004 = vsel %vm937, %v830, -inf
      %1005 = vmax.xlane.f32.xlu0 %v1004
      %v1006 = vpop.xlane.xlu0 %1005
      %v1007 = vsel %vm937, %v833, -inf
      %1008 = vmax.xlane.f32.xlu0 %v1007
      %v1009 = vpop.xlane.xlu0 %1008
      %v1010 = vsel %vm937, %v907, -inf
      %1011 = vmax.xlane.f32.xlu0 %v1010
      %v1012 = vpop.xlane.xlu0 %1011
      %v1013 = vsel %vm937, %v910, -inf
      %1014 = vmax.xlane.f32.xlu0 %v1013
      %v1015 = vpop.xlane.xlu0 %1014
      %v1016 = vsel %vm937, %v915, -inf
      %1017 = vmax.xlane.f32.xlu0 %v1016
      %v1018 = vpop.xlane.xlu0 %1017
      %v1019 = vsel %vm937, %v918, -inf
      %1020 = vmax.xlane.f32.xlu0 %v1019
      %v1021 = vpop.xlane.xlu0 %1020
      %v1022 = vsel %vm937, %v923, -inf
      %1023 = vmax.xlane.f32.xlu0 %v1022
      %v1024 = vpop.xlane.xlu0 %1023
      %v1025 = vsel %vm937, %v926, -inf
      %1026 = vmax.xlane.f32.xlu0 %v1025
      %v1027 = vpop.xlane.xlu0 %1026
      %v1028 = vsel %vm937, %v931, -inf
      %1029 = vmax.xlane.f32.xlu0 %v1028
      %v1030 = vpop.xlane.xlu0 %1029
      %v1031 = vsel %vm937, %v934, -inf
      %1032 = vmax.xlane.f32.xlu0 %v1031
      %v1033 = vpop.xlane.xlu0 %1032
      %v1034 = vsub.f32 %v604, %v940
      %v1035 = vsub.f32 %v607, %v943
      %v1036 = vsub.f32 %v612, %v946
      %v1037 = vsub.f32 %v615, %v949
      %v1038 = vsub.f32 %v620, %v952
      %v1039 = vsub.f32 %v623, %v955
      %v1040 = vsub.f32 %v628, %v958
      %v1041 = vsub.f32 %v631, %v961
      %v1042 = vsub.f32 %v705, %v964
      %v1043 = vsub.f32 %v708, %v967
      %v1044 = vsub.f32 %v713, %v970
      %v1045 = vsub.f32 %v716, %v973
      %v1046 = vsub.f32 %v721, %v976
      %v1047 = vsub.f32 %v724, %v979
      %v1048 = vsub.f32 %v729, %v982
      %v1049 = vsub.f32 %v732, %v985
      %v1050 = vsub.f32 %v806, %v988
      %v1051 = vsub.f32 %v809, %v991
      %v1052 = vsub.f32 %v814, %v994
      %v1053 = vsub.f32 %v817, %v997
      %v1054 = vsub.f32 %v822, %v1000
      %v1055 = vsub.f32 %v825, %v1003
      %v1056 = vsub.f32 %v830, %v1006
      %v1057 = vsub.f32 %v833, %v1009
      %v1058 = vsub.f32 %v907, %v1012
      %v1059 = vsub.f32 %v910, %v1015
      %v1060 = vsub.f32 %v915, %v1018
      %v1061 = vsub.f32 %v918, %v1021
      %v1062 = vsub.f32 %v923, %v1024
      %v1063 = vsub.f32 %v926, %v1027
      %v1064 = vsub.f32 %v931, %v1030
      %v1065 = vsub.f32 %v934, %v1033
      %v1066 = vmul.f32 %v1034, 1.442695
      %v1067 = vpow.pop %v1066
      %v1068 = vmul.f32 %v1035, 1.442695
      %v1069 = vpow.pop %v1068
      %v1070 = vmul.f32 %v1036, 1.442695
      %v1071 = vpow.pop %v1070
      %v1072 = vmul.f32 %v1037, 1.442695
      %v1073 = vpow.pop %v1072
      %v1074 = vmul.f32 %v1038, 1.442695
      %v1075 = vpow.pop %v1074
      %v1076 = vmul.f32 %v1039, 1.442695
      %v1077 = vpow.pop %v1076
      %v1078 = vmul.f32 %v1040, 1.442695
      %v1079 = vpow.pop %v1078
      %v1080 = vmul.f32 %v1041, 1.442695
      %v1081 = vpow.pop %v1080
      %v1082 = vmul.f32 %v1042, 1.442695
      %v1083 = vpow.pop %v1082
      %v1084 = vmul.f32 %v1043, 1.442695
      %v1085 = vpow.pop %v1084
      %v1086 = vmul.f32 %v1044, 1.442695
      %v1087 = vpow.pop %v1086
      %v1088 = vmul.f32 %v1045, 1.442695
      %v1089 = vpow.pop %v1088
      %v1090 = vmul.f32 %v1046, 1.442695
      %v1091 = vpow.pop %v1090
      %v1092 = vmul.f32 %v1047, 1.442695
      %v1093 = vpow.pop %v1092
      %v1094 = vmul.f32 %v1048, 1.442695
      %v1095 = vpow.pop %v1094
      %v1096 = vmul.f32 %v1049, 1.442695
      %v1097 = vpow.pop %v1096
      %v1098 = vmul.f32 %v1050, 1.442695
      %v1099 = vpow.pop %v1098
      %v1100 = vmul.f32 %v1051, 1.442695
      %v1101 = vpow.pop %v1100
      %v1102 = vmul.f32 %v1052, 1.442695
      %v1103 = vpow.pop %v1102
      %v1104 = vmul.f32 %v1053, 1.442695
      %v1105 = vpow.pop %v1104
      %v1106 = vmul.f32 %v1054, 1.442695
      %v1107 = vpow.pop %v1106
      %v1108 = vmul.f32 %v1055, 1.442695
      %v1109 = vpow.pop %v1108
      %v1110 = vmul.f32 %v1056, 1.442695
      %v1111 = vpow.pop %v1110
      %v1112 = vmul.f32 %v1057, 1.442695
      %v1113 = vpow.pop %v1112
      %v1114 = vmul.f32 %v1058, 1.442695
      %v1115 = vpow.pop %v1114
      %v1116 = vmul.f32 %v1059, 1.442695
      %v1117 = vpow.pop %v1116
      %v1118 = vmul.f32 %v1060, 1.442695
      %v1119 = vpow.pop %v1118
      %v1120 = vmul.f32 %v1061, 1.442695
      %v1121 = vpow.pop %v1120
      %v1122 = vmul.f32 %v1062, 1.442695
      %v1123 = vpow.pop %v1122
      %v1124 = vmul.f32 %v1063, 1.442695
      %v1125 = vpow.pop %v1124
      %v1126 = vmul.f32 %v1064, 1.442695
      %v1127 = vpow.pop %v1126
      %v1128 = vmul.f32 %v1065, 1.442695
      %v1129 = vpow.pop %v1128
      %v1130 = vsel %vm937, %v1067, 0.0
      %1131 = vadd.xlane.f32.xlu0 %v1130
      %v1132 = vpop.xlane.xlu0 %1131
      %v1133 = vsel %vm937, %v1069, 0.0
      %1134 = vadd.xlane.f32.xlu0 %v1133
      %v1135 = vpop.xlane.xlu0 %1134
      %v1136 = vsel %vm937, %v1071, 0.0
      %1137 = vadd.xlane.f32.xlu0 %v1136
      %v1138 = vpop.xlane.xlu0 %1137
      %v1139 = vsel %vm937, %v1073, 0.0
      %1140 = vadd.xlane.f32.xlu0 %v1139
      %v1141 = vpop.xlane.xlu0 %1140
      %v1142 = vsel %vm937, %v1075, 0.0
      %1143 = vadd.xlane.f32.xlu0 %v1142
      %v1144 = vpop.xlane.xlu0 %1143
      %v1145 = vsel %vm937, %v1077, 0.0
      %1146 = vadd.xlane.f32.xlu0 %v1145
      %v1147 = vpop.xlane.xlu0 %1146
      %v1148 = vsel %vm937, %v1079, 0.0
      %1149 = vadd.xlane.f32.xlu0 %v1148
      %v1150 = vpop.xlane.xlu0 %1149
      %v1151 = vsel %vm937, %v1081, 0.0
      %1152 = vadd.xlane.f32.xlu0 %v1151
      %v1153 = vpop.xlane.xlu0 %1152
      %v1154 = vsel %vm937, %v1083, 0.0
      %1155 = vadd.xlane.f32.xlu0 %v1154
      %v1156 = vpop.xlane.xlu0 %1155
      %v1157 = vsel %vm937, %v1085, 0.0
      %1158 = vadd.xlane.f32.xlu0 %v1157
      %v1159 = vpop.xlane.xlu0 %1158
      %v1160 = vsel %vm937, %v1087, 0.0
      %1161 = vadd.xlane.f32.xlu0 %v1160
      %v1162 = vpop.xlane.xlu0 %1161
      %v1163 = vsel %vm937, %v1089, 0.0
      %1164 = vadd.xlane.f32.xlu0 %v1163
      %v1165 = vpop.xlane.xlu0 %1164
      %v1166 = vsel %vm937, %v1091, 0.0
      %1167 = vadd.xlane.f32.xlu0 %v1166
      %v1168 = vpop.xlane.xlu0 %1167
      %v1169 = vsel %vm937, %v1093, 0.0
      %1170 = vadd.xlane.f32.xlu0 %v1169
      %v1171 = vpop.xlane.xlu0 %1170
      %v1172 = vsel %vm937, %v1095, 0.0
      %1173 = vadd.xlane.f32.xlu0 %v1172
      %v1174 = vpop.xlane.xlu0 %1173
      %v1175 = vsel %vm937, %v1097, 0.0
      %1176 = vadd.xlane.f32.xlu0 %v1175
      %v1177 = vpop.xlane.xlu0 %1176
      %v1178 = vsel %vm937, %v1099, 0.0
      %1179 = vadd.xlane.f32.xlu0 %v1178
      %v1180 = vpop.xlane.xlu0 %1179
      %v1181 = vsel %vm937, %v1101, 0.0
      %1182 = vadd.xlane.f32.xlu0 %v1181
      %v1183 = vpop.xlane.xlu0 %1182
      %v1184 = vsel %vm937, %v1103, 0.0
      %1185 = vadd.xlane.f32.xlu0 %v1184
      %v1186 = vpop.xlane.xlu0 %1185
      %v1187 = vsel %vm937, %v1105, 0.0
      %1188 = vadd.xlane.f32.xlu0 %v1187
      %v1189 = vpop.xlane.xlu0 %1188
      %v1190 = vsel %vm937, %v1107, 0.0
      %1191 = vadd.xlane.f32.xlu0 %v1190
      %v1192 = vpop.xlane.xlu0 %1191
      %v1193 = vsel %vm937, %v1109, 0.0
      %1194 = vadd.xlane.f32.xlu0 %v1193
      %v1195 = vpop.xlane.xlu0 %1194
      %v1196 = vsel %vm937, %v1111, 0.0
      %1197 = vadd.xlane.f32.xlu0 %v1196
      %v1198 = vpop.xlane.xlu0 %1197
      %v1199 = vsel %vm937, %v1113, 0.0
      %1200 = vadd.xlane.f32.xlu0 %v1199
      %v1201 = vpop.xlane.xlu0 %1200
      %v1202 = vsel %vm937, %v1115, 0.0
      %1203 = vadd.xlane.f32.xlu0 %v1202
      %v1204 = vpop.xlane.xlu0 %1203
      %v1205 = vsel %vm937, %v1117, 0.0
      %1206 = vadd.xlane.f32.xlu0 %v1205
      %v1207 = vpop.xlane.xlu0 %1206
      %v1208 = vsel %vm937, %v1119, 0.0
      %1209 = vadd.xlane.f32.xlu0 %v1208
      %v1210 = vpop.xlane.xlu0 %1209
      %v1211 = vsel %vm937, %v1121, 0.0
      %1212 = vadd.xlane.f32.xlu0 %v1211
      %v1213 = vpop.xlane.xlu0 %1212
      %v1214 = vsel %vm937, %v1123, 0.0
      %1215 = vadd.xlane.f32.xlu0 %v1214
      %v1216 = vpop.xlane.xlu0 %1215
      %v1217 = vsel %vm937, %v1125, 0.0
      %1218 = vadd.xlane.f32.xlu0 %v1217
      %v1219 = vpop.xlane.xlu0 %1218
      %v1220 = vsel %vm937, %v1127, 0.0
      %1221 = vadd.xlane.f32.xlu0 %v1220
      %v1222 = vpop.xlane.xlu0 %1221
      %v1223 = vsel %vm937, %v1129, 0.0
      %1224 = vadd.xlane.f32.xlu0 %v1223
      %v1225 = vpop.xlane.xlu0 %1224
      %v1226 = vrcp.pop %v1132
      %v1227 = vrcp.pop %v1135
      %v1228 = vrcp.pop %v1138
      %v1229 = vrcp.pop %v1141
      %v1230 = vrcp.pop %v1144
      %v1231 = vrcp.pop %v1147
      %v1232 = vrcp.pop %v1150
      %v1233 = vrcp.pop %v1153
      %v1234 = vrcp.pop %v1156
      %v1235 = vrcp.pop %v1159
      %v1236 = vrcp.pop %v1162
      %v1237 = vrcp.pop %v1165
      %v1238 = vrcp.pop %v1168
      %v1239 = vrcp.pop %v1171
      %v1240 = vrcp.pop %v1174
      %v1241 = vrcp.pop %v1177
      %v1242 = vrcp.pop %v1180
      %v1243 = vrcp.pop %v1183
      %v1244 = vrcp.pop %v1186
      %v1245 = vrcp.pop %v1189
      %v1246 = vrcp.pop %v1192
      %v1247 = vrcp.pop %v1195
      %v1248 = vrcp.pop %v1198
      %v1249 = vrcp.pop %v1201
      %v1250 = vrcp.pop %v1204
      %v1251 = vrcp.pop %v1207
      %v1252 = vrcp.pop %v1210
      %v1253 = vrcp.pop %v1213
      %v1254 = vrcp.pop %v1216
      %v1255 = vrcp.pop %v1219
      %v1256 = vrcp.pop %v1222
      %v1257 = vrcp.pop %v1225
      %v1258 = vmul.f32 %v1067, %v1226
      %v1259 = vmul.f32 %v1069, %v1227
      %v1260 = vmul.f32 %v1071, %v1228
      %v1261 = vmul.f32 %v1073, %v1229
      %v1262 = vmul.f32 %v1075, %v1230
      %v1263 = vmul.f32 %v1077, %v1231
      %v1264 = vmul.f32 %v1079, %v1232
      %v1265 = vmul.f32 %v1081, %v1233
      %v1266 = vmul.f32 %v1083, %v1234
      %v1267 = vmul.f32 %v1085, %v1235
      %v1268 = vmul.f32 %v1087, %v1236
      %v1269 = vmul.f32 %v1089, %v1237
      %v1270 = vmul.f32 %v1091, %v1238
      %v1271 = vmul.f32 %v1093, %v1239
      %v1272 = vmul.f32 %v1095, %v1240
      %v1273 = vmul.f32 %v1097, %v1241
      %v1274 = vmul.f32 %v1099, %v1242
      %v1275 = vmul.f32 %v1101, %v1243
      %v1276 = vmul.f32 %v1103, %v1244
      %v1277 = vmul.f32 %v1105, %v1245
      %v1278 = vmul.f32 %v1107, %v1246
      %v1279 = vmul.f32 %v1109, %v1247
      %v1280 = vmul.f32 %v1111, %v1248
      %v1281 = vmul.f32 %v1113, %v1249
      %v1282 = vmul.f32 %v1115, %v1250
      %v1283 = vmul.f32 %v1117, %v1251
      %v1284 = vmul.f32 %v1119, %v1252
      %v1285 = vmul.f32 %v1121, %v1253
      %v1286 = vmul.f32 %v1123, %v1254
      %v1287 = vmul.f32 %v1125, %v1255
      %v1288 = vmul.f32 %v1127, %v1256
      %v1289 = vmul.f32 %v1129, %v1257
      %v1290 = vpack.c.bf16 %v1259, %v1258
      %v1291 = vpack.c.bf16 %v1261, %v1260
      %v1292 = vpack.c.bf16 %v1263, %v1262
      %v1293 = vpack.c.bf16 %v1265, %v1264
      %v1294 = vpack.c.bf16 %v1267, %v1266
      %v1295 = vpack.c.bf16 %v1269, %v1268
      %v1296 = vpack.c.bf16 %v1271, %v1270
      %v1297 = vpack.c.bf16 %v1273, %v1272
      %v1298 = vpack.c.bf16 %v1275, %v1274
      %v1299 = vpack.c.bf16 %v1277, %v1276
      %v1300 = vpack.c.bf16 %v1279, %v1278
      %v1301 = vpack.c.bf16 %v1281, %v1280
      %v1302 = vpack.c.bf16 %v1283, %v1282
      %v1303 = vpack.c.bf16 %v1285, %v1284
      %v1304 = vpack.c.bf16 %v1287, %v1286
      %v1305 = vpack.c.bf16 %v1289, %v1288
      %1306 = vrot.lane.b32.xlu0 %v508, 64
      %v1307 = vpop.permute.xlu0 %1306
      %1308 = vrot.lane.b32.xlu0 %v509, 64
      %v1309 = vpop.permute.xlu0 %1308
      %1310 = vrot.lane.b32.xlu0 %v510, 64
      %v1311 = vpop.permute.xlu0 %1310
      %1312 = vrot.lane.b32.xlu0 %v511, 64
      %v1313 = vpop.permute.xlu0 %1312
      %v1319 = vsel %vm937, %v1290, 0
      %v1322 = vsel %vm937, %v1291, 0
      %v1325 = vsel %vm937, %v1292, 0
      %v1328 = vsel %vm937, %v1293, 0
      %1330 = vmatprep.subr.bf16.mxu0 0
      %1331 = vmatpush1.bf16.msra.mxu0 0
      %1332 = vmatprep.subr.bf16.mxu0 0
      %1333 = vmatpush1.bf16.msra.mxu0 0
      %1334 = vmatprep.subr.bf16.mxu0 0
      %1335 = vmatpush1.bf16.msra.mxu0 0
      %1336 = vmatprep.subr.bf16.mxu0 0
      %1337 = vmatpush1.bf16.msra.mxu0 0
      %1338 = vmatprep.subr.bf16.mxu0 0
      %1339 = vmatpush1.bf16.msra.mxu0 %v1313
      %1340 = vmatprep.subr.bf16.mxu0 0
      %1341 = vmatpush1.bf16.msra.mxu0 %v1311
      %1342 = vmatprep.subr.bf16.mxu0 0
      %1343 = vmatpush1.bf16.msra.mxu0 %v1309
      %1344 = vmatprep.subr.bf16.mxu0 0
      %1345 = vmatpush1.bf16.msra.mxu0 %v1307
      %1346 = vmatprep.subr.bf16.mxu0 0
      %1347 = vmatpush2.bf16.msra.mxu0 0
      %1348 = vmatprep.subr.bf16.mxu0 0
      %1349 = vmatpush2.bf16.msra.mxu0 0
      %1350 = vmatprep.subr.bf16.mxu0 0
      %1351 = vmatpush2.bf16.msra.mxu0 0
      %1352 = vmatprep.subr.bf16.mxu0 0
      %1353 = vmatpush2.bf16.msra.mxu0 0
      %1354 = vmatprep.subr.bf16.mxu0 0
      %1355 = vmatpush2.bf16.msra.mxu0 0
      %1356 = vmatprep.subr.bf16.mxu0 0
      %1357 = vmatpush2.bf16.msra.mxu0 0
      %1358 = vmatprep.subr.bf16.mxu0 0
      %1359 = vmatpush2.bf16.msra.mxu0 0
      %1360 = vmatprep.subr.bf16.mxu0 0
      %1361 = vmatpush2.bf16.msra.mxu0 0
      %1362 = vmatprep.mubr.bf16.mxu0 0
      %1363 = vmatmul.mubr.bf16.gmra.mxu0 %v1319
      %v1364 = vpop.f32.mrf.mxu0
      %v1365 = vadd.f32 0.0, %v1364
      %v1366 = vpop.f32.mrf.mxu0
      %v1367 = vpop.f32.mrf.mxu0
      %v1368 = vadd.f32 0.0, %v1367
      %v1369 = vpop.f32.mrf.mxu0
      %1370 = vmatprep.mubr.bf16.mxu0 0
      %1371 = vmatmul.mubr.bf16.gmra.mxu0 %v1322
      %v1372 = vpop.f32.mrf.mxu0
      %v1373 = vadd.f32 0.0, %v1372
      %v1374 = vpop.f32.mrf.mxu0
      %v1375 = vpop.f32.mrf.mxu0
      %v1376 = vadd.f32 0.0, %v1375
      %v1377 = vpop.f32.mrf.mxu0
      %1378 = vmatprep.mubr.bf16.mxu0 0
      %1379 = vmatmul.mubr.bf16.gmra.mxu0 %v1325
      %v1380 = vpop.f32.mrf.mxu0
      %v1381 = vadd.f32 0.0, %v1380
      %v1382 = vpop.f32.mrf.mxu0
      %v1383 = vpop.f32.mrf.mxu0
      %v1384 = vadd.f32 0.0, %v1383
      %v1385 = vpop.f32.mrf.mxu0
      %1386 = vmatprep.mubr.bf16.mxu0 0
      %1387 = vmatmul.mubr.bf16.gmra.mxu0 %v1328
      %v1388 = vpop.f32.mrf.mxu0
      %v1389 = vadd.f32 0.0, %v1388
      %v1390 = vpop.f32.mrf.mxu0
      %v1391 = vpop.f32.mrf.mxu0
      %v1392 = vadd.f32 0.0, %v1391
      %v1393 = vpop.f32.mrf.mxu0
      %1394 = vdwg.mxu0
      %1395 = vrot.lane.b32.xlu0 %v512, 64
      %v1396 = vpop.permute.xlu0 %1395
      %1397 = vrot.lane.b32.xlu0 %v513, 64
      %v1398 = vpop.permute.xlu0 %1397
      %1399 = vrot.lane.b32.xlu0 %v514, 64
      %v1400 = vpop.permute.xlu0 %1399
      %1401 = vrot.lane.b32.xlu0 %v515, 64
      %v1402 = vpop.permute.xlu0 %1401
      %v1408 = vsel %vm937, %v1294, 0
      %v1411 = vsel %vm937, %v1295, 0
      %v1414 = vsel %vm937, %v1296, 0
      %v1417 = vsel %vm937, %v1297, 0
      %1419 = vmatprep.subr.bf16.mxu0 0
      %1420 = vmatpush1.bf16.msra.mxu0 0
      %1421 = vmatprep.subr.bf16.mxu0 0
      %1422 = vmatpush1.bf16.msra.mxu0 0
      %1423 = vmatprep.subr.bf16.mxu0 0
      %1424 = vmatpush1.bf16.msra.mxu0 0
      %1425 = vmatprep.subr.bf16.mxu0 0
      %1426 = vmatpush1.bf16.msra.mxu0 0
      %1427 = vmatprep.subr.bf16.mxu0 0
      %1428 = vmatpush1.bf16.msra.mxu0 %v1402
      %1429 = vmatprep.subr.bf16.mxu0 0
      %1430 = vmatpush1.bf16.msra.mxu0 %v1400
      %1431 = vmatprep.subr.bf16.mxu0 0
      %1432 = vmatpush1.bf16.msra.mxu0 %v1398
      %1433 = vmatprep.subr.bf16.mxu0 0
      %1434 = vmatpush1.bf16.msra.mxu0 %v1396
      %1435 = vmatprep.subr.bf16.mxu0 0
      %1436 = vmatpush2.bf16.msra.mxu0 0
      %1437 = vmatprep.subr.bf16.mxu0 0
      %1438 = vmatpush2.bf16.msra.mxu0 0
      %1439 = vmatprep.subr.bf16.mxu0 0
      %1440 = vmatpush2.bf16.msra.mxu0 0
      %1441 = vmatprep.subr.bf16.mxu0 0
      %1442 = vmatpush2.bf16.msra.mxu0 0
      %1443 = vmatprep.subr.bf16.mxu0 0
      %1444 = vmatpush2.bf16.msra.mxu0 0
      %1445 = vmatprep.subr.bf16.mxu0 0
      %1446 = vmatpush2.bf16.msra.mxu0 0
      %1447 = vmatprep.subr.bf16.mxu0 0
      %1448 = vmatpush2.bf16.msra.mxu0 0
      %1449 = vmatprep.subr.bf16.mxu0 0
      %1450 = vmatpush2.bf16.msra.mxu0 0
      %1451 = vmatprep.mubr.bf16.mxu0 0
      %1452 = vmatmul.mubr.bf16.gmra.mxu0 %v1408
      %v1453 = vpop.f32.mrf.mxu0
      %v1454 = vadd.f32 0.0, %v1453
      %v1455 = vpop.f32.mrf.mxu0
      %v1456 = vpop.f32.mrf.mxu0
      %v1457 = vadd.f32 0.0, %v1456
      %v1458 = vpop.f32.mrf.mxu0
      %1459 = vmatprep.mubr.bf16.mxu0 0
      %1460 = vmatmul.mubr.bf16.gmra.mxu0 %v1411
      %v1461 = vpop.f32.mrf.mxu0
      %v1462 = vadd.f32 0.0, %v1461
      %v1463 = vpop.f32.mrf.mxu0
      %v1464 = vpop.f32.mrf.mxu0
      %v1465 = vadd.f32 0.0, %v1464
      %v1466 = vpop.f32.mrf.mxu0
      %1467 = vmatprep.mubr.bf16.mxu0 0
      %1468 = vmatmul.mubr.bf16.gmra.mxu0 %v1414
      %v1469 = vpop.f32.mrf.mxu0
      %v1470 = vadd.f32 0.0, %v1469
      %v1471 = vpop.f32.mrf.mxu0
      %v1472 = vpop.f32.mrf.mxu0
      %v1473 = vadd.f32 0.0, %v1472
      %v1474 = vpop.f32.mrf.mxu0
      %1475 = vmatprep.mubr.bf16.mxu0 0
      %1476 = vmatmul.mubr.bf16.gmra.mxu0 %v1417
      %v1477 = vpop.f32.mrf.mxu0
      %v1478 = vadd.f32 0.0, %v1477
      %v1479 = vpop.f32.mrf.mxu0
      %v1480 = vpop.f32.mrf.mxu0
      %v1481 = vadd.f32 0.0, %v1480
      %v1482 = vpop.f32.mrf.mxu0
      %1483 = vdwg.mxu0
      %1484 = vrot.lane.b32.xlu0 %v516, 64
      %v1485 = vpop.permute.xlu0 %1484
      %1486 = vrot.lane.b32.xlu0 %v517, 64
      %v1487 = vpop.permute.xlu0 %1486
      %1488 = vrot.lane.b32.xlu0 %v518, 64
      %v1489 = vpop.permute.xlu0 %1488
      %1490 = vrot.lane.b32.xlu0 %v519, 64
      %v1491 = vpop.permute.xlu0 %1490
      %v1497 = vsel %vm937, %v1298, 0
      %v1500 = vsel %vm937, %v1299, 0
      %v1503 = vsel %vm937, %v1300, 0
      %v1506 = vsel %vm937, %v1301, 0
      %1508 = vmatprep.subr.bf16.mxu0 0
      %1509 = vmatpush1.bf16.msra.mxu0 0
      %1510 = vmatprep.subr.bf16.mxu0 0
      %1511 = vmatpush1.bf16.msra.mxu0 0
      %1512 = vmatprep.subr.bf16.mxu0 0
      %1513 = vmatpush1.bf16.msra.mxu0 0
      %1514 = vmatprep.subr.bf16.mxu0 0
      %1515 = vmatpush1.bf16.msra.mxu0 0
      %1516 = vmatprep.subr.bf16.mxu0 0
      %1517 = vmatpush1.bf16.msra.mxu0 %v1491
      %1518 = vmatprep.subr.bf16.mxu0 0
      %1519 = vmatpush1.bf16.msra.mxu0 %v1489
      %1520 = vmatprep.subr.bf16.mxu0 0
      %1521 = vmatpush1.bf16.msra.mxu0 %v1487
      %1522 = vmatprep.subr.bf16.mxu0 0
      %1523 = vmatpush1.bf16.msra.mxu0 %v1485
      %1524 = vmatprep.subr.bf16.mxu0 0
      %1525 = vmatpush2.bf16.msra.mxu0 0
      %1526 = vmatprep.subr.bf16.mxu0 0
      %1527 = vmatpush2.bf16.msra.mxu0 0
      %1528 = vmatprep.subr.bf16.mxu0 0
      %1529 = vmatpush2.bf16.msra.mxu0 0
      %1530 = vmatprep.subr.bf16.mxu0 0
      %1531 = vmatpush2.bf16.msra.mxu0 0
      %1532 = vmatprep.subr.bf16.mxu0 0
      %1533 = vmatpush2.bf16.msra.mxu0 0
      %1534 = vmatprep.subr.bf16.mxu0 0
      %1535 = vmatpush2.bf16.msra.mxu0 0
      %1536 = vmatprep.subr.bf16.mxu0 0
      %1537 = vmatpush2.bf16.msra.mxu0 0
      %1538 = vmatprep.subr.bf16.mxu0 0
      %1539 = vmatpush2.bf16.msra.mxu0 0
      %1540 = vmatprep.mubr.bf16.mxu0 0
      %1541 = vmatmul.mubr.bf16.gmra.mxu0 %v1497
      %v1542 = vpop.f32.mrf.mxu0
      %v1543 = vadd.f32 0.0, %v1542
      %v1544 = vpop.f32.mrf.mxu0
      %v1545 = vpop.f32.mrf.mxu0
      %v1546 = vadd.f32 0.0, %v1545
      %v1547 = vpop.f32.mrf.mxu0
      %1548 = vmatprep.mubr.bf16.mxu0 0
      %1549 = vmatmul.mubr.bf16.gmra.mxu0 %v1500
      %v1550 = vpop.f32.mrf.mxu0
      %v1551 = vadd.f32 0.0, %v1550
      %v1552 = vpop.f32.mrf.mxu0
      %v1553 = vpop.f32.mrf.mxu0
      %v1554 = vadd.f32 0.0, %v1553
      %v1555 = vpop.f32.mrf.mxu0
      %1556 = vmatprep.mubr.bf16.mxu0 0
      %1557 = vmatmul.mubr.bf16.gmra.mxu0 %v1503
      %v1558 = vpop.f32.mrf.mxu0
      %v1559 = vadd.f32 0.0, %v1558
      %v1560 = vpop.f32.mrf.mxu0
      %v1561 = vpop.f32.mrf.mxu0
      %v1562 = vadd.f32 0.0, %v1561
      %v1563 = vpop.f32.mrf.mxu0
      %1564 = vmatprep.mubr.bf16.mxu0 0
      %1565 = vmatmul.mubr.bf16.gmra.mxu0 %v1506
      %v1566 = vpop.f32.mrf.mxu0
      %v1567 = vadd.f32 0.0, %v1566
      %v1568 = vpop.f32.mrf.mxu0
      %v1569 = vpop.f32.mrf.mxu0
      %v1570 = vadd.f32 0.0, %v1569
      %v1571 = vpop.f32.mrf.mxu0
      %1572 = vdwg.mxu0
      %1573 = vrot.lane.b32.xlu0 %v520, 64
      %v1574 = vpop.permute.xlu0 %1573
      %1575 = vrot.lane.b32.xlu0 %v521, 64
      %v1576 = vpop.permute.xlu0 %1575
      %1577 = vrot.lane.b32.xlu0 %v522, 64
      %v1578 = vpop.permute.xlu0 %1577
      %1579 = vrot.lane.b32.xlu0 %v523, 64
      %v1580 = vpop.permute.xlu0 %1579
      %v1586 = vsel %vm937, %v1302, 0
      %v1589 = vsel %vm937, %v1303, 0
      %v1592 = vsel %vm937, %v1304, 0
      %v1595 = vsel %vm937, %v1305, 0
      %1597 = vmatprep.subr.bf16.mxu0 0
      %1598 = vmatpush1.bf16.msra.mxu0 0
      %1599 = vmatprep.subr.bf16.mxu0 0
      %1600 = vmatpush1.bf16.msra.mxu0 0
      %1601 = vmatprep.subr.bf16.mxu0 0
      %1602 = vmatpush1.bf16.msra.mxu0 0
      %1603 = vmatprep.subr.bf16.mxu0 0
      %1604 = vmatpush1.bf16.msra.mxu0 0
      %1605 = vmatprep.subr.bf16.mxu0 0
      %1606 = vmatpush1.bf16.msra.mxu0 %v1580
      %1607 = vmatprep.subr.bf16.mxu0 0
      %1608 = vmatpush1.bf16.msra.mxu0 %v1578
      %1609 = vmatprep.subr.bf16.mxu0 0
      %1610 = vmatpush1.bf16.msra.mxu0 %v1576
      %1611 = vmatprep.subr.bf16.mxu0 0
      %1612 = vmatpush1.bf16.msra.mxu0 %v1574
      %1613 = vmatprep.subr.bf16.mxu0 0
      %1614 = vmatpush2.bf16.msra.mxu0 0
      %1615 = vmatprep.subr.bf16.mxu0 0
      %1616 = vmatpush2.bf16.msra.mxu0 0
      %1617 = vmatprep.subr.bf16.mxu0 0
      %1618 = vmatpush2.bf16.msra.mxu0 0
      %1619 = vmatprep.subr.bf16.mxu0 0
      %1620 = vmatpush2.bf16.msra.mxu0 0
      %1621 = vmatprep.subr.bf16.mxu0 0
      %1622 = vmatpush2.bf16.msra.mxu0 0
      %1623 = vmatprep.subr.bf16.mxu0 0
      %1624 = vmatpush2.bf16.msra.mxu0 0
      %1625 = vmatprep.subr.bf16.mxu0 0
      %1626 = vmatpush2.bf16.msra.mxu0 0
      %1627 = vmatprep.subr.bf16.mxu0 0
      %1628 = vmatpush2.bf16.msra.mxu0 0
      %1629 = vmatprep.mubr.bf16.mxu0 0
      %1630 = vmatmul.mubr.bf16.gmra.mxu0 %v1586
      %v1631 = vpop.f32.mrf.mxu0
      %v1632 = vadd.f32 0.0, %v1631
      %v1633 = vpop.f32.mrf.mxu0
      %v1634 = vpop.f32.mrf.mxu0
      %v1635 = vadd.f32 0.0, %v1634
      %v1636 = vpop.f32.mrf.mxu0
      %1637 = vmatprep.mubr.bf16.mxu0 0
      %1638 = vmatmul.mubr.bf16.gmra.mxu0 %v1589
      %v1639 = vpop.f32.mrf.mxu0
      %v1640 = vadd.f32 0.0, %v1639
      %v1641 = vpop.f32.mrf.mxu0
      %v1642 = vpop.f32.mrf.mxu0
      %v1643 = vadd.f32 0.0, %v1642
      %v1644 = vpop.f32.mrf.mxu0
      %1645 = vmatprep.mubr.bf16.mxu0 0
      %1646 = vmatmul.mubr.bf16.gmra.mxu0 %v1592
      %v1647 = vpop.f32.mrf.mxu0
      %v1648 = vadd.f32 0.0, %v1647
      %v1649 = vpop.f32.mrf.mxu0
      %v1650 = vpop.f32.mrf.mxu0
      %v1651 = vadd.f32 0.0, %v1650
      %v1652 = vpop.f32.mrf.mxu0
      %1653 = vmatprep.mubr.bf16.mxu0 0
      %1654 = vmatmul.mubr.bf16.gmra.mxu0 %v1595
      %v1655 = vpop.f32.mrf.mxu0
      %v1656 = vadd.f32 0.0, %v1655
      %v1657 = vpop.f32.mrf.mxu0
      %v1658 = vpop.f32.mrf.mxu0
      %v1659 = vadd.f32 0.0, %v1658
      %v1660 = vpop.f32.mrf.mxu0
      %1661 = vdwg.mxu0
      %v1662 = vpack.c.bf16 %v1368, %v1365
      %v1663 = vpack.c.bf16 %v1376, %v1373
      %v1664 = vpack.c.bf16 %v1384, %v1381
      %v1665 = vpack.c.bf16 %v1392, %v1389
      %v1666 = vpack.c.bf16 %v1457, %v1454
      %v1667 = vpack.c.bf16 %v1465, %v1462
      %v1668 = vpack.c.bf16 %v1473, %v1470
      %v1669 = vpack.c.bf16 %v1481, %v1478
      %v1670 = vpack.c.bf16 %v1546, %v1543
      %v1671 = vpack.c.bf16 %v1554, %v1551
      %v1672 = vpack.c.bf16 %v1562, %v1559
      %v1673 = vpack.c.bf16 %v1570, %v1567
      %v1674 = vpack.c.bf16 %v1635, %v1632
      %v1675 = vpack.c.bf16 %v1643, %v1640
      %v1676 = vpack.c.bf16 %v1651, %v1648
      %v1677 = vpack.c.bf16 %v1659, %v1656
      %v1678 = vld [vmem:[%s2] sm:$0xf]
      %s1679 = scalar_lea.vmem %s4, 64
      %v1680 = vld [vmem:[%s1679] sm:$0xff]
      %v1681 = vld [vmem:[%s1679 + $0x8] sm:$0xff]
      %v1682 = vld [vmem:[%s1679 + $0x10] sm:$0xff]
      %v1683 = vld [vmem:[%s1679 + $0x18] sm:$0xff]
      %v1684 = vld [vmem:[%s1679 + $0x20] sm:$0xff]
      %v1685 = vld [vmem:[%s1679 + $0x28] sm:$0xff]
      %v1686 = vld [vmem:[%s1679 + $0x30] sm:$0xff]
      %v1687 = vld [vmem:[%s1679 + $0x38] sm:$0xff]
      %1688 = vrot.lane.b32.xlu0 %v508, 120
      %v1689 = vpop.permute.xlu0 %1688
      %1690 = vrot.lane.b32.xlu0 %v509, 120
      %v1691 = vpop.permute.xlu0 %1690
      %1692 = vrot.lane.b32.xlu0 %v510, 120
      %v1693 = vpop.permute.xlu0 %1692
      %1694 = vrot.lane.b32.xlu0 %v511, 120
      %v1695 = vpop.permute.xlu0 %1694
      %1696 = vrot.lane.b32.xlu0 %v508, 88
      %v1697 = vpop.permute.xlu0 %1696
      %1698 = vrot.lane.b32.xlu0 %v509, 88
      %v1699 = vpop.permute.xlu0 %1698
      %1700 = vrot.lane.b32.xlu0 %v510, 88
      %v1701 = vpop.permute.xlu0 %1700
      %1702 = vrot.lane.b32.xlu0 %v511, 88
      %v1703 = vpop.permute.xlu0 %1702
      %v1705 = vsel %vm544, %v1689, 0
      %v1708 = vsel %vm544, %v1691, 0
      %v1711 = vsel %vm544, %v1693, 0
      %v1714 = vsel %vm544, %v1695, 0
      %v1717 = vsel %vm544, %v1697, 0
      %v1720 = vsel %vm544, %v1699, 0
      %v1723 = vsel %vm544, %v1701, 0
      %v1726 = vsel %vm544, %v1703, 0
      %1728 = vmatprep.subr.bf16.mxu0 0
      %1729 = vmatpush1.bf16.xpose.msra.mxu0 0
      %1730 = vmatprep.subr.bf16.mxu0 0
      %1731 = vmatpush1.bf16.xpose.msra.mxu0 0
      %1732 = vmatprep.subr.bf16.mxu0 0
      %1733 = vmatpush1.bf16.xpose.msra.mxu0 0
      %1734 = vmatprep.subr.bf16.mxu0 0
      %1735 = vmatpush1.bf16.xpose.msra.mxu0 0
      %1736 = vmatprep.subr.bf16.mxu0 0
      %1737 = vmatpush1.bf16.xpose.msra.mxu0 %v1726
      %1738 = vmatprep.subr.bf16.mxu0 0
      %1739 = vmatpush1.bf16.xpose.msra.mxu0 %v1723
      %1740 = vmatprep.subr.bf16.mxu0 0
      %1741 = vmatpush1.bf16.xpose.msra.mxu0 %v1720
      %1742 = vmatprep.subr.bf16.mxu0 0
      %1743 = vmatpush1.bf16.xpose.msra.mxu0 %v1717
      %1744 = vmatprep.subr.bf16.mxu0 0
      %1745 = vmatpush2.bf16.xpose.msra.mxu0 0
      %1746 = vmatprep.subr.bf16.mxu0 0
      %1747 = vmatpush2.bf16.xpose.msra.mxu0 0
      %1748 = vmatprep.subr.bf16.mxu0 0
      %1749 = vmatpush2.bf16.xpose.msra.mxu0 0
      %1750 = vmatprep.subr.bf16.mxu0 0
      %1751 = vmatpush2.bf16.xpose.msra.mxu0 0
      %1752 = vmatprep.subr.bf16.mxu0 0
      %1753 = vmatpush2.bf16.xpose.msra.mxu0 0
      %1754 = vmatprep.subr.bf16.mxu0 0
      %1755 = vmatpush2.bf16.xpose.msra.mxu0 0
      %1756 = vmatprep.subr.bf16.mxu0 0
      %1757 = vmatpush2.bf16.xpose.msra.mxu0 0
      %1758 = vmatprep.subr.bf16.mxu0 0
      %1759 = vmatpush2.bf16.xpose.msra.mxu0 0
      %1760 = vmatprep.mubr.bf16.mxu0 0
      %1761 = vmatmul.mubr.bf16.gmra.mxu0 %v1705
      %v1762 = vpop.f32.mrf.mxu0
      %v1763 = vadd.f32 %v1680, %v1762
      %v1764 = vpop.f32.mrf.mxu0
      %v1765 = vpop.f32.mrf.mxu0
      %v1766 = vadd.f32 %v1681, %v1765
      %v1767 = vpop.f32.mrf.mxu0
      %1768 = vmatprep.mubr.bf16.mxu0 0
      %1769 = vmatmul.mubr.bf16.gmra.mxu0 %v1708
      %v1770 = vpop.f32.mrf.mxu0
      %v1771 = vadd.f32 %v1682, %v1770
      %v1772 = vpop.f32.mrf.mxu0
      %v1773 = vpop.f32.mrf.mxu0
      %v1774 = vadd.f32 %v1683, %v1773
      %v1775 = vpop.f32.mrf.mxu0
      %1776 = vmatprep.mubr.bf16.mxu0 0
      %1777 = vmatmul.mubr.bf16.gmra.mxu0 %v1711
      %v1778 = vpop.f32.mrf.mxu0
      %v1779 = vadd.f32 %v1684, %v1778
      %v1780 = vpop.f32.mrf.mxu0
      %v1781 = vpop.f32.mrf.mxu0
      %v1782 = vadd.f32 %v1685, %v1781
      %v1783 = vpop.f32.mrf.mxu0
      %1784 = vmatprep.mubr.bf16.mxu0 0
      %1785 = vmatmul.mubr.bf16.gmra.mxu0 %v1714
      %v1786 = vpop.f32.mrf.mxu0
      %v1787 = vadd.f32 %v1686, %v1786
      %v1788 = vpop.f32.mrf.mxu0
      %v1789 = vpop.f32.mrf.mxu0
      %v1790 = vadd.f32 %v1687, %v1789
      %v1791 = vpop.f32.mrf.mxu0
      %1792 = vdwg.mxu0
      %1793 = vrot.lane.b32.xlu0 %v512, 120
      %v1794 = vpop.permute.xlu0 %1793
      %1795 = vrot.lane.b32.xlu0 %v513, 120
      %v1796 = vpop.permute.xlu0 %1795
      %1797 = vrot.lane.b32.xlu0 %v514, 120
      %v1798 = vpop.permute.xlu0 %1797
      %1799 = vrot.lane.b32.xlu0 %v515, 120
      %v1800 = vpop.permute.xlu0 %1799
      %1801 = vrot.lane.b32.xlu0 %v512, 88
      %v1802 = vpop.permute.xlu0 %1801
      %1803 = vrot.lane.b32.xlu0 %v513, 88
      %v1804 = vpop.permute.xlu0 %1803
      %1805 = vrot.lane.b32.xlu0 %v514, 88
      %v1806 = vpop.permute.xlu0 %1805
      %1807 = vrot.lane.b32.xlu0 %v515, 88
      %v1808 = vpop.permute.xlu0 %1807
      %v1810 = vsel %vm544, %v1794, 0
      %v1813 = vsel %vm544, %v1796, 0
      %v1816 = vsel %vm544, %v1798, 0
      %v1819 = vsel %vm544, %v1800, 0
      %v1822 = vsel %vm544, %v1802, 0
      %v1825 = vsel %vm544, %v1804, 0
      %v1828 = vsel %vm544, %v1806, 0
      %v1831 = vsel %vm544, %v1808, 0
      %1833 = vmatprep.subr.bf16.mxu0 0
      %1834 = vmatpush1.bf16.xpose.msra.mxu0 0
      %1835 = vmatprep.subr.bf16.mxu0 0
      %1836 = vmatpush1.bf16.xpose.msra.mxu0 0
      %1837 = vmatprep.subr.bf16.mxu0 0
      %1838 = vmatpush1.bf16.xpose.msra.mxu0 0
      %1839 = vmatprep.subr.bf16.mxu0 0
      %1840 = vmatpush1.bf16.xpose.msra.mxu0 0
      %1841 = vmatprep.subr.bf16.mxu0 0
      %1842 = vmatpush1.bf16.xpose.msra.mxu0 %v1831
      %1843 = vmatprep.subr.bf16.mxu0 0
      %1844 = vmatpush1.bf16.xpose.msra.mxu0 %v1828
      %1845 = vmatprep.subr.bf16.mxu0 0
      %1846 = vmatpush1.bf16.xpose.msra.mxu0 %v1825
      %1847 = vmatprep.subr.bf16.mxu0 0
      %1848 = vmatpush1.bf16.xpose.msra.mxu0 %v1822
      %1849 = vmatprep.subr.bf16.mxu0 0
      %1850 = vmatpush2.bf16.xpose.msra.mxu0 0
      %1851 = vmatprep.subr.bf16.mxu0 0
      %1852 = vmatpush2.bf16.xpose.msra.mxu0 0
      %1853 = vmatprep.subr.bf16.mxu0 0
      %1854 = vmatpush2.bf16.xpose.msra.mxu0 0
      %1855 = vmatprep.subr.bf16.mxu0 0
      %1856 = vmatpush2.bf16.xpose.msra.mxu0 0
      %1857 = vmatprep.subr.bf16.mxu0 0
      %1858 = vmatpush2.bf16.xpose.msra.mxu0 0
      %1859 = vmatprep.subr.bf16.mxu0 0
      %1860 = vmatpush2.bf16.xpose.msra.mxu0 0
      %1861 = vmatprep.subr.bf16.mxu0 0
      %1862 = vmatpush2.bf16.xpose.msra.mxu0 0
      %1863 = vmatprep.subr.bf16.mxu0 0
      %1864 = vmatpush2.bf16.xpose.msra.mxu0 0
      %1865 = vmatprep.mubr.bf16.mxu0 0
      %1866 = vmatmul.mubr.bf16.gmra.mxu0 %v1810
      %v1867 = vpop.f32.mrf.mxu0
      %v1868 = vadd.f32 %v1680, %v1867
      %v1869 = vpop.f32.mrf.mxu0
      %v1870 = vpop.f32.mrf.mxu0
      %v1871 = vadd.f32 %v1681, %v1870
      %v1872 = vpop.f32.mrf.mxu0
      %1873 = vmatprep.mubr.bf16.mxu0 0
      %1874 = vmatmul.mubr.bf16.gmra.mxu0 %v1813
      %v1875 = vpop.f32.mrf.mxu0
      %v1876 = vadd.f32 %v1682, %v1875
      %v1877 = vpop.f32.mrf.mxu0
      %v1878 = vpop.f32.mrf.mxu0
      %v1879 = vadd.f32 %v1683, %v1878
      %v1880 = vpop.f32.mrf.mxu0
      %1881 = vmatprep.mubr.bf16.mxu0 0
      %1882 = vmatmul.mubr.bf16.gmra.mxu0 %v1816
      %v1883 = vpop.f32.mrf.mxu0
      %v1884 = vadd.f32 %v1684, %v1883
      %v1885 = vpop.f32.mrf.mxu0
      %v1886 = vpop.f32.mrf.mxu0
      %v1887 = vadd.f32 %v1685, %v1886
      %v1888 = vpop.f32.mrf.mxu0
      %1889 = vmatprep.mubr.bf16.mxu0 0
      %1890 = vmatmul.mubr.bf16.gmra.mxu0 %v1819
      %v1891 = vpop.f32.mrf.mxu0
      %v1892 = vadd.f32 %v1686, %v1891
      %v1893 = vpop.f32.mrf.mxu0
      %v1894 = vpop.f32.mrf.mxu0
      %v1895 = vadd.f32 %v1687, %v1894
      %v1896 = vpop.f32.mrf.mxu0
      %1897 = vdwg.mxu0
      %1898 = vrot.lane.b32.xlu0 %v516, 120
      %v1899 = vpop.permute.xlu0 %1898
      %1900 = vrot.lane.b32.xlu0 %v517, 120
      %v1901 = vpop.permute.xlu0 %1900
      %1902 = vrot.lane.b32.xlu0 %v518, 120
      %v1903 = vpop.permute.xlu0 %1902
      %1904 = vrot.lane.b32.xlu0 %v519, 120
      %v1905 = vpop.permute.xlu0 %1904
      %1906 = vrot.lane.b32.xlu0 %v516, 88
      %v1907 = vpop.permute.xlu0 %1906
      %1908 = vrot.lane.b32.xlu0 %v517, 88
      %v1909 = vpop.permute.xlu0 %1908
      %1910 = vrot.lane.b32.xlu0 %v518, 88
      %v1911 = vpop.permute.xlu0 %1910
      %1912 = vrot.lane.b32.xlu0 %v519, 88
      %v1913 = vpop.permute.xlu0 %1912
      %v1915 = vsel %vm544, %v1899, 0
      %v1918 = vsel %vm544, %v1901, 0
      %v1921 = vsel %vm544, %v1903, 0
      %v1924 = vsel %vm544, %v1905, 0
      %v1927 = vsel %vm544, %v1907, 0
      %v1930 = vsel %vm544, %v1909, 0
      %v1933 = vsel %vm544, %v1911, 0
      %v1936 = vsel %vm544, %v1913, 0
      %1938 = vmatprep.subr.bf16.mxu0 0
      %1939 = vmatpush1.bf16.xpose.msra.mxu0 0
      %1940 = vmatprep.subr.bf16.mxu0 0
      %1941 = vmatpush1.bf16.xpose.msra.mxu0 0
      %1942 = vmatprep.subr.bf16.mxu0 0
      %1943 = vmatpush1.bf16.xpose.msra.mxu0 0
      %1944 = vmatprep.subr.bf16.mxu0 0
      %1945 = vmatpush1.bf16.xpose.msra.mxu0 0
      %1946 = vmatprep.subr.bf16.mxu0 0
      %1947 = vmatpush1.bf16.xpose.msra.mxu0 %v1936
      %1948 = vmatprep.subr.bf16.mxu0 0
      %1949 = vmatpush1.bf16.xpose.msra.mxu0 %v1933
      %1950 = vmatprep.subr.bf16.mxu0 0
      %1951 = vmatpush1.bf16.xpose.msra.mxu0 %v1930
      %1952 = vmatprep.subr.bf16.mxu0 0
      %1953 = vmatpush1.bf16.xpose.msra.mxu0 %v1927
      %1954 = vmatprep.subr.bf16.mxu0 0
      %1955 = vmatpush2.bf16.xpose.msra.mxu0 0
      %1956 = vmatprep.subr.bf16.mxu0 0
      %1957 = vmatpush2.bf16.xpose.msra.mxu0 0
      %1958 = vmatprep.subr.bf16.mxu0 0
      %1959 = vmatpush2.bf16.xpose.msra.mxu0 0
      %1960 = vmatprep.subr.bf16.mxu0 0
      %1961 = vmatpush2.bf16.xpose.msra.mxu0 0
      %1962 = vmatprep.subr.bf16.mxu0 0
      %1963 = vmatpush2.bf16.xpose.msra.mxu0 0
      %1964 = vmatprep.subr.bf16.mxu0 0
      %1965 = vmatpush2.bf16.xpose.msra.mxu0 0
      %1966 = vmatprep.subr.bf16.mxu0 0
      %1967 = vmatpush2.bf16.xpose.msra.mxu0 0
      %1968 = vmatprep.subr.bf16.mxu0 0
      %1969 = vmatpush2.bf16.xpose.msra.mxu0 0
      %1970 = vmatprep.mubr.bf16.mxu0 0
      %1971 = vmatmul.mubr.bf16.gmra.mxu0 %v1915
      %v1972 = vpop.f32.mrf.mxu0
      %v1973 = vadd.f32 %v1680, %v1972
      %v1974 = vpop.f32.mrf.mxu0
      %v1975 = vpop.f32.mrf.mxu0
      %v1976 = vadd.f32 %v1681, %v1975
      %v1977 = vpop.f32.mrf.mxu0
      %1978 = vmatprep.mubr.bf16.mxu0 0
      %1979 = vmatmul.mubr.bf16.gmra.mxu0 %v1918
      %v1980 = vpop.f32.mrf.mxu0
      %v1981 = vadd.f32 %v1682, %v1980
      %v1982 = vpop.f32.mrf.mxu0
      %v1983 = vpop.f32.mrf.mxu0
      %v1984 = vadd.f32 %v1683, %v1983
      %v1985 = vpop.f32.mrf.mxu0
      %1986 = vmatprep.mubr.bf16.mxu0 0
      %1987 = vmatmul.mubr.bf16.gmra.mxu0 %v1921
      %v1988 = vpop.f32.mrf.mxu0
      %v1989 = vadd.f32 %v1684, %v1988
      %v1990 = vpop.f32.mrf.mxu0
      %v1991 = vpop.f32.mrf.mxu0
      %v1992 = vadd.f32 %v1685, %v1991
      %v1993 = vpop.f32.mrf.mxu0
      %1994 = vmatprep.mubr.bf16.mxu0 0
      %1995 = vmatmul.mubr.bf16.gmra.mxu0 %v1924
      %v1996 = vpop.f32.mrf.mxu0
      %v1997 = vadd.f32 %v1686, %v1996
      %v1998 = vpop.f32.mrf.mxu0
      %v1999 = vpop.f32.mrf.mxu0
      %v2000 = vadd.f32 %v1687, %v1999
      %v2001 = vpop.f32.mrf.mxu0
      %2002 = vdwg.mxu0
      %2003 = vrot.lane.b32.xlu0 %v520, 120
      %v2004 = vpop.permute.xlu0 %2003
      %2005 = vrot.lane.b32.xlu0 %v521, 120
      %v2006 = vpop.permute.xlu0 %2005
      %2007 = vrot.lane.b32.xlu0 %v522, 120
      %v2008 = vpop.permute.xlu0 %2007
      %2009 = vrot.lane.b32.xlu0 %v523, 120
      %v2010 = vpop.permute.xlu0 %2009
      %2011 = vrot.lane.b32.xlu0 %v520, 88
      %v2012 = vpop.permute.xlu0 %2011
      %2013 = vrot.lane.b32.xlu0 %v521, 88
      %v2014 = vpop.permute.xlu0 %2013
      %2015 = vrot.lane.b32.xlu0 %v522, 88
      %v2016 = vpop.permute.xlu0 %2015
      %2017 = vrot.lane.b32.xlu0 %v523, 88
      %v2018 = vpop.permute.xlu0 %2017
      %v2020 = vsel %vm544, %v2004, 0
      %v2023 = vsel %vm544, %v2006, 0
      %v2026 = vsel %vm544, %v2008, 0
      %v2029 = vsel %vm544, %v2010, 0
      %v2032 = vsel %vm544, %v2012, 0
      %v2035 = vsel %vm544, %v2014, 0
      %v2038 = vsel %vm544, %v2016, 0
      %v2041 = vsel %vm544, %v2018, 0
      %2043 = vmatprep.subr.bf16.mxu0 0
      %2044 = vmatpush1.bf16.xpose.msra.mxu0 0
      %2045 = vmatprep.subr.bf16.mxu0 0
      %2046 = vmatpush1.bf16.xpose.msra.mxu0 0
      %2047 = vmatprep.subr.bf16.mxu0 0
      %2048 = vmatpush1.bf16.xpose.msra.mxu0 0
      %2049 = vmatprep.subr.bf16.mxu0 0
      %2050 = vmatpush1.bf16.xpose.msra.mxu0 0
      %2051 = vmatprep.subr.bf16.mxu0 0
      %2052 = vmatpush1.bf16.xpose.msra.mxu0 %v2041
      %2053 = vmatprep.subr.bf16.mxu0 0
      %2054 = vmatpush1.bf16.xpose.msra.mxu0 %v2038
      %2055 = vmatprep.subr.bf16.mxu0 0
      %2056 = vmatpush1.bf16.xpose.msra.mxu0 %v2035
      %2057 = vmatprep.subr.bf16.mxu0 0
      %2058 = vmatpush1.bf16.xpose.msra.mxu0 %v2032
      %2059 = vmatprep.subr.bf16.mxu0 0
      %2060 = vmatpush2.bf16.xpose.msra.mxu0 0
      %2061 = vmatprep.subr.bf16.mxu0 0
      %2062 = vmatpush2.bf16.xpose.msra.mxu0 0
      %2063 = vmatprep.subr.bf16.mxu0 0
      %2064 = vmatpush2.bf16.xpose.msra.mxu0 0
      %2065 = vmatprep.subr.bf16.mxu0 0
      %2066 = vmatpush2.bf16.xpose.msra.mxu0 0
      %2067 = vmatprep.subr.bf16.mxu0 0
      %2068 = vmatpush2.bf16.xpose.msra.mxu0 0
      %2069 = vmatprep.subr.bf16.mxu0 0
      %2070 = vmatpush2.bf16.xpose.msra.mxu0 0
      %2071 = vmatprep.subr.bf16.mxu0 0
      %2072 = vmatpush2.bf16.xpose.msra.mxu0 0
      %2073 = vmatprep.subr.bf16.mxu0 0
      %2074 = vmatpush2.bf16.xpose.msra.mxu0 0
      %2075 = vmatprep.mubr.bf16.mxu0 0
      %2076 = vmatmul.mubr.bf16.gmra.mxu0 %v2020
      %v2077 = vpop.f32.mrf.mxu0
      %v2078 = vadd.f32 %v1680, %v2077
      %v2079 = vpop.f32.mrf.mxu0
      %v2080 = vpop.f32.mrf.mxu0
      %v2081 = vadd.f32 %v1681, %v2080
      %v2082 = vpop.f32.mrf.mxu0
      %2083 = vmatprep.mubr.bf16.mxu0 0
      %2084 = vmatmul.mubr.bf16.gmra.mxu0 %v2023
      %v2085 = vpop.f32.mrf.mxu0
      %v2086 = vadd.f32 %v1682, %v2085
      %v2087 = vpop.f32.mrf.mxu0
      %v2088 = vpop.f32.mrf.mxu0
      %v2089 = vadd.f32 %v1683, %v2088
      %v2090 = vpop.f32.mrf.mxu0
      %2091 = vmatprep.mubr.bf16.mxu0 0
      %2092 = vmatmul.mubr.bf16.gmra.mxu0 %v2026
      %v2093 = vpop.f32.mrf.mxu0
      %v2094 = vadd.f32 %v1684, %v2093
      %v2095 = vpop.f32.mrf.mxu0
      %v2096 = vpop.f32.mrf.mxu0
      %v2097 = vadd.f32 %v1685, %v2096
      %v2098 = vpop.f32.mrf.mxu0
      %2099 = vmatprep.mubr.bf16.mxu0 0
      %2100 = vmatmul.mubr.bf16.gmra.mxu0 %v2029
      %v2101 = vpop.f32.mrf.mxu0
      %v2102 = vadd.f32 %v1686, %v2101
      %v2103 = vpop.f32.mrf.mxu0
      %v2104 = vpop.f32.mrf.mxu0
      %v2105 = vadd.f32 %v1687, %v2104
      %v2106 = vpop.f32.mrf.mxu0
      %2107 = vdwg.mxu0
      %v2108 = vsel %vm937, %v1763, -inf
      %2109 = vmax.xlane.f32.xlu0 %v2108
      %v2110 = vpop.xlane.xlu0 %2109
      %v2111 = vsel %vm937, %v1766, -inf
      %2112 = vmax.xlane.f32.xlu0 %v2111
      %v2113 = vpop.xlane.xlu0 %2112
      %v2114 = vsel %vm937, %v1771, -inf
      %2115 = vmax.xlane.f32.xlu0 %v2114
      %v2116 = vpop.xlane.xlu0 %2115
      %v2117 = vsel %vm937, %v1774, -inf
      %2118 = vmax.xlane.f32.xlu0 %v2117
      %v2119 = vpop.xlane.xlu0 %2118
      %v2120 = vsel %vm937, %v1779, -inf
      %2121 = vmax.xlane.f32.xlu0 %v2120
      %v2122 = vpop.xlane.xlu0 %2121
      %v2123 = vsel %vm937, %v1782, -inf
      %2124 = vmax.xlane.f32.xlu0 %v2123
      %v2125 = vpop.xlane.xlu0 %2124
      %v2126 = vsel %vm937, %v1787, -inf
      %2127 = vmax.xlane.f32.xlu0 %v2126
      %v2128 = vpop.xlane.xlu0 %2127
      %v2129 = vsel %vm937, %v1790, -inf
      %2130 = vmax.xlane.f32.xlu0 %v2129
      %v2131 = vpop.xlane.xlu0 %2130
      %v2132 = vsel %vm937, %v1868, -inf
      %2133 = vmax.xlane.f32.xlu0 %v2132
      %v2134 = vpop.xlane.xlu0 %2133
      %v2135 = vsel %vm937, %v1871, -inf
      %2136 = vmax.xlane.f32.xlu0 %v2135
      %v2137 = vpop.xlane.xlu0 %2136
      %v2138 = vsel %vm937, %v1876, -inf
      %2139 = vmax.xlane.f32.xlu0 %v2138
      %v2140 = vpop.xlane.xlu0 %2139
      %v2141 = vsel %vm937, %v1879, -inf
      %2142 = vmax.xlane.f32.xlu0 %v2141
      %v2143 = vpop.xlane.xlu0 %2142
      %v2144 = vsel %vm937, %v1884, -inf
      %2145 = vmax.xlane.f32.xlu0 %v2144
      %v2146 = vpop.xlane.xlu0 %2145
      %v2147 = vsel %vm937, %v1887, -inf
      %2148 = vmax.xlane.f32.xlu0 %v2147
      %v2149 = vpop.xlane.xlu0 %2148
      %v2150 = vsel %vm937, %v1892, -inf
      %2151 = vmax.xlane.f32.xlu0 %v2150
      %v2152 = vpop.xlane.xlu0 %2151
      %v2153 = vsel %vm937, %v1895, -inf
      %2154 = vmax.xlane.f32.xlu0 %v2153
      %v2155 = vpop.xlane.xlu0 %2154
      %v2156 = vsel %vm937, %v1973, -inf
      %2157 = vmax.xlane.f32.xlu0 %v2156
      %v2158 = vpop.xlane.xlu0 %2157
      %v2159 = vsel %vm937, %v1976, -inf
      %2160 = vmax.xlane.f32.xlu0 %v2159
      %v2161 = vpop.xlane.xlu0 %2160
      %v2162 = vsel %vm937, %v1981, -inf
      %2163 = vmax.xlane.f32.xlu0 %v2162
      %v2164 = vpop.xlane.xlu0 %2163
      %v2165 = vsel %vm937, %v1984, -inf
      %2166 = vmax.xlane.f32.xlu0 %v2165
      %v2167 = vpop.xlane.xlu0 %2166
      %v2168 = vsel %vm937, %v1989, -inf
      %2169 = vmax.xlane.f32.xlu0 %v2168
      %v2170 = vpop.xlane.xlu0 %2169
      %v2171 = vsel %vm937, %v1992, -inf
      %2172 = vmax.xlane.f32.xlu0 %v2171
      %v2173 = vpop.xlane.xlu0 %2172
      %v2174 = vsel %vm937, %v1997, -inf
      %2175 = vmax.xlane.f32.xlu0 %v2174
      %v2176 = vpop.xlane.xlu0 %2175
      %v2177 = vsel %vm937, %v2000, -inf
      %2178 = vmax.xlane.f32.xlu0 %v2177
      %v2179 = vpop.xlane.xlu0 %2178
      %v2180 = vsel %vm937, %v2078, -inf
      %2181 = vmax.xlane.f32.xlu0 %v2180
      %v2182 = vpop.xlane.xlu0 %2181
      %v2183 = vsel %vm937, %v2081, -inf
      %2184 = vmax.xlane.f32.xlu0 %v2183
      %v2185 = vpop.xlane.xlu0 %2184
      %v2186 = vsel %vm937, %v2086, -inf
      %2187 = vmax.xlane.f32.xlu0 %v2186
      %v2188 = vpop.xlane.xlu0 %2187
      %v2189 = vsel %vm937, %v2089, -inf
      %2190 = vmax.xlane.f32.xlu0 %v2189
      %v2191 = vpop.xlane.xlu0 %2190
      %v2192 = vsel %vm937, %v2094, -inf
      %2193 = vmax.xlane.f32.xlu0 %v2192
      %v2194 = vpop.xlane.xlu0 %2193
      %v2195 = vsel %vm937, %v2097, -inf
      %2196 = vmax.xlane.f32.xlu0 %v2195
      %v2197 = vpop.xlane.xlu0 %2196
      %v2198 = vsel %vm937, %v2102, -inf
      %2199 = vmax.xlane.f32.xlu0 %v2198
      %v2200 = vpop.xlane.xlu0 %2199
      %v2201 = vsel %vm937, %v2105, -inf
      %2202 = vmax.xlane.f32.xlu0 %v2201
      %v2203 = vpop.xlane.xlu0 %2202
      %v2204 = vsub.f32 %v1763, %v2110
      %v2205 = vsub.f32 %v1766, %v2113
      %v2206 = vsub.f32 %v1771, %v2116
      %v2207 = vsub.f32 %v1774, %v2119
      %v2208 = vsub.f32 %v1779, %v2122
      %v2209 = vsub.f32 %v1782, %v2125
      %v2210 = vsub.f32 %v1787, %v2128
      %v2211 = vsub.f32 %v1790, %v2131
      %v2212 = vsub.f32 %v1868, %v2134
      %v2213 = vsub.f32 %v1871, %v2137
      %v2214 = vsub.f32 %v1876, %v2140
      %v2215 = vsub.f32 %v1879, %v2143
      %v2216 = vsub.f32 %v1884, %v2146
      %v2217 = vsub.f32 %v1887, %v2149
      %v2218 = vsub.f32 %v1892, %v2152
      %v2219 = vsub.f32 %v1895, %v2155
      %v2220 = vsub.f32 %v1973, %v2158
      %v2221 = vsub.f32 %v1976, %v2161
      %v2222 = vsub.f32 %v1981, %v2164
      %v2223 = vsub.f32 %v1984, %v2167
      %v2224 = vsub.f32 %v1989, %v2170
      %v2225 = vsub.f32 %v1992, %v2173
      %v2226 = vsub.f32 %v1997, %v2176
      %v2227 = vsub.f32 %v2000, %v2179
      %v2228 = vsub.f32 %v2078, %v2182
      %v2229 = vsub.f32 %v2081, %v2185
      %v2230 = vsub.f32 %v2086, %v2188
      %v2231 = vsub.f32 %v2089, %v2191
      %v2232 = vsub.f32 %v2094, %v2194
      %v2233 = vsub.f32 %v2097, %v2197
      %v2234 = vsub.f32 %v2102, %v2200
      %v2235 = vsub.f32 %v2105, %v2203
      %v2236 = vmul.f32 %v2204, 1.442695
      %v2237 = vpow.pop %v2236
      %v2238 = vmul.f32 %v2205, 1.442695
      %v2239 = vpow.pop %v2238
      %v2240 = vmul.f32 %v2206, 1.442695
      %v2241 = vpow.pop %v2240
      %v2242 = vmul.f32 %v2207, 1.442695
      %v2243 = vpow.pop %v2242
      %v2244 = vmul.f32 %v2208, 1.442695
      %v2245 = vpow.pop %v2244
      %v2246 = vmul.f32 %v2209, 1.442695
      %v2247 = vpow.pop %v2246
      %v2248 = vmul.f32 %v2210, 1.442695
      %v2249 = vpow.pop %v2248
      %v2250 = vmul.f32 %v2211, 1.442695
      %v2251 = vpow.pop %v2250
      %v2252 = vmul.f32 %v2212, 1.442695
      %v2253 = vpow.pop %v2252
      %v2254 = vmul.f32 %v2213, 1.442695
      %v2255 = vpow.pop %v2254
      %v2256 = vmul.f32 %v2214, 1.442695
      %v2257 = vpow.pop %v2256
      %v2258 = vmul.f32 %v2215, 1.442695
      %v2259 = vpow.pop %v2258
      %v2260 = vmul.f32 %v2216, 1.442695
      %v2261 = vpow.pop %v2260
      %v2262 = vmul.f32 %v2217, 1.442695
      %v2263 = vpow.pop %v2262
      %v2264 = vmul.f32 %v2218, 1.442695
      %v2265 = vpow.pop %v2264
      %v2266 = vmul.f32 %v2219, 1.442695
      %v2267 = vpow.pop %v2266
      %v2268 = vmul.f32 %v2220, 1.442695
      %v2269 = vpow.pop %v2268
      %v2270 = vmul.f32 %v2221, 1.442695
      %v2271 = vpow.pop %v2270
      %v2272 = vmul.f32 %v2222, 1.442695
      %v2273 = vpow.pop %v2272
      %v2274 = vmul.f32 %v2223, 1.442695
      %v2275 = vpow.pop %v2274
      %v2276 = vmul.f32 %v2224, 1.442695
      %v2277 = vpow.pop %v2276
      %v2278 = vmul.f32 %v2225, 1.442695
      %v2279 = vpow.pop %v2278
      %v2280 = vmul.f32 %v2226, 1.442695
      %v2281 = vpow.pop %v2280
      %v2282 = vmul.f32 %v2227, 1.442695
      %v2283 = vpow.pop %v2282
      %v2284 = vmul.f32 %v2228, 1.442695
      %v2285 = vpow.pop %v2284
      %v2286 = vmul.f32 %v2229, 1.442695
      %v2287 = vpow.pop %v2286
      %v2288 = vmul.f32 %v2230, 1.442695
      %v2289 = vpow.pop %v2288
      %v2290 = vmul.f32 %v2231, 1.442695
      %v2291 = vpow.pop %v2290
      %v2292 = vmul.f32 %v2232, 1.442695
      %v2293 = vpow.pop %v2292
      %v2294 = vmul.f32 %v2233, 1.442695
      %v2295 = vpow.pop %v2294
      %v2296 = vmul.f32 %v2234, 1.442695
      %v2297 = vpow.pop %v2296
      %v2298 = vmul.f32 %v2235, 1.442695
      %v2299 = vpow.pop %v2298
      %v2300 = vsel %vm937, %v2237, 0.0
      %2301 = vadd.xlane.f32.xlu0 %v2300
      %v2302 = vpop.xlane.xlu0 %2301
      %v2303 = vsel %vm937, %v2239, 0.0
      %2304 = vadd.xlane.f32.xlu0 %v2303
      %v2305 = vpop.xlane.xlu0 %2304
      %v2306 = vsel %vm937, %v2241, 0.0
      %2307 = vadd.xlane.f32.xlu0 %v2306
      %v2308 = vpop.xlane.xlu0 %2307
      %v2309 = vsel %vm937, %v2243, 0.0
      %2310 = vadd.xlane.f32.xlu0 %v2309
      %v2311 = vpop.xlane.xlu0 %2310
      %v2312 = vsel %vm937, %v2245, 0.0
      %2313 = vadd.xlane.f32.xlu0 %v2312
      %v2314 = vpop.xlane.xlu0 %2313
      %v2315 = vsel %vm937, %v2247, 0.0
      %2316 = vadd.xlane.f32.xlu0 %v2315
      %v2317 = vpop.xlane.xlu0 %2316
      %v2318 = vsel %vm937, %v2249, 0.0
      %2319 = vadd.xlane.f32.xlu0 %v2318
      %v2320 = vpop.xlane.xlu0 %2319
      %v2321 = vsel %vm937, %v2251, 0.0
      %2322 = vadd.xlane.f32.xlu0 %v2321
      %v2323 = vpop.xlane.xlu0 %2322
      %v2324 = vsel %vm937, %v2253, 0.0
      %2325 = vadd.xlane.f32.xlu0 %v2324
      %v2326 = vpop.xlane.xlu0 %2325
      %v2327 = vsel %vm937, %v2255, 0.0
      %2328 = vadd.xlane.f32.xlu0 %v2327
      %v2329 = vpop.xlane.xlu0 %2328
      %v2330 = vsel %vm937, %v2257, 0.0
      %2331 = vadd.xlane.f32.xlu0 %v2330
      %v2332 = vpop.xlane.xlu0 %2331
      %v2333 = vsel %vm937, %v2259, 0.0
      %2334 = vadd.xlane.f32.xlu0 %v2333
      %v2335 = vpop.xlane.xlu0 %2334
      %v2336 = vsel %vm937, %v2261, 0.0
      %2337 = vadd.xlane.f32.xlu0 %v2336
      %v2338 = vpop.xlane.xlu0 %2337
      %v2339 = vsel %vm937, %v2263, 0.0
      %2340 = vadd.xlane.f32.xlu0 %v2339
      %v2341 = vpop.xlane.xlu0 %2340
      %v2342 = vsel %vm937, %v2265, 0.0
      %2343 = vadd.xlane.f32.xlu0 %v2342
      %v2344 = vpop.xlane.xlu0 %2343
      %v2345 = vsel %vm937, %v2267, 0.0
      %2346 = vadd.xlane.f32.xlu0 %v2345
      %v2347 = vpop.xlane.xlu0 %2346
      %v2348 = vsel %vm937, %v2269, 0.0
      %2349 = vadd.xlane.f32.xlu0 %v2348
      %v2350 = vpop.xlane.xlu0 %2349
      %v2351 = vsel %vm937, %v2271, 0.0
      %2352 = vadd.xlane.f32.xlu0 %v2351
      %v2353 = vpop.xlane.xlu0 %2352
      %v2354 = vsel %vm937, %v2273, 0.0
      %2355 = vadd.xlane.f32.xlu0 %v2354
      %v2356 = vpop.xlane.xlu0 %2355
      %v2357 = vsel %vm937, %v2275, 0.0
      %2358 = vadd.xlane.f32.xlu0 %v2357
      %v2359 = vpop.xlane.xlu0 %2358
      %v2360 = vsel %vm937, %v2277, 0.0
      %2361 = vadd.xlane.f32.xlu0 %v2360
      %v2362 = vpop.xlane.xlu0 %2361
      %v2363 = vsel %vm937, %v2279, 0.0
      %2364 = vadd.xlane.f32.xlu0 %v2363
      %v2365 = vpop.xlane.xlu0 %2364
      %v2366 = vsel %vm937, %v2281, 0.0
      %2367 = vadd.xlane.f32.xlu0 %v2366
      %v2368 = vpop.xlane.xlu0 %2367
      %v2369 = vsel %vm937, %v2283, 0.0
      %2370 = vadd.xlane.f32.xlu0 %v2369
      %v2371 = vpop.xlane.xlu0 %2370
      %v2372 = vsel %vm937, %v2285, 0.0
      %2373 = vadd.xlane.f32.xlu0 %v2372
      %v2374 = vpop.xlane.xlu0 %2373
      %v2375 = vsel %vm937, %v2287, 0.0
      %2376 = vadd.xlane.f32.xlu0 %v2375
      %v2377 = vpop.xlane.xlu0 %2376
      %v2378 = vsel %vm937, %v2289, 0.0
      %2379 = vadd.xlane.f32.xlu0 %v2378
      %v2380 = vpop.xlane.xlu0 %2379
      %v2381 = vsel %vm937, %v2291, 0.0
      %2382 = vadd.xlane.f32.xlu0 %v2381
      %v2383 = vpop.xlane.xlu0 %2382
      %v2384 = vsel %vm937, %v2293, 0.0
      %2385 = vadd.xlane.f32.xlu0 %v2384
      %v2386 = vpop.xlane.xlu0 %2385
      %v2387 = vsel %vm937, %v2295, 0.0
      %2388 = vadd.xlane.f32.xlu0 %v2387
      %v2389 = vpop.xlane.xlu0 %2388
      %v2390 = vsel %vm937, %v2297, 0.0
      %2391 = vadd.xlane.f32.xlu0 %v2390
      %v2392 = vpop.xlane.xlu0 %2391
      %v2393 = vsel %vm937, %v2299, 0.0
      %2394 = vadd.xlane.f32.xlu0 %v2393
      %v2395 = vpop.xlane.xlu0 %2394
      %v2396 = vrcp.pop %v2302
      %v2397 = vrcp.pop %v2305
      %v2398 = vrcp.pop %v2308
      %v2399 = vrcp.pop %v2311
      %v2400 = vrcp.pop %v2314
      %v2401 = vrcp.pop %v2317
      %v2402 = vrcp.pop %v2320
      %v2403 = vrcp.pop %v2323
      %v2404 = vrcp.pop %v2326
      %v2405 = vrcp.pop %v2329
      %v2406 = vrcp.pop %v2332
      %v2407 = vrcp.pop %v2335
      %v2408 = vrcp.pop %v2338
      %v2409 = vrcp.pop %v2341
      %v2410 = vrcp.pop %v2344
      %v2411 = vrcp.pop %v2347
      %v2412 = vrcp.pop %v2350
      %v2413 = vrcp.pop %v2353
      %v2414 = vrcp.pop %v2356
      %v2415 = vrcp.pop %v2359
      %v2416 = vrcp.pop %v2362
      %v2417 = vrcp.pop %v2365
      %v2418 = vrcp.pop %v2368
      %v2419 = vrcp.pop %v2371
      %v2420 = vrcp.pop %v2374
      %v2421 = vrcp.pop %v2377
      %v2422 = vrcp.pop %v2380
      %v2423 = vrcp.pop %v2383
      %v2424 = vrcp.pop %v2386
      %v2425 = vrcp.pop %v2389
      %v2426 = vrcp.pop %v2392
      %v2427 = vrcp.pop %v2395
      %v2428 = vmul.f32 %v2237, %v2396
      %v2429 = vmul.f32 %v2239, %v2397
      %v2430 = vmul.f32 %v2241, %v2398
      %v2431 = vmul.f32 %v2243, %v2399
      %v2432 = vmul.f32 %v2245, %v2400
      %v2433 = vmul.f32 %v2247, %v2401
      %v2434 = vmul.f32 %v2249, %v2402
      %v2435 = vmul.f32 %v2251, %v2403
      %v2436 = vmul.f32 %v2253, %v2404
      %v2437 = vmul.f32 %v2255, %v2405
      %v2438 = vmul.f32 %v2257, %v2406
      %v2439 = vmul.f32 %v2259, %v2407
      %v2440 = vmul.f32 %v2261, %v2408
      %v2441 = vmul.f32 %v2263, %v2409
      %v2442 = vmul.f32 %v2265, %v2410
      %v2443 = vmul.f32 %v2267, %v2411
      %v2444 = vmul.f32 %v2269, %v2412
      %v2445 = vmul.f32 %v2271, %v2413
      %v2446 = vmul.f32 %v2273, %v2414
      %v2447 = vmul.f32 %v2275, %v2415
      %v2448 = vmul.f32 %v2277, %v2416
      %v2449 = vmul.f32 %v2279, %v2417
      %v2450 = vmul.f32 %v2281, %v2418
      %v2451 = vmul.f32 %v2283, %v2419
      %v2452 = vmul.f32 %v2285, %v2420
      %v2453 = vmul.f32 %v2287, %v2421
      %v2454 = vmul.f32 %v2289, %v2422
      %v2455 = vmul.f32 %v2291, %v2423
      %v2456 = vmul.f32 %v2293, %v2424
      %v2457 = vmul.f32 %v2295, %v2425
      %v2458 = vmul.f32 %v2297, %v2426
      %v2459 = vmul.f32 %v2299, %v2427
      %v2460 = vpack.c.bf16 %v2429, %v2428
      %v2461 = vpack.c.bf16 %v2431, %v2430
      %v2462 = vpack.c.bf16 %v2433, %v2432
      %v2463 = vpack.c.bf16 %v2435, %v2434
      %v2464 = vpack.c.bf16 %v2437, %v2436
      %v2465 = vpack.c.bf16 %v2439, %v2438
      %v2466 = vpack.c.bf16 %v2441, %v2440
      %v2467 = vpack.c.bf16 %v2443, %v2442
      %v2468 = vpack.c.bf16 %v2445, %v2444
      %v2469 = vpack.c.bf16 %v2447, %v2446
      %v2470 = vpack.c.bf16 %v2449, %v2448
      %v2471 = vpack.c.bf16 %v2451, %v2450
      %v2472 = vpack.c.bf16 %v2453, %v2452
      %v2473 = vpack.c.bf16 %v2455, %v2454
      %v2474 = vpack.c.bf16 %v2457, %v2456
      %v2475 = vpack.c.bf16 %v2459, %v2458
      %2476 = vrot.lane.b32.xlu0 %v508, 56
      %v2477 = vpop.permute.xlu0 %2476
      %2478 = vrot.lane.b32.xlu0 %v509, 56
      %v2479 = vpop.permute.xlu0 %2478
      %2480 = vrot.lane.b32.xlu0 %v510, 56
      %v2481 = vpop.permute.xlu0 %2480
      %2482 = vrot.lane.b32.xlu0 %v511, 56
      %v2483 = vpop.permute.xlu0 %2482
      %v2489 = vsel %vm937, %v2460, 0
      %v2492 = vsel %vm937, %v2461, 0
      %v2495 = vsel %vm937, %v2462, 0
      %v2498 = vsel %vm937, %v2463, 0
      %2500 = vmatprep.subr.bf16.mxu0 0
      %2501 = vmatpush1.bf16.msra.mxu0 0
      %2502 = vmatprep.subr.bf16.mxu0 0
      %2503 = vmatpush1.bf16.msra.mxu0 0
      %2504 = vmatprep.subr.bf16.mxu0 0
      %2505 = vmatpush1.bf16.msra.mxu0 0
      %2506 = vmatprep.subr.bf16.mxu0 0
      %2507 = vmatpush1.bf16.msra.mxu0 0
      %2508 = vmatprep.subr.bf16.mxu0 0
      %2509 = vmatpush1.bf16.msra.mxu0 %v2483
      %2510 = vmatprep.subr.bf16.mxu0 0
      %2511 = vmatpush1.bf16.msra.mxu0 %v2481
      %2512 = vmatprep.subr.bf16.mxu0 0
      %2513 = vmatpush1.bf16.msra.mxu0 %v2479
      %2514 = vmatprep.subr.bf16.mxu0 0
      %2515 = vmatpush1.bf16.msra.mxu0 %v2477
      %2516 = vmatprep.subr.bf16.mxu0 0
      %2517 = vmatpush2.bf16.msra.mxu0 0
      %2518 = vmatprep.subr.bf16.mxu0 0
      %2519 = vmatpush2.bf16.msra.mxu0 0
      %2520 = vmatprep.subr.bf16.mxu0 0
      %2521 = vmatpush2.bf16.msra.mxu0 0
      %2522 = vmatprep.subr.bf16.mxu0 0
      %2523 = vmatpush2.bf16.msra.mxu0 0
      %2524 = vmatprep.subr.bf16.mxu0 0
      %2525 = vmatpush2.bf16.msra.mxu0 0
      %2526 = vmatprep.subr.bf16.mxu0 0
      %2527 = vmatpush2.bf16.msra.mxu0 0
      %2528 = vmatprep.subr.bf16.mxu0 0
      %2529 = vmatpush2.bf16.msra.mxu0 0
      %2530 = vmatprep.subr.bf16.mxu0 0
      %2531 = vmatpush2.bf16.msra.mxu0 0
      %2532 = vmatprep.mubr.bf16.mxu0 0
      %2533 = vmatmul.mubr.bf16.gmra.mxu0 %v2489
      %v2534 = vpop.f32.mrf.mxu0
      %v2535 = vadd.f32 0.0, %v2534
      %v2536 = vpop.f32.mrf.mxu0
      %v2537 = vpop.f32.mrf.mxu0
      %v2538 = vadd.f32 0.0, %v2537
      %v2539 = vpop.f32.mrf.mxu0
      %2540 = vmatprep.mubr.bf16.mxu0 0
      %2541 = vmatmul.mubr.bf16.gmra.mxu0 %v2492
      %v2542 = vpop.f32.mrf.mxu0
      %v2543 = vadd.f32 0.0, %v2542
      %v2544 = vpop.f32.mrf.mxu0
      %v2545 = vpop.f32.mrf.mxu0
      %v2546 = vadd.f32 0.0, %v2545
      %v2547 = vpop.f32.mrf.mxu0
      %2548 = vmatprep.mubr.bf16.mxu0 0
      %2549 = vmatmul.mubr.bf16.gmra.mxu0 %v2495
      %v2550 = vpop.f32.mrf.mxu0
      %v2551 = vadd.f32 0.0, %v2550
      %v2552 = vpop.f32.mrf.mxu0
      %v2553 = vpop.f32.mrf.mxu0
      %v2554 = vadd.f32 0.0, %v2553
      %v2555 = vpop.f32.mrf.mxu0
      %2556 = vmatprep.mubr.bf16.mxu0 0
      %2557 = vmatmul.mubr.bf16.gmra.mxu0 %v2498
      %v2558 = vpop.f32.mrf.mxu0
      %v2559 = vadd.f32 0.0, %v2558
      %v2560 = vpop.f32.mrf.mxu0
      %v2561 = vpop.f32.mrf.mxu0
      %v2562 = vadd.f32 0.0, %v2561
      %v2563 = vpop.f32.mrf.mxu0
      %2564 = vdwg.mxu0
      %2565 = vrot.lane.b32.xlu0 %v512, 56
      %v2566 = vpop.permute.xlu0 %2565
      %2567 = vrot.lane.b32.xlu0 %v513, 56
      %v2568 = vpop.permute.xlu0 %2567
      %2569 = vrot.lane.b32.xlu0 %v514, 56
      %v2570 = vpop.permute.xlu0 %2569
      %2571 = vrot.lane.b32.xlu0 %v515, 56
      %v2572 = vpop.permute.xlu0 %2571
      %v2578 = vsel %vm937, %v2464, 0
      %v2581 = vsel %vm937, %v2465, 0
      %v2584 = vsel %vm937, %v2466, 0
      %v2587 = vsel %vm937, %v2467, 0
      %2589 = vmatprep.subr.bf16.mxu0 0
      %2590 = vmatpush1.bf16.msra.mxu0 0
      %2591 = vmatprep.subr.bf16.mxu0 0
      %2592 = vmatpush1.bf16.msra.mxu0 0
      %2593 = vmatprep.subr.bf16.mxu0 0
      %2594 = vmatpush1.bf16.msra.mxu0 0
      %2595 = vmatprep.subr.bf16.mxu0 0
      %2596 = vmatpush1.bf16.msra.mxu0 0
      %2597 = vmatprep.subr.bf16.mxu0 0
      %2598 = vmatpush1.bf16.msra.mxu0 %v2572
      %2599 = vmatprep.subr.bf16.mxu0 0
      %2600 = vmatpush1.bf16.msra.mxu0 %v2570
      %2601 = vmatprep.subr.bf16.mxu0 0
      %2602 = vmatpush1.bf16.msra.mxu0 %v2568
      %2603 = vmatprep.subr.bf16.mxu0 0
      %2604 = vmatpush1.bf16.msra.mxu0 %v2566
      %2605 = vmatprep.subr.bf16.mxu0 0
      %2606 = vmatpush2.bf16.msra.mxu0 0
      %2607 = vmatprep.subr.bf16.mxu0 0
      %2608 = vmatpush2.bf16.msra.mxu0 0
      %2609 = vmatprep.subr.bf16.mxu0 0
      %2610 = vmatpush2.bf16.msra.mxu0 0
      %2611 = vmatprep.subr.bf16.mxu0 0
      %2612 = vmatpush2.bf16.msra.mxu0 0
      %2613 = vmatprep.subr.bf16.mxu0 0
      %2614 = vmatpush2.bf16.msra.mxu0 0
      %2615 = vmatprep.subr.bf16.mxu0 0
      %2616 = vmatpush2.bf16.msra.mxu0 0
      %2617 = vmatprep.subr.bf16.mxu0 0
      %2618 = vmatpush2.bf16.msra.mxu0 0
      %2619 = vmatprep.subr.bf16.mxu0 0
      %2620 = vmatpush2.bf16.msra.mxu0 0
      %2621 = vmatprep.mubr.bf16.mxu0 0
      %2622 = vmatmul.mubr.bf16.gmra.mxu0 %v2578
      %v2623 = vpop.f32.mrf.mxu0
      %v2624 = vadd.f32 0.0, %v2623
      %v2625 = vpop.f32.mrf.mxu0
      %v2626 = vpop.f32.mrf.mxu0
      %v2627 = vadd.f32 0.0, %v2626
      %v2628 = vpop.f32.mrf.mxu0
      %2629 = vmatprep.mubr.bf16.mxu0 0
      %2630 = vmatmul.mubr.bf16.gmra.mxu0 %v2581
      %v2631 = vpop.f32.mrf.mxu0
      %v2632 = vadd.f32 0.0, %v2631
      %v2633 = vpop.f32.mrf.mxu0
      %v2634 = vpop.f32.mrf.mxu0
      %v2635 = vadd.f32 0.0, %v2634
      %v2636 = vpop.f32.mrf.mxu0
      %2637 = vmatprep.mubr.bf16.mxu0 0
      %2638 = vmatmul.mubr.bf16.gmra.mxu0 %v2584
      %v2639 = vpop.f32.mrf.mxu0
      %v2640 = vadd.f32 0.0, %v2639
      %v2641 = vpop.f32.mrf.mxu0
      %v2642 = vpop.f32.mrf.mxu0
      %v2643 = vadd.f32 0.0, %v2642
      %v2644 = vpop.f32.mrf.mxu0
      %2645 = vmatprep.mubr.bf16.mxu0 0
      %2646 = vmatmul.mubr.bf16.gmra.mxu0 %v2587
      %v2647 = vpop.f32.mrf.mxu0
      %v2648 = vadd.f32 0.0, %v2647
      %v2649 = vpop.f32.mrf.mxu0
      %v2650 = vpop.f32.mrf.mxu0
      %v2651 = vadd.f32 0.0, %v2650
      %v2652 = vpop.f32.mrf.mxu0
      %2653 = vdwg.mxu0
      %2654 = vrot.lane.b32.xlu0 %v516, 56
      %v2655 = vpop.permute.xlu0 %2654
      %2656 = vrot.lane.b32.xlu0 %v517, 56
      %v2657 = vpop.permute.xlu0 %2656
      %2658 = vrot.lane.b32.xlu0 %v518, 56
      %v2659 = vpop.permute.xlu0 %2658
      %2660 = vrot.lane.b32.xlu0 %v519, 56
      %v2661 = vpop.permute.xlu0 %2660
      %v2667 = vsel %vm937, %v2468, 0
      %v2670 = vsel %vm937, %v2469, 0
      %v2673 = vsel %vm937, %v2470, 0
      %v2676 = vsel %vm937, %v2471, 0
      %2678 = vmatprep.subr.bf16.mxu0 0
      %2679 = vmatpush1.bf16.msra.mxu0 0
      %2680 = vmatprep.subr.bf16.mxu0 0
      %2681 = vmatpush1.bf16.msra.mxu0 0
      %2682 = vmatprep.subr.bf16.mxu0 0
      %2683 = vmatpush1.bf16.msra.mxu0 0
      %2684 = vmatprep.subr.bf16.mxu0 0
      %2685 = vmatpush1.bf16.msra.mxu0 0
      %2686 = vmatprep.subr.bf16.mxu0 0
      %2687 = vmatpush1.bf16.msra.mxu0 %v2661
      %2688 = vmatprep.subr.bf16.mxu0 0
      %2689 = vmatpush1.bf16.msra.mxu0 %v2659
      %2690 = vmatprep.subr.bf16.mxu0 0
      %2691 = vmatpush1.bf16.msra.mxu0 %v2657
      %2692 = vmatprep.subr.bf16.mxu0 0
      %2693 = vmatpush1.bf16.msra.mxu0 %v2655
      %2694 = vmatprep.subr.bf16.mxu0 0
      %2695 = vmatpush2.bf16.msra.mxu0 0
      %2696 = vmatprep.subr.bf16.mxu0 0
      %2697 = vmatpush2.bf16.msra.mxu0 0
      %2698 = vmatprep.subr.bf16.mxu0 0
      %2699 = vmatpush2.bf16.msra.mxu0 0
      %2700 = vmatprep.subr.bf16.mxu0 0
      %2701 = vmatpush2.bf16.msra.mxu0 0
      %2702 = vmatprep.subr.bf16.mxu0 0
      %2703 = vmatpush2.bf16.msra.mxu0 0
      %2704 = vmatprep.subr.bf16.mxu0 0
      %2705 = vmatpush2.bf16.msra.mxu0 0
      %2706 = vmatprep.subr.bf16.mxu0 0
      %2707 = vmatpush2.bf16.msra.mxu0 0
      %2708 = vmatprep.subr.bf16.mxu0 0
      %2709 = vmatpush2.bf16.msra.mxu0 0
      %2710 = vmatprep.mubr.bf16.mxu0 0
      %2711 = vmatmul.mubr.bf16.gmra.mxu0 %v2667
      %v2712 = vpop.f32.mrf.mxu0
      %v2713 = vadd.f32 0.0, %v2712
      %v2714 = vpop.f32.mrf.mxu0
      %v2715 = vpop.f32.mrf.mxu0
      %v2716 = vadd.f32 0.0, %v2715
      %v2717 = vpop.f32.mrf.mxu0
      %2718 = vmatprep.mubr.bf16.mxu0 0
      %2719 = vmatmul.mubr.bf16.gmra.mxu0 %v2670
      %v2720 = vpop.f32.mrf.mxu0
      %v2721 = vadd.f32 0.0, %v2720
      %v2722 = vpop.f32.mrf.mxu0
      %v2723 = vpop.f32.mrf.mxu0
      %v2724 = vadd.f32 0.0, %v2723
      %v2725 = vpop.f32.mrf.mxu0
      %2726 = vmatprep.mubr.bf16.mxu0 0
      %2727 = vmatmul.mubr.bf16.gmra.mxu0 %v2673
      %v2728 = vpop.f32.mrf.mxu0
      %v2729 = vadd.f32 0.0, %v2728
      %v2730 = vpop.f32.mrf.mxu0
      %v2731 = vpop.f32.mrf.mxu0
      %v2732 = vadd.f32 0.0, %v2731
      %v2733 = vpop.f32.mrf.mxu0
      %2734 = vmatprep.mubr.bf16.mxu0 0
      %2735 = vmatmul.mubr.bf16.gmra.mxu0 %v2676
      %v2736 = vpop.f32.mrf.mxu0
      %v2737 = vadd.f32 0.0, %v2736
      %v2738 = vpop.f32.mrf.mxu0
      %v2739 = vpop.f32.mrf.mxu0
      %v2740 = vadd.f32 0.0, %v2739
      %v2741 = vpop.f32.mrf.mxu0
      %2742 = vdwg.mxu0
      %2743 = vrot.lane.b32.xlu0 %v520, 56
      %v2744 = vpop.permute.xlu0 %2743
      %2745 = vrot.lane.b32.xlu0 %v521, 56
      %v2746 = vpop.permute.xlu0 %2745
      %2747 = vrot.lane.b32.xlu0 %v522, 56
      %v2748 = vpop.permute.xlu0 %2747
      %2749 = vrot.lane.b32.xlu0 %v523, 56
      %v2750 = vpop.permute.xlu0 %2749
      %v2756 = vsel %vm937, %v2472, 0
      %v2759 = vsel %vm937, %v2473, 0
      %v2762 = vsel %vm937, %v2474, 0
      %v2765 = vsel %vm937, %v2475, 0
      %2767 = vmatprep.subr.bf16.mxu0 0
      %2768 = vmatpush1.bf16.msra.mxu0 0
      %2769 = vmatprep.subr.bf16.mxu0 0
      %2770 = vmatpush1.bf16.msra.mxu0 0
      %2771 = vmatprep.subr.bf16.mxu0 0
      %2772 = vmatpush1.bf16.msra.mxu0 0
      %2773 = vmatprep.subr.bf16.mxu0 0
      %2774 = vmatpush1.bf16.msra.mxu0 0
      %2775 = vmatprep.subr.bf16.mxu0 0
      %2776 = vmatpush1.bf16.msra.mxu0 %v2750
      %2777 = vmatprep.subr.bf16.mxu0 0
      %2778 = vmatpush1.bf16.msra.mxu0 %v2748
      %2779 = vmatprep.subr.bf16.mxu0 0
      %2780 = vmatpush1.bf16.msra.mxu0 %v2746
      %2781 = vmatprep.subr.bf16.mxu0 0
      %2782 = vmatpush1.bf16.msra.mxu0 %v2744
      %2783 = vmatprep.subr.bf16.mxu0 0
      %2784 = vmatpush2.bf16.msra.mxu0 0
      %2785 = vmatprep.subr.bf16.mxu0 0
      %2786 = vmatpush2.bf16.msra.mxu0 0
      %2787 = vmatprep.subr.bf16.mxu0 0
      %2788 = vmatpush2.bf16.msra.mxu0 0
      %2789 = vmatprep.subr.bf16.mxu0 0
      %2790 = vmatpush2.bf16.msra.mxu0 0
      %2791 = vmatprep.subr.bf16.mxu0 0
      %2792 = vmatpush2.bf16.msra.mxu0 0
      %2793 = vmatprep.subr.bf16.mxu0 0
      %2794 = vmatpush2.bf16.msra.mxu0 0
      %2795 = vmatprep.subr.bf16.mxu0 0
      %2796 = vmatpush2.bf16.msra.mxu0 0
      %2797 = vmatprep.subr.bf16.mxu0 0
      %2798 = vmatpush2.bf16.msra.mxu0 0
      %2799 = vmatprep.mubr.bf16.mxu0 0
      %2800 = vmatmul.mubr.bf16.gmra.mxu0 %v2756
      %v2801 = vpop.f32.mrf.mxu0
      %v2802 = vadd.f32 0.0, %v2801
      %v2803 = vpop.f32.mrf.mxu0
      %v2804 = vpop.f32.mrf.mxu0
      %v2805 = vadd.f32 0.0, %v2804
      %v2806 = vpop.f32.mrf.mxu0
      %2807 = vmatprep.mubr.bf16.mxu0 0
      %2808 = vmatmul.mubr.bf16.gmra.mxu0 %v2759
      %v2809 = vpop.f32.mrf.mxu0
      %v2810 = vadd.f32 0.0, %v2809
      %v2811 = vpop.f32.mrf.mxu0
      %v2812 = vpop.f32.mrf.mxu0
      %v2813 = vadd.f32 0.0, %v2812
      %v2814 = vpop.f32.mrf.mxu0
      %2815 = vmatprep.mubr.bf16.mxu0 0
      %2816 = vmatmul.mubr.bf16.gmra.mxu0 %v2762
      %v2817 = vpop.f32.mrf.mxu0
      %v2818 = vadd.f32 0.0, %v2817
      %v2819 = vpop.f32.mrf.mxu0
      %v2820 = vpop.f32.mrf.mxu0
      %v2821 = vadd.f32 0.0, %v2820
      %v2822 = vpop.f32.mrf.mxu0
      %2823 = vmatprep.mubr.bf16.mxu0 0
      %2824 = vmatmul.mubr.bf16.gmra.mxu0 %v2765
      %v2825 = vpop.f32.mrf.mxu0
      %v2826 = vadd.f32 0.0, %v2825
      %v2827 = vpop.f32.mrf.mxu0
      %v2828 = vpop.f32.mrf.mxu0
      %v2829 = vadd.f32 0.0, %v2828
      %v2830 = vpop.f32.mrf.mxu0
      %2831 = vdwg.mxu0
      %v2832 = vpack.c.bf16 %v2538, %v2535
      %v2833 = vpack.c.bf16 %v2546, %v2543
      %v2834 = vpack.c.bf16 %v2554, %v2551
      %v2835 = vpack.c.bf16 %v2562, %v2559
      %v2836 = vpack.c.bf16 %v2627, %v2624
      %v2837 = vpack.c.bf16 %v2635, %v2632
      %v2838 = vpack.c.bf16 %v2643, %v2640
      %v2839 = vpack.c.bf16 %v2651, %v2648
      %v2840 = vpack.c.bf16 %v2716, %v2713
      %v2841 = vpack.c.bf16 %v2724, %v2721
      %v2842 = vpack.c.bf16 %v2732, %v2729
      %v2843 = vpack.c.bf16 %v2740, %v2737
      %v2844 = vpack.c.bf16 %v2805, %v2802
      %v2845 = vpack.c.bf16 %v2813, %v2810
      %v2846 = vpack.c.bf16 %v2821, %v2818
      %v2847 = vpack.c.bf16 %v2829, %v2826
      %s2848 = scalar_lea.vmem %s2, 4
      %v2849 = vld [vmem:[%s2848] sm:$0xf]
      %v2851 = vsel %vm544, %v2832, 0
      %v2854 = vsel %vm544, %v2833, 0
      %v2857 = vsel %vm544, %v2834, 0
      %v2860 = vsel %vm544, %v2835, 0
      %v2863 = vsel %vm544, %v2836, 0
      %v2866 = vsel %vm544, %v2837, 0
      %v2869 = vsel %vm544, %v2838, 0
      %v2872 = vsel %vm544, %v2839, 0
      %v2875 = vsel %vm544, %v2840, 0
      %v2878 = vsel %vm544, %v2841, 0
      %v2881 = vsel %vm544, %v2842, 0
      %v2884 = vsel %vm544, %v2843, 0
      %v2887 = vsel %vm544, %v2844, 0
      %v2890 = vsel %vm544, %v2845, 0
      %v2893 = vsel %vm544, %v2846, 0
      %v2896 = vsel %vm544, %v2847, 0
      %vm2898 = vcmask 1043456
      %v2900 = vsel %vm2898, %v2849, 0
      %2902 = vmatprep.subr.bf16.mxu0 0
      %2903 = vmatpush1.bf16.msra.mxu0 0
      %2904 = vmatprep.subr.bf16.mxu0 0
      %2905 = vmatpush1.bf16.msra.mxu0 0
      %2906 = vmatprep.subr.bf16.mxu0 0
      %2907 = vmatpush1.bf16.msra.mxu0 0
      %2908 = vmatprep.subr.bf16.mxu0 0
      %2909 = vmatpush1.bf16.msra.mxu0 0
      %2910 = vmatprep.subr.bf16.mxu0 0
      %2911 = vmatpush1.bf16.msra.mxu0 0
      %2912 = vmatprep.subr.bf16.mxu0 0
      %2913 = vmatpush1.bf16.msra.mxu0 0
      %2914 = vmatprep.subr.bf16.mxu0 0
      %2915 = vmatpush1.bf16.msra.mxu0 0
      %2916 = vmatprep.subr.bf16.mxu0 0
      %2917 = vmatpush1.bf16.msra.mxu0 %v2900
      %2918 = vmatprep.subr.bf16.mxu0 0
      %2919 = vmatpush2.bf16.msra.mxu0 0
      %2920 = vmatprep.subr.bf16.mxu0 0
      %2921 = vmatpush2.bf16.msra.mxu0 0
      %2922 = vmatprep.subr.bf16.mxu0 0
      %2923 = vmatpush2.bf16.msra.mxu0 0
      %2924 = vmatprep.subr.bf16.mxu0 0
      %2925 = vmatpush2.bf16.msra.mxu0 0
      %2926 = vmatprep.subr.bf16.mxu0 0
      %2927 = vmatpush2.bf16.msra.mxu0 0
      %2928 = vmatprep.subr.bf16.mxu0 0
      %2929 = vmatpush2.bf16.msra.mxu0 0
      %2930 = vmatprep.subr.bf16.mxu0 0
      %2931 = vmatpush2.bf16.msra.mxu0 0
      %2932 = vmatprep.subr.bf16.mxu0 0
      %2933 = vmatpush2.bf16.msra.mxu0 0
      %2934 = vmatprep.mubr.bf16.mxu0 0
      %2935 = vmatmul.mubr.bf16.gmra.mxu0 %v2851
      %v2936 = vpop.f32.mrf.mxu0
      %v2937 = vadd.f32 0.0, %v2936
      %v2938 = vpop.f32.mrf.mxu0
      %v2939 = vpop.f32.mrf.mxu0
      %v2940 = vadd.f32 0.0, %v2939
      %v2941 = vpop.f32.mrf.mxu0
      %2942 = vmatprep.mubr.bf16.mxu0 0
      %2943 = vmatmul.mubr.bf16.gmra.mxu0 %v2854
      %v2944 = vpop.f32.mrf.mxu0
      %v2945 = vadd.f32 0.0, %v2944
      %v2946 = vpop.f32.mrf.mxu0
      %v2947 = vpop.f32.mrf.mxu0
      %v2948 = vadd.f32 0.0, %v2947
      %v2949 = vpop.f32.mrf.mxu0
      %2950 = vmatprep.mubr.bf16.mxu0 0
      %2951 = vmatmul.mubr.bf16.gmra.mxu0 %v2857
      %v2952 = vpop.f32.mrf.mxu0
      %v2953 = vadd.f32 0.0, %v2952
      %v2954 = vpop.f32.mrf.mxu0
      %v2955 = vpop.f32.mrf.mxu0
      %v2956 = vadd.f32 0.0, %v2955
      %v2957 = vpop.f32.mrf.mxu0
      %2958 = vmatprep.mubr.bf16.mxu0 0
      %2959 = vmatmul.mubr.bf16.gmra.mxu0 %v2860
      %v2960 = vpop.f32.mrf.mxu0
      %v2961 = vadd.f32 0.0, %v2960
      %v2962 = vpop.f32.mrf.mxu0
      %v2963 = vpop.f32.mrf.mxu0
      %v2964 = vadd.f32 0.0, %v2963
      %v2965 = vpop.f32.mrf.mxu0
      %2966 = vmatprep.mubr.bf16.mxu0 0
      %2967 = vmatmul.mubr.bf16.gmra.mxu0 %v2863
      %v2968 = vpop.f32.mrf.mxu0
      %v2969 = vadd.f32 0.0, %v2968
      %v2970 = vpop.f32.mrf.mxu0
      %v2971 = vpop.f32.mrf.mxu0
      %v2972 = vadd.f32 0.0, %v2971
      %v2973 = vpop.f32.mrf.mxu0
      %2974 = vmatprep.mubr.bf16.mxu0 0
      %2975 = vmatmul.mubr.bf16.gmra.mxu0 %v2866
      %v2976 = vpop.f32.mrf.mxu0
      %v2977 = vadd.f32 0.0, %v2976
      %v2978 = vpop.f32.mrf.mxu0
      %v2979 = vpop.f32.mrf.mxu0
      %v2980 = vadd.f32 0.0, %v2979
      %v2981 = vpop.f32.mrf.mxu0
      %2982 = vmatprep.mubr.bf16.mxu0 0
      %2983 = vmatmul.mubr.bf16.gmra.mxu0 %v2869
      %v2984 = vpop.f32.mrf.mxu0
      %v2985 = vadd.f32 0.0, %v2984
      %v2986 = vpop.f32.mrf.mxu0
      %v2987 = vpop.f32.mrf.mxu0
      %v2988 = vadd.f32 0.0, %v2987
      %v2989 = vpop.f32.mrf.mxu0
      %2990 = vmatprep.mubr.bf16.mxu0 0
      %2991 = vmatmul.mubr.bf16.gmra.mxu0 %v2872
      %v2992 = vpop.f32.mrf.mxu0
      %v2993 = vadd.f32 0.0, %v2992
      %v2994 = vpop.f32.mrf.mxu0
      %v2995 = vpop.f32.mrf.mxu0
      %v2996 = vadd.f32 0.0, %v2995
      %v2997 = vpop.f32.mrf.mxu0
      %2998 = vmatprep.mubr.bf16.mxu0 0
      %2999 = vmatmul.mubr.bf16.gmra.mxu0 %v2875
      %v3000 = vpop.f32.mrf.mxu0
      %v3001 = vadd.f32 0.0, %v3000
      %v3002 = vpop.f32.mrf.mxu0
      %v3003 = vpop.f32.mrf.mxu0
      %v3004 = vadd.f32 0.0, %v3003
      %v3005 = vpop.f32.mrf.mxu0
      %3006 = vmatprep.mubr.bf16.mxu0 0
      %3007 = vmatmul.mubr.bf16.gmra.mxu0 %v2878
      %v3008 = vpop.f32.mrf.mxu0
      %v3009 = vadd.f32 0.0, %v3008
      %v3010 = vpop.f32.mrf.mxu0
      %v3011 = vpop.f32.mrf.mxu0
      %v3012 = vadd.f32 0.0, %v3011
      %v3013 = vpop.f32.mrf.mxu0
      %3014 = vmatprep.mubr.bf16.mxu0 0
      %3015 = vmatmul.mubr.bf16.gmra.mxu0 %v2881
      %v3016 = vpop.f32.mrf.mxu0
      %v3017 = vadd.f32 0.0, %v3016
      %v3018 = vpop.f32.mrf.mxu0
      %v3019 = vpop.f32.mrf.mxu0
      %v3020 = vadd.f32 0.0, %v3019
      %v3021 = vpop.f32.mrf.mxu0
      %3022 = vmatprep.mubr.bf16.mxu0 0
      %3023 = vmatmul.mubr.bf16.gmra.mxu0 %v2884
      %v3024 = vpop.f32.mrf.mxu0
      %v3025 = vadd.f32 0.0, %v3024
      %v3026 = vpop.f32.mrf.mxu0
      %v3027 = vpop.f32.mrf.mxu0
      %v3028 = vadd.f32 0.0, %v3027
      %v3029 = vpop.f32.mrf.mxu0
      %3030 = vmatprep.mubr.bf16.mxu0 0
      %3031 = vmatmul.mubr.bf16.gmra.mxu0 %v2887
      %v3032 = vpop.f32.mrf.mxu0
      %v3033 = vadd.f32 0.0, %v3032
      %v3034 = vpop.f32.mrf.mxu0
      %v3035 = vpop.f32.mrf.mxu0
      %v3036 = vadd.f32 0.0, %v3035
      %v3037 = vpop.f32.mrf.mxu0
      %3038 = vmatprep.mubr.bf16.mxu0 0
      %3039 = vmatmul.mubr.bf16.gmra.mxu0 %v2890
      %v3040 = vpop.f32.mrf.mxu0
      %v3041 = vadd.f32 0.0, %v3040
      %v3042 = vpop.f32.mrf.mxu0
      %v3043 = vpop.f32.mrf.mxu0
      %v3044 = vadd.f32 0.0, %v3043
      %v3045 = vpop.f32.mrf.mxu0
      %3046 = vmatprep.mubr.bf16.mxu0 0
      %3047 = vmatmul.mubr.bf16.gmra.mxu0 %v2893
      %v3048 = vpop.f32.mrf.mxu0
      %v3049 = vadd.f32 0.0, %v3048
      %v3050 = vpop.f32.mrf.mxu0
      %v3051 = vpop.f32.mrf.mxu0
      %v3052 = vadd.f32 0.0, %v3051
      %v3053 = vpop.f32.mrf.mxu0
      %3054 = vmatprep.mubr.bf16.mxu0 0
      %3055 = vmatmul.mubr.bf16.gmra.mxu0 %v2896
      %v3056 = vpop.f32.mrf.mxu0
      %v3057 = vadd.f32 0.0, %v3056
      %v3058 = vpop.f32.mrf.mxu0
      %v3059 = vpop.f32.mrf.mxu0
      %v3060 = vadd.f32 0.0, %v3059
      %v3061 = vpop.f32.mrf.mxu0
      %3062 = vdwg.mxu0
      %v3064 = vsel %vm544, %v1662, 0
      %v3067 = vsel %vm544, %v1663, 0
      %v3070 = vsel %vm544, %v1664, 0
      %v3073 = vsel %vm544, %v1665, 0
      %v3076 = vsel %vm544, %v1666, 0
      %v3079 = vsel %vm544, %v1667, 0
      %v3082 = vsel %vm544, %v1668, 0
      %v3085 = vsel %vm544, %v1669, 0
      %v3088 = vsel %vm544, %v1670, 0
      %v3091 = vsel %vm544, %v1671, 0
      %v3094 = vsel %vm544, %v1672, 0
      %v3097 = vsel %vm544, %v1673, 0
      %v3100 = vsel %vm544, %v1674, 0
      %v3103 = vsel %vm544, %v1675, 0
      %v3106 = vsel %vm544, %v1676, 0
      %v3109 = vsel %vm544, %v1677, 0
      %v3112 = vsel %vm2898, %v1678, 0
      %3114 = vmatprep.subr.bf16.mxu0 0
      %3115 = vmatpush1.bf16.msra.mxu0 0
      %3116 = vmatprep.subr.bf16.mxu0 0
      %3117 = vmatpush1.bf16.msra.mxu0 0
      %3118 = vmatprep.subr.bf16.mxu0 0
      %3119 = vmatpush1.bf16.msra.mxu0 0
      %3120 = vmatprep.subr.bf16.mxu0 0
      %3121 = vmatpush1.bf16.msra.mxu0 0
      %3122 = vmatprep.subr.bf16.mxu0 0
      %3123 = vmatpush1.bf16.msra.mxu0 0
      %3124 = vmatprep.subr.bf16.mxu0 0
      %3125 = vmatpush1.bf16.msra.mxu0 0
      %3126 = vmatprep.subr.bf16.mxu0 0
      %3127 = vmatpush1.bf16.msra.mxu0 0
      %3128 = vmatprep.subr.bf16.mxu0 0
      %3129 = vmatpush1.bf16.msra.mxu0 %v3112
      %3130 = vmatprep.subr.bf16.mxu0 0
      %3131 = vmatpush2.bf16.msra.mxu0 0
      %3132 = vmatprep.subr.bf16.mxu0 0
      %3133 = vmatpush2.bf16.msra.mxu0 0
      %3134 = vmatprep.subr.bf16.mxu0 0
      %3135 = vmatpush2.bf16.msra.mxu0 0
      %3136 = vmatprep.subr.bf16.mxu0 0
      %3137 = vmatpush2.bf16.msra.mxu0 0
      %3138 = vmatprep.subr.bf16.mxu0 0
      %3139 = vmatpush2.bf16.msra.mxu0 0
      %3140 = vmatprep.subr.bf16.mxu0 0
      %3141 = vmatpush2.bf16.msra.mxu0 0
      %3142 = vmatprep.subr.bf16.mxu0 0
      %3143 = vmatpush2.bf16.msra.mxu0 0
      %3144 = vmatprep.subr.bf16.mxu0 0
      %3145 = vmatpush2.bf16.msra.mxu0 0
      %3146 = vmatprep.mubr.bf16.mxu0 0
      %3147 = vmatmul.mubr.bf16.gmra.mxu0 %v3064
      %v3148 = vpop.f32.mrf.mxu0
      %v3149 = vadd.f32 %v2937, %v3148
      %v3150 = vpop.f32.mrf.mxu0
      %v3151 = vpop.f32.mrf.mxu0
      %v3152 = vadd.f32 %v2940, %v3151
      %v3153 = vpop.f32.mrf.mxu0
      %3154 = vmatprep.mubr.bf16.mxu0 0
      %3155 = vmatmul.mubr.bf16.gmra.mxu0 %v3067
      %v3156 = vpop.f32.mrf.mxu0
      %v3157 = vadd.f32 %v2945, %v3156
      %v3158 = vpop.f32.mrf.mxu0
      %v3159 = vpop.f32.mrf.mxu0
      %v3160 = vadd.f32 %v2948, %v3159
      %v3161 = vpop.f32.mrf.mxu0
      %3162 = vmatprep.mubr.bf16.mxu0 0
      %3163 = vmatmul.mubr.bf16.gmra.mxu0 %v3070
      %v3164 = vpop.f32.mrf.mxu0
      %v3165 = vadd.f32 %v2953, %v3164
      %v3166 = vpop.f32.mrf.mxu0
      %v3167 = vpop.f32.mrf.mxu0
      %v3168 = vadd.f32 %v2956, %v3167
      %v3169 = vpop.f32.mrf.mxu0
      %3170 = vmatprep.mubr.bf16.mxu0 0
      %3171 = vmatmul.mubr.bf16.gmra.mxu0 %v3073
      %v3172 = vpop.f32.mrf.mxu0
      %v3173 = vadd.f32 %v2961, %v3172
      %v3174 = vpop.f32.mrf.mxu0
      %v3175 = vpop.f32.mrf.mxu0
      %v3176 = vadd.f32 %v2964, %v3175
      %v3177 = vpop.f32.mrf.mxu0
      %3178 = vmatprep.mubr.bf16.mxu0 0
      %3179 = vmatmul.mubr.bf16.gmra.mxu0 %v3076
      %v3180 = vpop.f32.mrf.mxu0
      %v3181 = vadd.f32 %v2969, %v3180
      %v3182 = vpop.f32.mrf.mxu0
      %v3183 = vpop.f32.mrf.mxu0
      %v3184 = vadd.f32 %v2972, %v3183
      %v3185 = vpop.f32.mrf.mxu0
      %3186 = vmatprep.mubr.bf16.mxu0 0
      %3187 = vmatmul.mubr.bf16.gmra.mxu0 %v3079
      %v3188 = vpop.f32.mrf.mxu0
      %v3189 = vadd.f32 %v2977, %v3188
      %v3190 = vpop.f32.mrf.mxu0
      %v3191 = vpop.f32.mrf.mxu0
      %v3192 = vadd.f32 %v2980, %v3191
      %v3193 = vpop.f32.mrf.mxu0
      %3194 = vmatprep.mubr.bf16.mxu0 0
      %3195 = vmatmul.mubr.bf16.gmra.mxu0 %v3082
      %v3196 = vpop.f32.mrf.mxu0
      %v3197 = vadd.f32 %v2985, %v3196
      %v3198 = vpop.f32.mrf.mxu0
      %v3199 = vpop.f32.mrf.mxu0
      %v3200 = vadd.f32 %v2988, %v3199
      %v3201 = vpop.f32.mrf.mxu0
      %3202 = vmatprep.mubr.bf16.mxu0 0
      %3203 = vmatmul.mubr.bf16.gmra.mxu0 %v3085
      %v3204 = vpop.f32.mrf.mxu0
      %v3205 = vadd.f32 %v2993, %v3204
      %v3206 = vpop.f32.mrf.mxu0
      %v3207 = vpop.f32.mrf.mxu0
      %v3208 = vadd.f32 %v2996, %v3207
      %v3209 = vpop.f32.mrf.mxu0
      %3210 = vmatprep.mubr.bf16.mxu0 0
      %3211 = vmatmul.mubr.bf16.gmra.mxu0 %v3088
      %v3212 = vpop.f32.mrf.mxu0
      %v3213 = vadd.f32 %v3001, %v3212
      %v3214 = vpop.f32.mrf.mxu0
      %v3215 = vpop.f32.mrf.mxu0
      %v3216 = vadd.f32 %v3004, %v3215
      %v3217 = vpop.f32.mrf.mxu0
      %3218 = vmatprep.mubr.bf16.mxu0 0
      %3219 = vmatmul.mubr.bf16.gmra.mxu0 %v3091
      %v3220 = vpop.f32.mrf.mxu0
      %v3221 = vadd.f32 %v3009, %v3220
      %v3222 = vpop.f32.mrf.mxu0
      %v3223 = vpop.f32.mrf.mxu0
      %v3224 = vadd.f32 %v3012, %v3223
      %v3225 = vpop.f32.mrf.mxu0
      %3226 = vmatprep.mubr.bf16.mxu0 0
      %3227 = vmatmul.mubr.bf16.gmra.mxu0 %v3094
      %v3228 = vpop.f32.mrf.mxu0
      %v3229 = vadd.f32 %v3017, %v3228
      %v3230 = vpop.f32.mrf.mxu0
      %v3231 = vpop.f32.mrf.mxu0
      %v3232 = vadd.f32 %v3020, %v3231
      %v3233 = vpop.f32.mrf.mxu0
      %3234 = vmatprep.mubr.bf16.mxu0 0
      %3235 = vmatmul.mubr.bf16.gmra.mxu0 %v3097
      %v3236 = vpop.f32.mrf.mxu0
      %v3237 = vadd.f32 %v3025, %v3236
      %v3238 = vpop.f32.mrf.mxu0
      %v3239 = vpop.f32.mrf.mxu0
      %v3240 = vadd.f32 %v3028, %v3239
      %v3241 = vpop.f32.mrf.mxu0
      %3242 = vmatprep.mubr.bf16.mxu0 0
      %3243 = vmatmul.mubr.bf16.gmra.mxu0 %v3100
      %v3244 = vpop.f32.mrf.mxu0
      %v3245 = vadd.f32 %v3033, %v3244
      %v3246 = vpop.f32.mrf.mxu0
      %v3247 = vpop.f32.mrf.mxu0
      %v3248 = vadd.f32 %v3036, %v3247
      %v3249 = vpop.f32.mrf.mxu0
      %3250 = vmatprep.mubr.bf16.mxu0 0
      %3251 = vmatmul.mubr.bf16.gmra.mxu0 %v3103
      %v3252 = vpop.f32.mrf.mxu0
      %v3253 = vadd.f32 %v3041, %v3252
      %v3254 = vpop.f32.mrf.mxu0
      %v3255 = vpop.f32.mrf.mxu0
      %v3256 = vadd.f32 %v3044, %v3255
      %v3257 = vpop.f32.mrf.mxu0
      %3258 = vmatprep.mubr.bf16.mxu0 0
      %3259 = vmatmul.mubr.bf16.gmra.mxu0 %v3106
      %v3260 = vpop.f32.mrf.mxu0
      %v3261 = vadd.f32 %v3049, %v3260
      %v3262 = vpop.f32.mrf.mxu0
      %v3263 = vpop.f32.mrf.mxu0
      %v3264 = vadd.f32 %v3052, %v3263
      %v3265 = vpop.f32.mrf.mxu0
      %3266 = vmatprep.mubr.bf16.mxu0 0
      %3267 = vmatmul.mubr.bf16.gmra.mxu0 %v3109
      %v3268 = vpop.f32.mrf.mxu0
      %v3269 = vadd.f32 %v3057, %v3268
      %v3270 = vpop.f32.mrf.mxu0
      %v3271 = vpop.f32.mrf.mxu0
      %v3272 = vadd.f32 %v3060, %v3271
      %v3273 = vpop.f32.mrf.mxu0
      %3274 = vdwg.mxu0
      %s3275 = scalar_lea.vmem %s4, 128
      %v3276 = vld [vmem:[%s3275] sm:$0xff]
      %v3277 = vld [vmem:[%s3275 + $0x8] sm:$0xff]
      %v3278 = vld [vmem:[%s3275 + $0x10] sm:$0xff]
      %v3279 = vld [vmem:[%s3275 + $0x18] sm:$0xff]
      %v3280 = vld [vmem:[%s3275 + $0x20] sm:$0xff]
      %v3281 = vld [vmem:[%s3275 + $0x28] sm:$0xff]
      %v3282 = vld [vmem:[%s3275 + $0x30] sm:$0xff]
      %v3283 = vld [vmem:[%s3275 + $0x38] sm:$0xff]
      %3284 = vrot.lane.b32.xlu0 %v508, 112
      %v3285 = vpop.permute.xlu0 %3284
      %3286 = vrot.lane.b32.xlu0 %v509, 112
      %v3287 = vpop.permute.xlu0 %3286
      %3288 = vrot.lane.b32.xlu0 %v510, 112
      %v3289 = vpop.permute.xlu0 %3288
      %3290 = vrot.lane.b32.xlu0 %v511, 112
      %v3291 = vpop.permute.xlu0 %3290
      %3292 = vrot.lane.b32.xlu0 %v508, 80
      %v3293 = vpop.permute.xlu0 %3292
      %3294 = vrot.lane.b32.xlu0 %v509, 80
      %v3295 = vpop.permute.xlu0 %3294
      %3296 = vrot.lane.b32.xlu0 %v510, 80
      %v3297 = vpop.permute.xlu0 %3296
      %3298 = vrot.lane.b32.xlu0 %v511, 80
      %v3299 = vpop.permute.xlu0 %3298
      %v3301 = vsel %vm544, %v3285, 0
      %v3304 = vsel %vm544, %v3287, 0
      %v3307 = vsel %vm544, %v3289, 0
      %v3310 = vsel %vm544, %v3291, 0
      %v3313 = vsel %vm544, %v3293, 0
      %v3316 = vsel %vm544, %v3295, 0
      %v3319 = vsel %vm544, %v3297, 0
      %v3322 = vsel %vm544, %v3299, 0
      %3324 = vmatprep.subr.bf16.mxu0 0
      %3325 = vmatpush1.bf16.xpose.msra.mxu0 0
      %3326 = vmatprep.subr.bf16.mxu0 0
      %3327 = vmatpush1.bf16.xpose.msra.mxu0 0
      %3328 = vmatprep.subr.bf16.mxu0 0
      %3329 = vmatpush1.bf16.xpose.msra.mxu0 0
      %3330 = vmatprep.subr.bf16.mxu0 0
      %3331 = vmatpush1.bf16.xpose.msra.mxu0 0
      %3332 = vmatprep.subr.bf16.mxu0 0
      %3333 = vmatpush1.bf16.xpose.msra.mxu0 %v3322
      %3334 = vmatprep.subr.bf16.mxu0 0
      %3335 = vmatpush1.bf16.xpose.msra.mxu0 %v3319
      %3336 = vmatprep.subr.bf16.mxu0 0
      %3337 = vmatpush1.bf16.xpose.msra.mxu0 %v3316
      %3338 = vmatprep.subr.bf16.mxu0 0
      %3339 = vmatpush1.bf16.xpose.msra.mxu0 %v3313
      %3340 = vmatprep.subr.bf16.mxu0 0
      %3341 = vmatpush2.bf16.xpose.msra.mxu0 0
      %3342 = vmatprep.subr.bf16.mxu0 0
      %3343 = vmatpush2.bf16.xpose.msra.mxu0 0
      %3344 = vmatprep.subr.bf16.mxu0 0
      %3345 = vmatpush2.bf16.xpose.msra.mxu0 0
      %3346 = vmatprep.subr.bf16.mxu0 0
      %3347 = vmatpush2.bf16.xpose.msra.mxu0 0
      %3348 = vmatprep.subr.bf16.mxu0 0
      %3349 = vmatpush2.bf16.xpose.msra.mxu0 0
      %3350 = vmatprep.subr.bf16.mxu0 0
      %3351 = vmatpush2.bf16.xpose.msra.mxu0 0
      %3352 = vmatprep.subr.bf16.mxu0 0
      %3353 = vmatpush2.bf16.xpose.msra.mxu0 0
      %3354 = vmatprep.subr.bf16.mxu0 0
      %3355 = vmatpush2.bf16.xpose.msra.mxu0 0
      %3356 = vmatprep.mubr.bf16.mxu0 0
      %3357 = vmatmul.mubr.bf16.gmra.mxu0 %v3301
      %v3358 = vpop.f32.mrf.mxu0
      %v3359 = vadd.f32 %v3276, %v3358
      %v3360 = vpop.f32.mrf.mxu0
      %v3361 = vpop.f32.mrf.mxu0
      %v3362 = vadd.f32 %v3277, %v3361
      %v3363 = vpop.f32.mrf.mxu0
      %3364 = vmatprep.mubr.bf16.mxu0 0
      %3365 = vmatmul.mubr.bf16.gmra.mxu0 %v3304
      %v3366 = vpop.f32.mrf.mxu0
      %v3367 = vadd.f32 %v3278, %v3366
      %v3368 = vpop.f32.mrf.mxu0
      %v3369 = vpop.f32.mrf.mxu0
      %v3370 = vadd.f32 %v3279, %v3369
      %v3371 = vpop.f32.mrf.mxu0
      %3372 = vmatprep.mubr.bf16.mxu0 0
      %3373 = vmatmul.mubr.bf16.gmra.mxu0 %v3307
      %v3374 = vpop.f32.mrf.mxu0
      %v3375 = vadd.f32 %v3280, %v3374
      %v3376 = vpop.f32.mrf.mxu0
      %v3377 = vpop.f32.mrf.mxu0
      %v3378 = vadd.f32 %v3281, %v3377
      %v3379 = vpop.f32.mrf.mxu0
      %3380 = vmatprep.mubr.bf16.mxu0 0
      %3381 = vmatmul.mubr.bf16.gmra.mxu0 %v3310
      %v3382 = vpop.f32.mrf.mxu0
      %v3383 = vadd.f32 %v3282, %v3382
      %v3384 = vpop.f32.mrf.mxu0
      %v3385 = vpop.f32.mrf.mxu0
      %v3386 = vadd.f32 %v3283, %v3385
      %v3387 = vpop.f32.mrf.mxu0
      %3388 = vdwg.mxu0
      %3389 = vrot.lane.b32.xlu0 %v512, 112
      %v3390 = vpop.permute.xlu0 %3389
      %3391 = vrot.lane.b32.xlu0 %v513, 112
      %v3392 = vpop.permute.xlu0 %3391
      %3393 = vrot.lane.b32.xlu0 %v514, 112
      %v3394 = vpop.permute.xlu0 %3393
      %3395 = vrot.lane.b32.xlu0 %v515, 112
      %v3396 = vpop.permute.xlu0 %3395
      %3397 = vrot.lane.b32.xlu0 %v512, 80
      %v3398 = vpop.permute.xlu0 %3397
      %3399 = vrot.lane.b32.xlu0 %v513, 80
      %v3400 = vpop.permute.xlu0 %3399
      %3401 = vrot.lane.b32.xlu0 %v514, 80
      %v3402 = vpop.permute.xlu0 %3401
      %3403 = vrot.lane.b32.xlu0 %v515, 80
      %v3404 = vpop.permute.xlu0 %3403
      %v3406 = vsel %vm544, %v3390, 0
      %v3409 = vsel %vm544, %v3392, 0
      %v3412 = vsel %vm544, %v3394, 0
      %v3415 = vsel %vm544, %v3396, 0
      %v3418 = vsel %vm544, %v3398, 0
      %v3421 = vsel %vm544, %v3400, 0
      %v3424 = vsel %vm544, %v3402, 0
      %v3427 = vsel %vm544, %v3404, 0
      %3429 = vmatprep.subr.bf16.mxu0 0
      %3430 = vmatpush1.bf16.xpose.msra.mxu0 0
      %3431 = vmatprep.subr.bf16.mxu0 0
      %3432 = vmatpush1.bf16.xpose.msra.mxu0 0
      %3433 = vmatprep.subr.bf16.mxu0 0
      %3434 = vmatpush1.bf16.xpose.msra.mxu0 0
      %3435 = vmatprep.subr.bf16.mxu0 0
      %3436 = vmatpush1.bf16.xpose.msra.mxu0 0
      %3437 = vmatprep.subr.bf16.mxu0 0
      %3438 = vmatpush1.bf16.xpose.msra.mxu0 %v3427
      %3439 = vmatprep.subr.bf16.mxu0 0
      %3440 = vmatpush1.bf16.xpose.msra.mxu0 %v3424
      %3441 = vmatprep.subr.bf16.mxu0 0
      %3442 = vmatpush1.bf16.xpose.msra.mxu0 %v3421
      %3443 = vmatprep.subr.bf16.mxu0 0
      %3444 = vmatpush1.bf16.xpose.msra.mxu0 %v3418
      %3445 = vmatprep.subr.bf16.mxu0 0
      %3446 = vmatpush2.bf16.xpose.msra.mxu0 0
      %3447 = vmatprep.subr.bf16.mxu0 0
      %3448 = vmatpush2.bf16.xpose.msra.mxu0 0
      %3449 = vmatprep.subr.bf16.mxu0 0
      %3450 = vmatpush2.bf16.xpose.msra.mxu0 0
      %3451 = vmatprep.subr.bf16.mxu0 0
      %3452 = vmatpush2.bf16.xpose.msra.mxu0 0
      %3453 = vmatprep.subr.bf16.mxu0 0
      %3454 = vmatpush2.bf16.xpose.msra.mxu0 0
      %3455 = vmatprep.subr.bf16.mxu0 0
      %3456 = vmatpush2.bf16.xpose.msra.mxu0 0
      %3457 = vmatprep.subr.bf16.mxu0 0
      %3458 = vmatpush2.bf16.xpose.msra.mxu0 0
      %3459 = vmatprep.subr.bf16.mxu0 0
      %3460 = vmatpush2.bf16.xpose.msra.mxu0 0
      %3461 = vmatprep.mubr.bf16.mxu0 0
      %3462 = vmatmul.mubr.bf16.gmra.mxu0 %v3406
      %v3463 = vpop.f32.mrf.mxu0
      %v3464 = vadd.f32 %v3276, %v3463
      %v3465 = vpop.f32.mrf.mxu0
      %v3466 = vpop.f32.mrf.mxu0
      %v3467 = vadd.f32 %v3277, %v3466
      %v3468 = vpop.f32.mrf.mxu0
      %3469 = vmatprep.mubr.bf16.mxu0 0
      %3470 = vmatmul.mubr.bf16.gmra.mxu0 %v3409
      %v3471 = vpop.f32.mrf.mxu0
      %v3472 = vadd.f32 %v3278, %v3471
      %v3473 = vpop.f32.mrf.mxu0
      %v3474 = vpop.f32.mrf.mxu0
      %v3475 = vadd.f32 %v3279, %v3474
      %v3476 = vpop.f32.mrf.mxu0
      %3477 = vmatprep.mubr.bf16.mxu0 0
      %3478 = vmatmul.mubr.bf16.gmra.mxu0 %v3412
      %v3479 = vpop.f32.mrf.mxu0
      %v3480 = vadd.f32 %v3280, %v3479
      %v3481 = vpop.f32.mrf.mxu0
      %v3482 = vpop.f32.mrf.mxu0
      %v3483 = vadd.f32 %v3281, %v3482
      %v3484 = vpop.f32.mrf.mxu0
      %3485 = vmatprep.mubr.bf16.mxu0 0
      %3486 = vmatmul.mubr.bf16.gmra.mxu0 %v3415
      %v3487 = vpop.f32.mrf.mxu0
      %v3488 = vadd.f32 %v3282, %v3487
      %v3489 = vpop.f32.mrf.mxu0
      %v3490 = vpop.f32.mrf.mxu0
      %v3491 = vadd.f32 %v3283, %v3490
      %v3492 = vpop.f32.mrf.mxu0
      %3493 = vdwg.mxu0
      %3494 = vrot.lane.b32.xlu0 %v516, 112
      %v3495 = vpop.permute.xlu0 %3494
      %3496 = vrot.lane.b32.xlu0 %v517, 112
      %v3497 = vpop.permute.xlu0 %3496
      %3498 = vrot.lane.b32.xlu0 %v518, 112
      %v3499 = vpop.permute.xlu0 %3498
      %3500 = vrot.lane.b32.xlu0 %v519, 112
      %v3501 = vpop.permute.xlu0 %3500
      %3502 = vrot.lane.b32.xlu0 %v516, 80
      %v3503 = vpop.permute.xlu0 %3502
      %3504 = vrot.lane.b32.xlu0 %v517, 80
      %v3505 = vpop.permute.xlu0 %3504
      %3506 = vrot.lane.b32.xlu0 %v518, 80
      %v3507 = vpop.permute.xlu0 %3506
      %3508 = vrot.lane.b32.xlu0 %v519, 80
      %v3509 = vpop.permute.xlu0 %3508
      %v3511 = vsel %vm544, %v3495, 0
      %v3514 = vsel %vm544, %v3497, 0
      %v3517 = vsel %vm544, %v3499, 0
      %v3520 = vsel %vm544, %v3501, 0
      %v3523 = vsel %vm544, %v3503, 0
      %v3526 = vsel %vm544, %v3505, 0
      %v3529 = vsel %vm544, %v3507, 0
      %v3532 = vsel %vm544, %v3509, 0
      %3534 = vmatprep.subr.bf16.mxu0 0
      %3535 = vmatpush1.bf16.xpose.msra.mxu0 0
      %3536 = vmatprep.subr.bf16.mxu0 0
      %3537 = vmatpush1.bf16.xpose.msra.mxu0 0
      %3538 = vmatprep.subr.bf16.mxu0 0
      %3539 = vmatpush1.bf16.xpose.msra.mxu0 0
      %3540 = vmatprep.subr.bf16.mxu0 0
      %3541 = vmatpush1.bf16.xpose.msra.mxu0 0
      %3542 = vmatprep.subr.bf16.mxu0 0
      %3543 = vmatpush1.bf16.xpose.msra.mxu0 %v3532
      %3544 = vmatprep.subr.bf16.mxu0 0
      %3545 = vmatpush1.bf16.xpose.msra.mxu0 %v3529
      %3546 = vmatprep.subr.bf16.mxu0 0
      %3547 = vmatpush1.bf16.xpose.msra.mxu0 %v3526
      %3548 = vmatprep.subr.bf16.mxu0 0
      %3549 = vmatpush1.bf16.xpose.msra.mxu0 %v3523
      %3550 = vmatprep.subr.bf16.mxu0 0
      %3551 = vmatpush2.bf16.xpose.msra.mxu0 0
      %3552 = vmatprep.subr.bf16.mxu0 0
      %3553 = vmatpush2.bf16.xpose.msra.mxu0 0
      %3554 = vmatprep.subr.bf16.mxu0 0
      %3555 = vmatpush2.bf16.xpose.msra.mxu0 0
      %3556 = vmatprep.subr.bf16.mxu0 0
      %3557 = vmatpush2.bf16.xpose.msra.mxu0 0
      %3558 = vmatprep.subr.bf16.mxu0 0
      %3559 = vmatpush2.bf16.xpose.msra.mxu0 0
      %3560 = vmatprep.subr.bf16.mxu0 0
      %3561 = vmatpush2.bf16.xpose.msra.mxu0 0
      %3562 = vmatprep.subr.bf16.mxu0 0
      %3563 = vmatpush2.bf16.xpose.msra.mxu0 0
      %3564 = vmatprep.subr.bf16.mxu0 0
      %3565 = vmatpush2.bf16.xpose.msra.mxu0 0
      %3566 = vmatprep.mubr.bf16.mxu0 0
      %3567 = vmatmul.mubr.bf16.gmra.mxu0 %v3511
      %v3568 = vpop.f32.mrf.mxu0
      %v3569 = vadd.f32 %v3276, %v3568
      %v3570 = vpop.f32.mrf.mxu0
      %v3571 = vpop.f32.mrf.mxu0
      %v3572 = vadd.f32 %v3277, %v3571
      %v3573 = vpop.f32.mrf.mxu0
      %3574 = vmatprep.mubr.bf16.mxu0 0
      %3575 = vmatmul.mubr.bf16.gmra.mxu0 %v3514
      %v3576 = vpop.f32.mrf.mxu0
      %v3577 = vadd.f32 %v3278, %v3576
      %v3578 = vpop.f32.mrf.mxu0
      %v3579 = vpop.f32.mrf.mxu0
      %v3580 = vadd.f32 %v3279, %v3579
      %v3581 = vpop.f32.mrf.mxu0
      %3582 = vmatprep.mubr.bf16.mxu0 0
      %3583 = vmatmul.mubr.bf16.gmra.mxu0 %v3517
      %v3584 = vpop.f32.mrf.mxu0
      %v3585 = vadd.f32 %v3280, %v3584
      %v3586 = vpop.f32.mrf.mxu0
      %v3587 = vpop.f32.mrf.mxu0
      %v3588 = vadd.f32 %v3281, %v3587
      %v3589 = vpop.f32.mrf.mxu0
      %3590 = vmatprep.mubr.bf16.mxu0 0
      %3591 = vmatmul.mubr.bf16.gmra.mxu0 %v3520
      %v3592 = vpop.f32.mrf.mxu0
      %v3593 = vadd.f32 %v3282, %v3592
      %v3594 = vpop.f32.mrf.mxu0
      %v3595 = vpop.f32.mrf.mxu0
      %v3596 = vadd.f32 %v3283, %v3595
      %v3597 = vpop.f32.mrf.mxu0
      %3598 = vdwg.mxu0
      %3599 = vrot.lane.b32.xlu0 %v520, 112
      %v3600 = vpop.permute.xlu0 %3599
      %3601 = vrot.lane.b32.xlu0 %v521, 112
      %v3602 = vpop.permute.xlu0 %3601
      %3603 = vrot.lane.b32.xlu0 %v522, 112
      %v3604 = vpop.permute.xlu0 %3603
      %3605 = vrot.lane.b32.xlu0 %v523, 112
      %v3606 = vpop.permute.xlu0 %3605
      %3607 = vrot.lane.b32.xlu0 %v520, 80
      %v3608 = vpop.permute.xlu0 %3607
      %3609 = vrot.lane.b32.xlu0 %v521, 80
      %v3610 = vpop.permute.xlu0 %3609
      %3611 = vrot.lane.b32.xlu0 %v522, 80
      %v3612 = vpop.permute.xlu0 %3611
      %3613 = vrot.lane.b32.xlu0 %v523, 80
      %v3614 = vpop.permute.xlu0 %3613
      %v3616 = vsel %vm544, %v3600, 0
      %v3619 = vsel %vm544, %v3602, 0
      %v3622 = vsel %vm544, %v3604, 0
      %v3625 = vsel %vm544, %v3606, 0
      %v3628 = vsel %vm544, %v3608, 0
      %v3631 = vsel %vm544, %v3610, 0
      %v3634 = vsel %vm544, %v3612, 0
      %v3637 = vsel %vm544, %v3614, 0
      %3639 = vmatprep.subr.bf16.mxu0 0
      %3640 = vmatpush1.bf16.xpose.msra.mxu0 0
      %3641 = vmatprep.subr.bf16.mxu0 0
      %3642 = vmatpush1.bf16.xpose.msra.mxu0 0
      %3643 = vmatprep.subr.bf16.mxu0 0
      %3644 = vmatpush1.bf16.xpose.msra.mxu0 0
      %3645 = vmatprep.subr.bf16.mxu0 0
      %3646 = vmatpush1.bf16.xpose.msra.mxu0 0
      %3647 = vmatprep.subr.bf16.mxu0 0
      %3648 = vmatpush1.bf16.xpose.msra.mxu0 %v3637
      %3649 = vmatprep.subr.bf16.mxu0 0
      %3650 = vmatpush1.bf16.xpose.msra.mxu0 %v3634
      %3651 = vmatprep.subr.bf16.mxu0 0
      %3652 = vmatpush1.bf16.xpose.msra.mxu0 %v3631
      %3653 = vmatprep.subr.bf16.mxu0 0
      %3654 = vmatpush1.bf16.xpose.msra.mxu0 %v3628
      %3655 = vmatprep.subr.bf16.mxu0 0
      %3656 = vmatpush2.bf16.xpose.msra.mxu0 0
      %3657 = vmatprep.subr.bf16.mxu0 0
      %3658 = vmatpush2.bf16.xpose.msra.mxu0 0
      %3659 = vmatprep.subr.bf16.mxu0 0
      %3660 = vmatpush2.bf16.xpose.msra.mxu0 0
      %3661 = vmatprep.subr.bf16.mxu0 0
      %3662 = vmatpush2.bf16.xpose.msra.mxu0 0
      %3663 = vmatprep.subr.bf16.mxu0 0
      %3664 = vmatpush2.bf16.xpose.msra.mxu0 0
      %3665 = vmatprep.subr.bf16.mxu0 0
      %3666 = vmatpush2.bf16.xpose.msra.mxu0 0
      %3667 = vmatprep.subr.bf16.mxu0 0
      %3668 = vmatpush2.bf16.xpose.msra.mxu0 0
      %3669 = vmatprep.subr.bf16.mxu0 0
      %3670 = vmatpush2.bf16.xpose.msra.mxu0 0
      %3671 = vmatprep.mubr.bf16.mxu0 0
      %3672 = vmatmul.mubr.bf16.gmra.mxu0 %v3616
      %v3673 = vpop.f32.mrf.mxu0
      %v3674 = vadd.f32 %v3276, %v3673
      %v3675 = vpop.f32.mrf.mxu0
      %v3676 = vpop.f32.mrf.mxu0
      %v3677 = vadd.f32 %v3277, %v3676
      %v3678 = vpop.f32.mrf.mxu0
      %3679 = vmatprep.mubr.bf16.mxu0 0
      %3680 = vmatmul.mubr.bf16.gmra.mxu0 %v3619
      %v3681 = vpop.f32.mrf.mxu0
      %v3682 = vadd.f32 %v3278, %v3681
      %v3683 = vpop.f32.mrf.mxu0
      %v3684 = vpop.f32.mrf.mxu0
      %v3685 = vadd.f32 %v3279, %v3684
      %v3686 = vpop.f32.mrf.mxu0
      %3687 = vmatprep.mubr.bf16.mxu0 0
      %3688 = vmatmul.mubr.bf16.gmra.mxu0 %v3622
      %v3689 = vpop.f32.mrf.mxu0
      %v3690 = vadd.f32 %v3280, %v3689
      %v3691 = vpop.f32.mrf.mxu0
      %v3692 = vpop.f32.mrf.mxu0
      %v3693 = vadd.f32 %v3281, %v3692
      %v3694 = vpop.f32.mrf.mxu0
      %3695 = vmatprep.mubr.bf16.mxu0 0
      %3696 = vmatmul.mubr.bf16.gmra.mxu0 %v3625
      %v3697 = vpop.f32.mrf.mxu0
      %v3698 = vadd.f32 %v3282, %v3697
      %v3699 = vpop.f32.mrf.mxu0
      %v3700 = vpop.f32.mrf.mxu0
      %v3701 = vadd.f32 %v3283, %v3700
      %v3702 = vpop.f32.mrf.mxu0
      %3703 = vdwg.mxu0
      %v3704 = vsel %vm937, %v3359, -inf
      %3705 = vmax.xlane.f32.xlu0 %v3704
      %v3706 = vpop.xlane.xlu0 %3705
      %v3707 = vsel %vm937, %v3362, -inf
      %3708 = vmax.xlane.f32.xlu0 %v3707
      %v3709 = vpop.xlane.xlu0 %3708
      %v3710 = vsel %vm937, %v3367, -inf
      %3711 = vmax.xlane.f32.xlu0 %v3710
      %v3712 = vpop.xlane.xlu0 %3711
      %v3713 = vsel %vm937, %v3370, -inf
      %3714 = vmax.xlane.f32.xlu0 %v3713
      %v3715 = vpop.xlane.xlu0 %3714
      %v3716 = vsel %vm937, %v3375, -inf
      %3717 = vmax.xlane.f32.xlu0 %v3716
      %v3718 = vpop.xlane.xlu0 %3717
      %v3719 = vsel %vm937, %v3378, -inf
      %3720 = vmax.xlane.f32.xlu0 %v3719
      %v3721 = vpop.xlane.xlu0 %3720
      %v3722 = vsel %vm937, %v3383, -inf
      %3723 = vmax.xlane.f32.xlu0 %v3722
      %v3724 = vpop.xlane.xlu0 %3723
      %v3725 = vsel %vm937, %v3386, -inf
      %3726 = vmax.xlane.f32.xlu0 %v3725
      %v3727 = vpop.xlane.xlu0 %3726
      %v3728 = vsel %vm937, %v3464, -inf
      %3729 = vmax.xlane.f32.xlu0 %v3728
      %v3730 = vpop.xlane.xlu0 %3729
      %v3731 = vsel %vm937, %v3467, -inf
      %3732 = vmax.xlane.f32.xlu0 %v3731
      %v3733 = vpop.xlane.xlu0 %3732
      %v3734 = vsel %vm937, %v3472, -inf
      %3735 = vmax.xlane.f32.xlu0 %v3734
      %v3736 = vpop.xlane.xlu0 %3735
      %v3737 = vsel %vm937, %v3475, -inf
      %3738 = vmax.xlane.f32.xlu0 %v3737
      %v3739 = vpop.xlane.xlu0 %3738
      %v3740 = vsel %vm937, %v3480, -inf
      %3741 = vmax.xlane.f32.xlu0 %v3740
      %v3742 = vpop.xlane.xlu0 %3741
      %v3743 = vsel %vm937, %v3483, -inf
      %3744 = vmax.xlane.f32.xlu0 %v3743
      %v3745 = vpop.xlane.xlu0 %3744
      %v3746 = vsel %vm937, %v3488, -inf
      %3747 = vmax.xlane.f32.xlu0 %v3746
      %v3748 = vpop.xlane.xlu0 %3747
      %v3749 = vsel %vm937, %v3491, -inf
      %3750 = vmax.xlane.f32.xlu0 %v3749
      %v3751 = vpop.xlane.xlu0 %3750
      %v3752 = vsel %vm937, %v3569, -inf
      %3753 = vmax.xlane.f32.xlu0 %v3752
      %v3754 = vpop.xlane.xlu0 %3753
      %v3755 = vsel %vm937, %v3572, -inf
      %3756 = vmax.xlane.f32.xlu0 %v3755
      %v3757 = vpop.xlane.xlu0 %3756
      %v3758 = vsel %vm937, %v3577, -inf
      %3759 = vmax.xlane.f32.xlu0 %v3758
      %v3760 = vpop.xlane.xlu0 %3759
      %v3761 = vsel %vm937, %v3580, -inf
      %3762 = vmax.xlane.f32.xlu0 %v3761
      %v3763 = vpop.xlane.xlu0 %3762
      %v3764 = vsel %vm937, %v3585, -inf
      %3765 = vmax.xlane.f32.xlu0 %v3764
      %v3766 = vpop.xlane.xlu0 %3765
      %v3767 = vsel %vm937, %v3588, -inf
      %3768 = vmax.xlane.f32.xlu0 %v3767
      %v3769 = vpop.xlane.xlu0 %3768
      %v3770 = vsel %vm937, %v3593, -inf
      %3771 = vmax.xlane.f32.xlu0 %v3770
      %v3772 = vpop.xlane.xlu0 %3771
      %v3773 = vsel %vm937, %v3596, -inf
      %3774 = vmax.xlane.f32.xlu0 %v3773
      %v3775 = vpop.xlane.xlu0 %3774
      %v3776 = vsel %vm937, %v3674, -inf
      %3777 = vmax.xlane.f32.xlu0 %v3776
      %v3778 = vpop.xlane.xlu0 %3777
      %v3779 = vsel %vm937, %v3677, -inf
      %3780 = vmax.xlane.f32.xlu0 %v3779
      %v3781 = vpop.xlane.xlu0 %3780
      %v3782 = vsel %vm937, %v3682, -inf
      %3783 = vmax.xlane.f32.xlu0 %v3782
      %v3784 = vpop.xlane.xlu0 %3783
      %v3785 = vsel %vm937, %v3685, -inf
      %3786 = vmax.xlane.f32.xlu0 %v3785
      %v3787 = vpop.xlane.xlu0 %3786
      %v3788 = vsel %vm937, %v3690, -inf
      %3789 = vmax.xlane.f32.xlu0 %v3788
      %v3790 = vpop.xlane.xlu0 %3789
      %v3791 = vsel %vm937, %v3693, -inf
      %3792 = vmax.xlane.f32.xlu0 %v3791
      %v3793 = vpop.xlane.xlu0 %3792
      %v3794 = vsel %vm937, %v3698, -inf
      %3795 = vmax.xlane.f32.xlu0 %v3794
      %v3796 = vpop.xlane.xlu0 %3795
      %v3797 = vsel %vm937, %v3701, -inf
      %3798 = vmax.xlane.f32.xlu0 %v3797
      %v3799 = vpop.xlane.xlu0 %3798
      %v3800 = vsub.f32 %v3359, %v3706
      %v3801 = vsub.f32 %v3362, %v3709
      %v3802 = vsub.f32 %v3367, %v3712
      %v3803 = vsub.f32 %v3370, %v3715
      %v3804 = vsub.f32 %v3375, %v3718
      %v3805 = vsub.f32 %v3378, %v3721
      %v3806 = vsub.f32 %v3383, %v3724
      %v3807 = vsub.f32 %v3386, %v3727
      %v3808 = vsub.f32 %v3464, %v3730
      %v3809 = vsub.f32 %v3467, %v3733
      %v3810 = vsub.f32 %v3472, %v3736
      %v3811 = vsub.f32 %v3475, %v3739
      %v3812 = vsub.f32 %v3480, %v3742
      %v3813 = vsub.f32 %v3483, %v3745
      %v3814 = vsub.f32 %v3488, %v3748
      %v3815 = vsub.f32 %v3491, %v3751
      %v3816 = vsub.f32 %v3569, %v3754
      %v3817 = vsub.f32 %v3572, %v3757
      %v3818 = vsub.f32 %v3577, %v3760
      %v3819 = vsub.f32 %v3580, %v3763
      %v3820 = vsub.f32 %v3585, %v3766
      %v3821 = vsub.f32 %v3588, %v3769
      %v3822 = vsub.f32 %v3593, %v3772
      %v3823 = vsub.f32 %v3596, %v3775
      %v3824 = vsub.f32 %v3674, %v3778
      %v3825 = vsub.f32 %v3677, %v3781
      %v3826 = vsub.f32 %v3682, %v3784
      %v3827 = vsub.f32 %v3685, %v3787
      %v3828 = vsub.f32 %v3690, %v3790
      %v3829 = vsub.f32 %v3693, %v3793
      %v3830 = vsub.f32 %v3698, %v3796
      %v3831 = vsub.f32 %v3701, %v3799
      %v3832 = vmul.f32 %v3800, 1.442695
      %v3833 = vpow.pop %v3832
      %v3834 = vmul.f32 %v3801, 1.442695
      %v3835 = vpow.pop %v3834
      %v3836 = vmul.f32 %v3802, 1.442695
      %v3837 = vpow.pop %v3836
      %v3838 = vmul.f32 %v3803, 1.442695
      %v3839 = vpow.pop %v3838
      %v3840 = vmul.f32 %v3804, 1.442695
      %v3841 = vpow.pop %v3840
      %v3842 = vmul.f32 %v3805, 1.442695
      %v3843 = vpow.pop %v3842
      %v3844 = vmul.f32 %v3806, 1.442695
      %v3845 = vpow.pop %v3844
      %v3846 = vmul.f32 %v3807, 1.442695
      %v3847 = vpow.pop %v3846
      %v3848 = vmul.f32 %v3808, 1.442695
      %v3849 = vpow.pop %v3848
      %v3850 = vmul.f32 %v3809, 1.442695
      %v3851 = vpow.pop %v3850
      %v3852 = vmul.f32 %v3810, 1.442695
      %v3853 = vpow.pop %v3852
      %v3854 = vmul.f32 %v3811, 1.442695
      %v3855 = vpow.pop %v3854
      %v3856 = vmul.f32 %v3812, 1.442695
      %v3857 = vpow.pop %v3856
      %v3858 = vmul.f32 %v3813, 1.442695
      %v3859 = vpow.pop %v3858
      %v3860 = vmul.f32 %v3814, 1.442695
      %v3861 = vpow.pop %v3860
      %v3862 = vmul.f32 %v3815, 1.442695
      %v3863 = vpow.pop %v3862
      %v3864 = vmul.f32 %v3816, 1.442695
      %v3865 = vpow.pop %v3864
      %v3866 = vmul.f32 %v3817, 1.442695
      %v3867 = vpow.pop %v3866
      %v3868 = vmul.f32 %v3818, 1.442695
      %v3869 = vpow.pop %v3868
      %v3870 = vmul.f32 %v3819, 1.442695
      %v3871 = vpow.pop %v3870
      %v3872 = vmul.f32 %v3820, 1.442695
      %v3873 = vpow.pop %v3872
      %v3874 = vmul.f32 %v3821, 1.442695
      %v3875 = vpow.pop %v3874
      %v3876 = vmul.f32 %v3822, 1.442695
      %v3877 = vpow.pop %v3876
      %v3878 = vmul.f32 %v3823, 1.442695
      %v3879 = vpow.pop %v3878
      %v3880 = vmul.f32 %v3824, 1.442695
      %v3881 = vpow.pop %v3880
      %v3882 = vmul.f32 %v3825, 1.442695
      %v3883 = vpow.pop %v3882
      %v3884 = vmul.f32 %v3826, 1.442695
      %v3885 = vpow.pop %v3884
      %v3886 = vmul.f32 %v3827, 1.442695
      %v3887 = vpow.pop %v3886
      %v3888 = vmul.f32 %v3828, 1.442695
      %v3889 = vpow.pop %v3888
      %v3890 = vmul.f32 %v3829, 1.442695
      %v3891 = vpow.pop %v3890
      %v3892 = vmul.f32 %v3830, 1.442695
      %v3893 = vpow.pop %v3892
      %v3894 = vmul.f32 %v3831, 1.442695
      %v3895 = vpow.pop %v3894
      %v3896 = vsel %vm937, %v3833, 0.0
      %3897 = vadd.xlane.f32.xlu0 %v3896
      %v3898 = vpop.xlane.xlu0 %3897
      %v3899 = vsel %vm937, %v3835, 0.0
      %3900 = vadd.xlane.f32.xlu0 %v3899
      %v3901 = vpop.xlane.xlu0 %3900
      %v3902 = vsel %vm937, %v3837, 0.0
      %3903 = vadd.xlane.f32.xlu0 %v3902
      %v3904 = vpop.xlane.xlu0 %3903
      %v3905 = vsel %vm937, %v3839, 0.0
      %3906 = vadd.xlane.f32.xlu0 %v3905
      %v3907 = vpop.xlane.xlu0 %3906
      %v3908 = vsel %vm937, %v3841, 0.0
      %3909 = vadd.xlane.f32.xlu0 %v3908
      %v3910 = vpop.xlane.xlu0 %3909
      %v3911 = vsel %vm937, %v3843, 0.0
      %3912 = vadd.xlane.f32.xlu0 %v3911
      %v3913 = vpop.xlane.xlu0 %3912
      %v3914 = vsel %vm937, %v3845, 0.0
      %3915 = vadd.xlane.f32.xlu0 %v3914
      %v3916 = vpop.xlane.xlu0 %3915
      %v3917 = vsel %vm937, %v3847, 0.0
      %3918 = vadd.xlane.f32.xlu0 %v3917
      %v3919 = vpop.xlane.xlu0 %3918
      %v3920 = vsel %vm937, %v3849, 0.0
      %3921 = vadd.xlane.f32.xlu0 %v3920
      %v3922 = vpop.xlane.xlu0 %3921
      %v3923 = vsel %vm937, %v3851, 0.0
      %3924 = vadd.xlane.f32.xlu0 %v3923
      %v3925 = vpop.xlane.xlu0 %3924
      %v3926 = vsel %vm937, %v3853, 0.0
      %3927 = vadd.xlane.f32.xlu0 %v3926
      %v3928 = vpop.xlane.xlu0 %3927
      %v3929 = vsel %vm937, %v3855, 0.0
      %3930 = vadd.xlane.f32.xlu0 %v3929
      %v3931 = vpop.xlane.xlu0 %3930
      %v3932 = vsel %vm937, %v3857, 0.0
      %3933 = vadd.xlane.f32.xlu0 %v3932
      %v3934 = vpop.xlane.xlu0 %3933
      %v3935 = vsel %vm937, %v3859, 0.0
      %3936 = vadd.xlane.f32.xlu0 %v3935
      %v3937 = vpop.xlane.xlu0 %3936
      %v3938 = vsel %vm937, %v3861, 0.0
      %3939 = vadd.xlane.f32.xlu0 %v3938
      %v3940 = vpop.xlane.xlu0 %3939
      %v3941 = vsel %vm937, %v3863, 0.0
      %3942 = vadd.xlane.f32.xlu0 %v3941
      %v3943 = vpop.xlane.xlu0 %3942
      %v3944 = vsel %vm937, %v3865, 0.0
      %3945 = vadd.xlane.f32.xlu0 %v3944
      %v3946 = vpop.xlane.xlu0 %3945
      %v3947 = vsel %vm937, %v3867, 0.0
      %3948 = vadd.xlane.f32.xlu0 %v3947
      %v3949 = vpop.xlane.xlu0 %3948
      %v3950 = vsel %vm937, %v3869, 0.0
      %3951 = vadd.xlane.f32.xlu0 %v3950
      %v3952 = vpop.xlane.xlu0 %3951
      %v3953 = vsel %vm937, %v3871, 0.0
      %3954 = vadd.xlane.f32.xlu0 %v3953
      %v3955 = vpop.xlane.xlu0 %3954
      %v3956 = vsel %vm937, %v3873, 0.0
      %3957 = vadd.xlane.f32.xlu0 %v3956
      %v3958 = vpop.xlane.xlu0 %3957
      %v3959 = vsel %vm937, %v3875, 0.0
      %3960 = vadd.xlane.f32.xlu0 %v3959
      %v3961 = vpop.xlane.xlu0 %3960
      %v3962 = vsel %vm937, %v3877, 0.0
      %3963 = vadd.xlane.f32.xlu0 %v3962
      %v3964 = vpop.xlane.xlu0 %3963
      %v3965 = vsel %vm937, %v3879, 0.0
      %3966 = vadd.xlane.f32.xlu0 %v3965
      %v3967 = vpop.xlane.xlu0 %3966
      %v3968 = vsel %vm937, %v3881, 0.0
      %3969 = vadd.xlane.f32.xlu0 %v3968
      %v3970 = vpop.xlane.xlu0 %3969
      %v3971 = vsel %vm937, %v3883, 0.0
      %3972 = vadd.xlane.f32.xlu0 %v3971
      %v3973 = vpop.xlane.xlu0 %3972
      %v3974 = vsel %vm937, %v3885, 0.0
      %3975 = vadd.xlane.f32.xlu0 %v3974
      %v3976 = vpop.xlane.xlu0 %3975
      %v3977 = vsel %vm937, %v3887, 0.0
      %3978 = vadd.xlane.f32.xlu0 %v3977
      %v3979 = vpop.xlane.xlu0 %3978
      %v3980 = vsel %vm937, %v3889, 0.0
      %3981 = vadd.xlane.f32.xlu0 %v3980
      %v3982 = vpop.xlane.xlu0 %3981
      %v3983 = vsel %vm937, %v3891, 0.0
      %3984 = vadd.xlane.f32.xlu0 %v3983
      %v3985 = vpop.xlane.xlu0 %3984
      %v3986 = vsel %vm937, %v3893, 0.0
      %3987 = vadd.xlane.f32.xlu0 %v3986
      %v3988 = vpop.xlane.xlu0 %3987
      %v3989 = vsel %vm937, %v3895, 0.0
      %3990 = vadd.xlane.f32.xlu0 %v3989
      %v3991 = vpop.xlane.xlu0 %3990
      %v3992 = vrcp.pop %v3898
      %v3993 = vrcp.pop %v3901
      %v3994 = vrcp.pop %v3904
      %v3995 = vrcp.pop %v3907
      %v3996 = vrcp.pop %v3910
      %v3997 = vrcp.pop %v3913
      %v3998 = vrcp.pop %v3916
      %v3999 = vrcp.pop %v3919
      %v4000 = vrcp.pop %v3922
      %v4001 = vrcp.pop %v3925
      %v4002 = vrcp.pop %v3928
      %v4003 = vrcp.pop %v3931
      %v4004 = vrcp.pop %v3934
      %v4005 = vrcp.pop %v3937
      %v4006 = vrcp.pop %v3940
      %v4007 = vrcp.pop %v3943
      %v4008 = vrcp.pop %v3946
      %v4009 = vrcp.pop %v3949
      %v4010 = vrcp.pop %v3952
      %v4011 = vrcp.pop %v3955
      %v4012 = vrcp.pop %v3958
      %v4013 = vrcp.pop %v3961
      %v4014 = vrcp.pop %v3964
      %v4015 = vrcp.pop %v3967
      %v4016 = vrcp.pop %v3970
      %v4017 = vrcp.pop %v3973
      %v4018 = vrcp.pop %v3976
      %v4019 = vrcp.pop %v3979
      %v4020 = vrcp.pop %v3982
      %v4021 = vrcp.pop %v3985
      %v4022 = vrcp.pop %v3988
      %v4023 = vrcp.pop %v3991
      %v4024 = vmul.f32 %v3833, %v3992
      %v4025 = vmul.f32 %v3835, %v3993
      %v4026 = vmul.f32 %v3837, %v3994
      %v4027 = vmul.f32 %v3839, %v3995
      %v4028 = vmul.f32 %v3841, %v3996
      %v4029 = vmul.f32 %v3843, %v3997
      %v4030 = vmul.f32 %v3845, %v3998
      %v4031 = vmul.f32 %v3847, %v3999
      %v4032 = vmul.f32 %v3849, %v4000
      %v4033 = vmul.f32 %v3851, %v4001
      %v4034 = vmul.f32 %v3853, %v4002
      %v4035 = vmul.f32 %v3855, %v4003
      %v4036 = vmul.f32 %v3857, %v4004
      %v4037 = vmul.f32 %v3859, %v4005
      %v4038 = vmul.f32 %v3861, %v4006
      %v4039 = vmul.f32 %v3863, %v4007
      %v4040 = vmul.f32 %v3865, %v4008
      %v4041 = vmul.f32 %v3867, %v4009
      %v4042 = vmul.f32 %v3869, %v4010
      %v4043 = vmul.f32 %v3871, %v4011
      %v4044 = vmul.f32 %v3873, %v4012
      %v4045 = vmul.f32 %v3875, %v4013
      %v4046 = vmul.f32 %v3877, %v4014
      %v4047 = vmul.f32 %v3879, %v4015
      %v4048 = vmul.f32 %v3881, %v4016
      %v4049 = vmul.f32 %v3883, %v4017
      %v4050 = vmul.f32 %v3885, %v4018
      %v4051 = vmul.f32 %v3887, %v4019
      %v4052 = vmul.f32 %v3889, %v4020
      %v4053 = vmul.f32 %v3891, %v4021
      %v4054 = vmul.f32 %v3893, %v4022
      %v4055 = vmul.f32 %v3895, %v4023
      %v4056 = vpack.c.bf16 %v4025, %v4024
      %v4057 = vpack.c.bf16 %v4027, %v4026
      %v4058 = vpack.c.bf16 %v4029, %v4028
      %v4059 = vpack.c.bf16 %v4031, %v4030
      %v4060 = vpack.c.bf16 %v4033, %v4032
      %v4061 = vpack.c.bf16 %v4035, %v4034
      %v4062 = vpack.c.bf16 %v4037, %v4036
      %v4063 = vpack.c.bf16 %v4039, %v4038
      %v4064 = vpack.c.bf16 %v4041, %v4040
      %v4065 = vpack.c.bf16 %v4043, %v4042
      %v4066 = vpack.c.bf16 %v4045, %v4044
      %v4067 = vpack.c.bf16 %v4047, %v4046
      %v4068 = vpack.c.bf16 %v4049, %v4048
      %v4069 = vpack.c.bf16 %v4051, %v4050
      %v4070 = vpack.c.bf16 %v4053, %v4052
      %v4071 = vpack.c.bf16 %v4055, %v4054
      %4072 = vrot.lane.b32.xlu0 %v508, 48
      %v4073 = vpop.permute.xlu0 %4072
      %4074 = vrot.lane.b32.xlu0 %v509, 48
      %v4075 = vpop.permute.xlu0 %4074
      %4076 = vrot.lane.b32.xlu0 %v510, 48
      %v4077 = vpop.permute.xlu0 %4076
      %4078 = vrot.lane.b32.xlu0 %v511, 48
      %v4079 = vpop.permute.xlu0 %4078
      %v4085 = vsel %vm937, %v4056, 0
      %v4088 = vsel %vm937, %v4057, 0
      %v4091 = vsel %vm937, %v4058, 0
      %v4094 = vsel %vm937, %v4059, 0
      %4096 = vmatprep.subr.bf16.mxu0 0
      %4097 = vmatpush1.bf16.msra.mxu0 0
      %4098 = vmatprep.subr.bf16.mxu0 0
      %4099 = vmatpush1.bf16.msra.mxu0 0
      %4100 = vmatprep.subr.bf16.mxu0 0
      %4101 = vmatpush1.bf16.msra.mxu0 0
      %4102 = vmatprep.subr.bf16.mxu0 0
      %4103 = vmatpush1.bf16.msra.mxu0 0
      %4104 = vmatprep.subr.bf16.mxu0 0
      %4105 = vmatpush1.bf16.msra.mxu0 %v4079
      %4106 = vmatprep.subr.bf16.mxu0 0
      %4107 = vmatpush1.bf16.msra.mxu0 %v4077
      %4108 = vmatprep.subr.bf16.mxu0 0
      %4109 = vmatpush1.bf16.msra.mxu0 %v4075
      %4110 = vmatprep.subr.bf16.mxu0 0
      %4111 = vmatpush1.bf16.msra.mxu0 %v4073
      %4112 = vmatprep.subr.bf16.mxu0 0
      %4113 = vmatpush2.bf16.msra.mxu0 0
      %4114 = vmatprep.subr.bf16.mxu0 0
      %4115 = vmatpush2.bf16.msra.mxu0 0
      %4116 = vmatprep.subr.bf16.mxu0 0
      %4117 = vmatpush2.bf16.msra.mxu0 0
      %4118 = vmatprep.subr.bf16.mxu0 0
      %4119 = vmatpush2.bf16.msra.mxu0 0
      %4120 = vmatprep.subr.bf16.mxu0 0
      %4121 = vmatpush2.bf16.msra.mxu0 0
      %4122 = vmatprep.subr.bf16.mxu0 0
      %4123 = vmatpush2.bf16.msra.mxu0 0
      %4124 = vmatprep.subr.bf16.mxu0 0
      %4125 = vmatpush2.bf16.msra.mxu0 0
      %4126 = vmatprep.subr.bf16.mxu0 0
      %4127 = vmatpush2.bf16.msra.mxu0 0
      %4128 = vmatprep.mubr.bf16.mxu0 0
      %4129 = vmatmul.mubr.bf16.gmra.mxu0 %v4085
      %v4130 = vpop.f32.mrf.mxu0
      %v4131 = vadd.f32 0.0, %v4130
      %v4132 = vpop.f32.mrf.mxu0
      %v4133 = vpop.f32.mrf.mxu0
      %v4134 = vadd.f32 0.0, %v4133
      %v4135 = vpop.f32.mrf.mxu0
      %4136 = vmatprep.mubr.bf16.mxu0 0
      %4137 = vmatmul.mubr.bf16.gmra.mxu0 %v4088
      %v4138 = vpop.f32.mrf.mxu0
      %v4139 = vadd.f32 0.0, %v4138
      %v4140 = vpop.f32.mrf.mxu0
      %v4141 = vpop.f32.mrf.mxu0
      %v4142 = vadd.f32 0.0, %v4141
      %v4143 = vpop.f32.mrf.mxu0
      %4144 = vmatprep.mubr.bf16.mxu0 0
      %4145 = vmatmul.mubr.bf16.gmra.mxu0 %v4091
      %v4146 = vpop.f32.mrf.mxu0
      %v4147 = vadd.f32 0.0, %v4146
      %v4148 = vpop.f32.mrf.mxu0
      %v4149 = vpop.f32.mrf.mxu0
      %v4150 = vadd.f32 0.0, %v4149
      %v4151 = vpop.f32.mrf.mxu0
      %4152 = vmatprep.mubr.bf16.mxu0 0
      %4153 = vmatmul.mubr.bf16.gmra.mxu0 %v4094
      %v4154 = vpop.f32.mrf.mxu0
      %v4155 = vadd.f32 0.0, %v4154
      %v4156 = vpop.f32.mrf.mxu0
      %v4157 = vpop.f32.mrf.mxu0
      %v4158 = vadd.f32 0.0, %v4157
      %v4159 = vpop.f32.mrf.mxu0
      %4160 = vdwg.mxu0
      %4161 = vrot.lane.b32.xlu0 %v512, 48
      %v4162 = vpop.permute.xlu0 %4161
      %4163 = vrot.lane.b32.xlu0 %v513, 48
      %v4164 = vpop.permute.xlu0 %4163
      %4165 = vrot.lane.b32.xlu0 %v514, 48
      %v4166 = vpop.permute.xlu0 %4165
      %4167 = vrot.lane.b32.xlu0 %v515, 48
      %v4168 = vpop.permute.xlu0 %4167
      %v4174 = vsel %vm937, %v4060, 0
      %v4177 = vsel %vm937, %v4061, 0
      %v4180 = vsel %vm937, %v4062, 0
      %v4183 = vsel %vm937, %v4063, 0
      %4185 = vmatprep.subr.bf16.mxu0 0
      %4186 = vmatpush1.bf16.msra.mxu0 0
      %4187 = vmatprep.subr.bf16.mxu0 0
      %4188 = vmatpush1.bf16.msra.mxu0 0
      %4189 = vmatprep.subr.bf16.mxu0 0
      %4190 = vmatpush1.bf16.msra.mxu0 0
      %4191 = vmatprep.subr.bf16.mxu0 0
      %4192 = vmatpush1.bf16.msra.mxu0 0
      %4193 = vmatprep.subr.bf16.mxu0 0
      %4194 = vmatpush1.bf16.msra.mxu0 %v4168
      %4195 = vmatprep.subr.bf16.mxu0 0
      %4196 = vmatpush1.bf16.msra.mxu0 %v4166
      %4197 = vmatprep.subr.bf16.mxu0 0
      %4198 = vmatpush1.bf16.msra.mxu0 %v4164
      %4199 = vmatprep.subr.bf16.mxu0 0
      %4200 = vmatpush1.bf16.msra.mxu0 %v4162
      %4201 = vmatprep.subr.bf16.mxu0 0
      %4202 = vmatpush2.bf16.msra.mxu0 0
      %4203 = vmatprep.subr.bf16.mxu0 0
      %4204 = vmatpush2.bf16.msra.mxu0 0
      %4205 = vmatprep.subr.bf16.mxu0 0
      %4206 = vmatpush2.bf16.msra.mxu0 0
      %4207 = vmatprep.subr.bf16.mxu0 0
      %4208 = vmatpush2.bf16.msra.mxu0 0
      %4209 = vmatprep.subr.bf16.mxu0 0
      %4210 = vmatpush2.bf16.msra.mxu0 0
      %4211 = vmatprep.subr.bf16.mxu0 0
      %4212 = vmatpush2.bf16.msra.mxu0 0
      %4213 = vmatprep.subr.bf16.mxu0 0
      %4214 = vmatpush2.bf16.msra.mxu0 0
      %4215 = vmatprep.subr.bf16.mxu0 0
      %4216 = vmatpush2.bf16.msra.mxu0 0
      %4217 = vmatprep.mubr.bf16.mxu0 0
      %4218 = vmatmul.mubr.bf16.gmra.mxu0 %v4174
      %v4219 = vpop.f32.mrf.mxu0
      %v4220 = vadd.f32 0.0, %v4219
      %v4221 = vpop.f32.mrf.mxu0
      %v4222 = vpop.f32.mrf.mxu0
      %v4223 = vadd.f32 0.0, %v4222
      %v4224 = vpop.f32.mrf.mxu0
      %4225 = vmatprep.mubr.bf16.mxu0 0
      %4226 = vmatmul.mubr.bf16.gmra.mxu0 %v4177
      %v4227 = vpop.f32.mrf.mxu0
      %v4228 = vadd.f32 0.0, %v4227
      %v4229 = vpop.f32.mrf.mxu0
      %v4230 = vpop.f32.mrf.mxu0
      %v4231 = vadd.f32 0.0, %v4230
      %v4232 = vpop.f32.mrf.mxu0
      %4233 = vmatprep.mubr.bf16.mxu0 0
      %4234 = vmatmul.mubr.bf16.gmra.mxu0 %v4180
      %v4235 = vpop.f32.mrf.mxu0
      %v4236 = vadd.f32 0.0, %v4235
      %v4237 = vpop.f32.mrf.mxu0
      %v4238 = vpop.f32.mrf.mxu0
      %v4239 = vadd.f32 0.0, %v4238
      %v4240 = vpop.f32.mrf.mxu0
      %4241 = vmatprep.mubr.bf16.mxu0 0
      %4242 = vmatmul.mubr.bf16.gmra.mxu0 %v4183
      %v4243 = vpop.f32.mrf.mxu0
      %v4244 = vadd.f32 0.0, %v4243
      %v4245 = vpop.f32.mrf.mxu0
      %v4246 = vpop.f32.mrf.mxu0
      %v4247 = vadd.f32 0.0, %v4246
      %v4248 = vpop.f32.mrf.mxu0
      %4249 = vdwg.mxu0
      %4250 = vrot.lane.b32.xlu0 %v516, 48
      %v4251 = vpop.permute.xlu0 %4250
      %4252 = vrot.lane.b32.xlu0 %v517, 48
      %v4253 = vpop.permute.xlu0 %4252
      %4254 = vrot.lane.b32.xlu0 %v518, 48
      %v4255 = vpop.permute.xlu0 %4254
      %4256 = vrot.lane.b32.xlu0 %v519, 48
      %v4257 = vpop.permute.xlu0 %4256
      %v4263 = vsel %vm937, %v4064, 0
      %v4266 = vsel %vm937, %v4065, 0
      %v4269 = vsel %vm937, %v4066, 0
      %v4272 = vsel %vm937, %v4067, 0
      %4274 = vmatprep.subr.bf16.mxu0 0
      %4275 = vmatpush1.bf16.msra.mxu0 0
      %4276 = vmatprep.subr.bf16.mxu0 0
      %4277 = vmatpush1.bf16.msra.mxu0 0
      %4278 = vmatprep.subr.bf16.mxu0 0
      %4279 = vmatpush1.bf16.msra.mxu0 0
      %4280 = vmatprep.subr.bf16.mxu0 0
      %4281 = vmatpush1.bf16.msra.mxu0 0
      %4282 = vmatprep.subr.bf16.mxu0 0
      %4283 = vmatpush1.bf16.msra.mxu0 %v4257
      %4284 = vmatprep.subr.bf16.mxu0 0
      %4285 = vmatpush1.bf16.msra.mxu0 %v4255
      %4286 = vmatprep.subr.bf16.mxu0 0
      %4287 = vmatpush1.bf16.msra.mxu0 %v4253
      %4288 = vmatprep.subr.bf16.mxu0 0
      %4289 = vmatpush1.bf16.msra.mxu0 %v4251
      %4290 = vmatprep.subr.bf16.mxu0 0
      %4291 = vmatpush2.bf16.msra.mxu0 0
      %4292 = vmatprep.subr.bf16.mxu0 0
      %4293 = vmatpush2.bf16.msra.mxu0 0
      %4294 = vmatprep.subr.bf16.mxu0 0
      %4295 = vmatpush2.bf16.msra.mxu0 0
      %4296 = vmatprep.subr.bf16.mxu0 0
      %4297 = vmatpush2.bf16.msra.mxu0 0
      %4298 = vmatprep.subr.bf16.mxu0 0
      %4299 = vmatpush2.bf16.msra.mxu0 0
      %4300 = vmatprep.subr.bf16.mxu0 0
      %4301 = vmatpush2.bf16.msra.mxu0 0
      %4302 = vmatprep.subr.bf16.mxu0 0
      %4303 = vmatpush2.bf16.msra.mxu0 0
      %4304 = vmatprep.subr.bf16.mxu0 0
      %4305 = vmatpush2.bf16.msra.mxu0 0
      %4306 = vmatprep.mubr.bf16.mxu0 0
      %4307 = vmatmul.mubr.bf16.gmra.mxu0 %v4263
      %v4308 = vpop.f32.mrf.mxu0
      %v4309 = vadd.f32 0.0, %v4308
      %v4310 = vpop.f32.mrf.mxu0
      %v4311 = vpop.f32.mrf.mxu0
      %v4312 = vadd.f32 0.0, %v4311
      %v4313 = vpop.f32.mrf.mxu0
      %4314 = vmatprep.mubr.bf16.mxu0 0
      %4315 = vmatmul.mubr.bf16.gmra.mxu0 %v4266
      %v4316 = vpop.f32.mrf.mxu0
      %v4317 = vadd.f32 0.0, %v4316
      %v4318 = vpop.f32.mrf.mxu0
      %v4319 = vpop.f32.mrf.mxu0
      %v4320 = vadd.f32 0.0, %v4319
      %v4321 = vpop.f32.mrf.mxu0
      %4322 = vmatprep.mubr.bf16.mxu0 0
      %4323 = vmatmul.mubr.bf16.gmra.mxu0 %v4269
      %v4324 = vpop.f32.mrf.mxu0
      %v4325 = vadd.f32 0.0, %v4324
      %v4326 = vpop.f32.mrf.mxu0
      %v4327 = vpop.f32.mrf.mxu0
      %v4328 = vadd.f32 0.0, %v4327
      %v4329 = vpop.f32.mrf.mxu0
      %4330 = vmatprep.mubr.bf16.mxu0 0
      %4331 = vmatmul.mubr.bf16.gmra.mxu0 %v4272
      %v4332 = vpop.f32.mrf.mxu0
      %v4333 = vadd.f32 0.0, %v4332
      %v4334 = vpop.f32.mrf.mxu0
      %v4335 = vpop.f32.mrf.mxu0
      %v4336 = vadd.f32 0.0, %v4335
      %v4337 = vpop.f32.mrf.mxu0
      %4338 = vdwg.mxu0
      %4339 = vrot.lane.b32.xlu0 %v520, 48
      %v4340 = vpop.permute.xlu0 %4339
      %4341 = vrot.lane.b32.xlu0 %v521, 48
      %v4342 = vpop.permute.xlu0 %4341
      %4343 = vrot.lane.b32.xlu0 %v522, 48
      %v4344 = vpop.permute.xlu0 %4343
      %4345 = vrot.lane.b32.xlu0 %v523, 48
      %v4346 = vpop.permute.xlu0 %4345
      %v4352 = vsel %vm937, %v4068, 0
      %v4355 = vsel %vm937, %v4069, 0
      %v4358 = vsel %vm937, %v4070, 0
      %v4361 = vsel %vm937, %v4071, 0
      %4363 = vmatprep.subr.bf16.mxu0 0
      %4364 = vmatpush1.bf16.msra.mxu0 0
      %4365 = vmatprep.subr.bf16.mxu0 0
      %4366 = vmatpush1.bf16.msra.mxu0 0
      %4367 = vmatprep.subr.bf16.mxu0 0
      %4368 = vmatpush1.bf16.msra.mxu0 0
      %4369 = vmatprep.subr.bf16.mxu0 0
      %4370 = vmatpush1.bf16.msra.mxu0 0
      %4371 = vmatprep.subr.bf16.mxu0 0
      %4372 = vmatpush1.bf16.msra.mxu0 %v4346
      %4373 = vmatprep.subr.bf16.mxu0 0
      %4374 = vmatpush1.bf16.msra.mxu0 %v4344
      %4375 = vmatprep.subr.bf16.mxu0 0
      %4376 = vmatpush1.bf16.msra.mxu0 %v4342
      %4377 = vmatprep.subr.bf16.mxu0 0
      %4378 = vmatpush1.bf16.msra.mxu0 %v4340
      %4379 = vmatprep.subr.bf16.mxu0 0
      %4380 = vmatpush2.bf16.msra.mxu0 0
      %4381 = vmatprep.subr.bf16.mxu0 0
      %4382 = vmatpush2.bf16.msra.mxu0 0
      %4383 = vmatprep.subr.bf16.mxu0 0
      %4384 = vmatpush2.bf16.msra.mxu0 0
      %4385 = vmatprep.subr.bf16.mxu0 0
      %4386 = vmatpush2.bf16.msra.mxu0 0
      %4387 = vmatprep.subr.bf16.mxu0 0
      %4388 = vmatpush2.bf16.msra.mxu0 0
      %4389 = vmatprep.subr.bf16.mxu0 0
      %4390 = vmatpush2.bf16.msra.mxu0 0
      %4391 = vmatprep.subr.bf16.mxu0 0
      %4392 = vmatpush2.bf16.msra.mxu0 0
      %4393 = vmatprep.subr.bf16.mxu0 0
      %4394 = vmatpush2.bf16.msra.mxu0 0
      %4395 = vmatprep.mubr.bf16.mxu0 0
      %4396 = vmatmul.mubr.bf16.gmra.mxu0 %v4352
      %v4397 = vpop.f32.mrf.mxu0
      %v4398 = vadd.f32 0.0, %v4397
      %v4399 = vpop.f32.mrf.mxu0
      %v4400 = vpop.f32.mrf.mxu0
      %v4401 = vadd.f32 0.0, %v4400
      %v4402 = vpop.f32.mrf.mxu0
      %4403 = vmatprep.mubr.bf16.mxu0 0
      %4404 = vmatmul.mubr.bf16.gmra.mxu0 %v4355
      %v4405 = vpop.f32.mrf.mxu0
      %v4406 = vadd.f32 0.0, %v4405
      %v4407 = vpop.f32.mrf.mxu0
      %v4408 = vpop.f32.mrf.mxu0
      %v4409 = vadd.f32 0.0, %v4408
      %v4410 = vpop.f32.mrf.mxu0
      %4411 = vmatprep.mubr.bf16.mxu0 0
      %4412 = vmatmul.mubr.bf16.gmra.mxu0 %v4358
      %v4413 = vpop.f32.mrf.mxu0
      %v4414 = vadd.f32 0.0, %v4413
      %v4415 = vpop.f32.mrf.mxu0
      %v4416 = vpop.f32.mrf.mxu0
      %v4417 = vadd.f32 0.0, %v4416
      %v4418 = vpop.f32.mrf.mxu0
      %4419 = vmatprep.mubr.bf16.mxu0 0
      %4420 = vmatmul.mubr.bf16.gmra.mxu0 %v4361
      %v4421 = vpop.f32.mrf.mxu0
      %v4422 = vadd.f32 0.0, %v4421
      %v4423 = vpop.f32.mrf.mxu0
      %v4424 = vpop.f32.mrf.mxu0
      %v4425 = vadd.f32 0.0, %v4424
      %v4426 = vpop.f32.mrf.mxu0
      %4427 = vdwg.mxu0
      %v4428 = vpack.c.bf16 %v4134, %v4131
      %v4429 = vpack.c.bf16 %v4142, %v4139
      %v4430 = vpack.c.bf16 %v4150, %v4147
      %v4431 = vpack.c.bf16 %v4158, %v4155
      %v4432 = vpack.c.bf16 %v4223, %v4220
      %v4433 = vpack.c.bf16 %v4231, %v4228
      %v4434 = vpack.c.bf16 %v4239, %v4236
      %v4435 = vpack.c.bf16 %v4247, %v4244
      %v4436 = vpack.c.bf16 %v4312, %v4309
      %v4437 = vpack.c.bf16 %v4320, %v4317
      %v4438 = vpack.c.bf16 %v4328, %v4325
      %v4439 = vpack.c.bf16 %v4336, %v4333
      %v4440 = vpack.c.bf16 %v4401, %v4398
      %v4441 = vpack.c.bf16 %v4409, %v4406
      %v4442 = vpack.c.bf16 %v4417, %v4414
      %v4443 = vpack.c.bf16 %v4425, %v4422
      %s4444 = scalar_lea.vmem %s2, 8
      %v4445 = vld [vmem:[%s4444] sm:$0xf]
      %v4447 = vsel %vm544, %v4428, 0
      %v4450 = vsel %vm544, %v4429, 0
      %v4453 = vsel %vm544, %v4430, 0
      %v4456 = vsel %vm544, %v4431, 0
      %v4459 = vsel %vm544, %v4432, 0
      %v4462 = vsel %vm544, %v4433, 0
      %v4465 = vsel %vm544, %v4434, 0
      %v4468 = vsel %vm544, %v4435, 0
      %v4471 = vsel %vm544, %v4436, 0
      %v4474 = vsel %vm544, %v4437, 0
      %v4477 = vsel %vm544, %v4438, 0
      %v4480 = vsel %vm544, %v4439, 0
      %v4483 = vsel %vm544, %v4440, 0
      %v4486 = vsel %vm544, %v4441, 0
      %v4489 = vsel %vm544, %v4442, 0
      %v4492 = vsel %vm544, %v4443, 0
      %v4495 = vsel %vm2898, %v4445, 0
      %4497 = vmatprep.subr.bf16.mxu0 0
      %4498 = vmatpush1.bf16.msra.mxu0 0
      %4499 = vmatprep.subr.bf16.mxu0 0
      %4500 = vmatpush1.bf16.msra.mxu0 0
      %4501 = vmatprep.subr.bf16.mxu0 0
      %4502 = vmatpush1.bf16.msra.mxu0 0
      %4503 = vmatprep.subr.bf16.mxu0 0
      %4504 = vmatpush1.bf16.msra.mxu0 0
      %4505 = vmatprep.subr.bf16.mxu0 0
      %4506 = vmatpush1.bf16.msra.mxu0 0
      %4507 = vmatprep.subr.bf16.mxu0 0
      %4508 = vmatpush1.bf16.msra.mxu0 0
      %4509 = vmatprep.subr.bf16.mxu0 0
      %4510 = vmatpush1.bf16.msra.mxu0 0
      %4511 = vmatprep.subr.bf16.mxu0 0
      %4512 = vmatpush1.bf16.msra.mxu0 %v4495
      %4513 = vmatprep.subr.bf16.mxu0 0
      %4514 = vmatpush2.bf16.msra.mxu0 0
      %4515 = vmatprep.subr.bf16.mxu0 0
      %4516 = vmatpush2.bf16.msra.mxu0 0
      %4517 = vmatprep.subr.bf16.mxu0 0
      %4518 = vmatpush2.bf16.msra.mxu0 0
      %4519 = vmatprep.subr.bf16.mxu0 0
      %4520 = vmatpush2.bf16.msra.mxu0 0
      %4521 = vmatprep.subr.bf16.mxu0 0
      %4522 = vmatpush2.bf16.msra.mxu0 0
      %4523 = vmatprep.subr.bf16.mxu0 0
      %4524 = vmatpush2.bf16.msra.mxu0 0
      %4525 = vmatprep.subr.bf16.mxu0 0
      %4526 = vmatpush2.bf16.msra.mxu0 0
      %4527 = vmatprep.subr.bf16.mxu0 0
      %4528 = vmatpush2.bf16.msra.mxu0 0
      %4529 = vmatprep.mubr.bf16.mxu0 0
      %4530 = vmatmul.mubr.bf16.gmra.mxu0 %v4447
      %v4531 = vpop.f32.mrf.mxu0
      %v4532 = vadd.f32 0.0, %v4531
      %v4533 = vpop.f32.mrf.mxu0
      %v4534 = vpop.f32.mrf.mxu0
      %v4535 = vadd.f32 0.0, %v4534
      %v4536 = vpop.f32.mrf.mxu0
      %4537 = vmatprep.mubr.bf16.mxu0 0
      %4538 = vmatmul.mubr.bf16.gmra.mxu0 %v4450
      %v4539 = vpop.f32.mrf.mxu0
      %v4540 = vadd.f32 0.0, %v4539
      %v4541 = vpop.f32.mrf.mxu0
      %v4542 = vpop.f32.mrf.mxu0
      %v4543 = vadd.f32 0.0, %v4542
      %v4544 = vpop.f32.mrf.mxu0
      %4545 = vmatprep.mubr.bf16.mxu0 0
      %4546 = vmatmul.mubr.bf16.gmra.mxu0 %v4453
      %v4547 = vpop.f32.mrf.mxu0
      %v4548 = vadd.f32 0.0, %v4547
      %v4549 = vpop.f32.mrf.mxu0
      %v4550 = vpop.f32.mrf.mxu0
      %v4551 = vadd.f32 0.0, %v4550
      %v4552 = vpop.f32.mrf.mxu0
      %4553 = vmatprep.mubr.bf16.mxu0 0
      %4554 = vmatmul.mubr.bf16.gmra.mxu0 %v4456
      %v4555 = vpop.f32.mrf.mxu0
      %v4556 = vadd.f32 0.0, %v4555
      %v4557 = vpop.f32.mrf.mxu0
      %v4558 = vpop.f32.mrf.mxu0
      %v4559 = vadd.f32 0.0, %v4558
      %v4560 = vpop.f32.mrf.mxu0
      %4561 = vmatprep.mubr.bf16.mxu0 0
      %4562 = vmatmul.mubr.bf16.gmra.mxu0 %v4459
      %v4563 = vpop.f32.mrf.mxu0
      %v4564 = vadd.f32 0.0, %v4563
      %v4565 = vpop.f32.mrf.mxu0
      %v4566 = vpop.f32.mrf.mxu0
      %v4567 = vadd.f32 0.0, %v4566
      %v4568 = vpop.f32.mrf.mxu0
      %4569 = vmatprep.mubr.bf16.mxu0 0
      %4570 = vmatmul.mubr.bf16.gmra.mxu0 %v4462
      %v4571 = vpop.f32.mrf.mxu0
      %v4572 = vadd.f32 0.0, %v4571
      %v4573 = vpop.f32.mrf.mxu0
      %v4574 = vpop.f32.mrf.mxu0
      %v4575 = vadd.f32 0.0, %v4574
      %v4576 = vpop.f32.mrf.mxu0
      %4577 = vmatprep.mubr.bf16.mxu0 0
      %4578 = vmatmul.mubr.bf16.gmra.mxu0 %v4465
      %v4579 = vpop.f32.mrf.mxu0
      %v4580 = vadd.f32 0.0, %v4579
      %v4581 = vpop.f32.mrf.mxu0
      %v4582 = vpop.f32.mrf.mxu0
      %v4583 = vadd.f32 0.0, %v4582
      %v4584 = vpop.f32.mrf.mxu0
      %4585 = vmatprep.mubr.bf16.mxu0 0
      %4586 = vmatmul.mubr.bf16.gmra.mxu0 %v4468
      %v4587 = vpop.f32.mrf.mxu0
      %v4588 = vadd.f32 0.0, %v4587
      %v4589 = vpop.f32.mrf.mxu0
      %v4590 = vpop.f32.mrf.mxu0
      %v4591 = vadd.f32 0.0, %v4590
      %v4592 = vpop.f32.mrf.mxu0
      %4593 = vmatprep.mubr.bf16.mxu0 0
      %4594 = vmatmul.mubr.bf16.gmra.mxu0 %v4471
      %v4595 = vpop.f32.mrf.mxu0
      %v4596 = vadd.f32 0.0, %v4595
      %v4597 = vpop.f32.mrf.mxu0
      %v4598 = vpop.f32.mrf.mxu0
      %v4599 = vadd.f32 0.0, %v4598
      %v4600 = vpop.f32.mrf.mxu0
      %4601 = vmatprep.mubr.bf16.mxu0 0
      %4602 = vmatmul.mubr.bf16.gmra.mxu0 %v4474
      %v4603 = vpop.f32.mrf.mxu0
      %v4604 = vadd.f32 0.0, %v4603
      %v4605 = vpop.f32.mrf.mxu0
      %v4606 = vpop.f32.mrf.mxu0
      %v4607 = vadd.f32 0.0, %v4606
      %v4608 = vpop.f32.mrf.mxu0
      %4609 = vmatprep.mubr.bf16.mxu0 0
      %4610 = vmatmul.mubr.bf16.gmra.mxu0 %v4477
      %v4611 = vpop.f32.mrf.mxu0
      %v4612 = vadd.f32 0.0, %v4611
      %v4613 = vpop.f32.mrf.mxu0
      %v4614 = vpop.f32.mrf.mxu0
      %v4615 = vadd.f32 0.0, %v4614
      %v4616 = vpop.f32.mrf.mxu0
      %4617 = vmatprep.mubr.bf16.mxu0 0
      %4618 = vmatmul.mubr.bf16.gmra.mxu0 %v4480
      %v4619 = vpop.f32.mrf.mxu0
      %v4620 = vadd.f32 0.0, %v4619
      %v4621 = vpop.f32.mrf.mxu0
      %v4622 = vpop.f32.mrf.mxu0
      %v4623 = vadd.f32 0.0, %v4622
      %v4624 = vpop.f32.mrf.mxu0
      %4625 = vmatprep.mubr.bf16.mxu0 0
      %4626 = vmatmul.mubr.bf16.gmra.mxu0 %v4483
      %v4627 = vpop.f32.mrf.mxu0
      %v4628 = vadd.f32 0.0, %v4627
      %v4629 = vpop.f32.mrf.mxu0
      %v4630 = vpop.f32.mrf.mxu0
      %v4631 = vadd.f32 0.0, %v4630
      %v4632 = vpop.f32.mrf.mxu0
      %4633 = vmatprep.mubr.bf16.mxu0 0
      %4634 = vmatmul.mubr.bf16.gmra.mxu0 %v4486
      %v4635 = vpop.f32.mrf.mxu0
      %v4636 = vadd.f32 0.0, %v4635
      %v4637 = vpop.f32.mrf.mxu0
      %v4638 = vpop.f32.mrf.mxu0
      %v4639 = vadd.f32 0.0, %v4638
      %v4640 = vpop.f32.mrf.mxu0
      %4641 = vmatprep.mubr.bf16.mxu0 0
      %4642 = vmatmul.mubr.bf16.gmra.mxu0 %v4489
      %v4643 = vpop.f32.mrf.mxu0
      %v4644 = vadd.f32 0.0, %v4643
      %v4645 = vpop.f32.mrf.mxu0
      %v4646 = vpop.f32.mrf.mxu0
      %v4647 = vadd.f32 0.0, %v4646
      %v4648 = vpop.f32.mrf.mxu0
      %4649 = vmatprep.mubr.bf16.mxu0 0
      %4650 = vmatmul.mubr.bf16.gmra.mxu0 %v4492
      %v4651 = vpop.f32.mrf.mxu0
      %v4652 = vadd.f32 0.0, %v4651
      %v4653 = vpop.f32.mrf.mxu0
      %v4654 = vpop.f32.mrf.mxu0
      %v4655 = vadd.f32 0.0, %v4654
      %v4656 = vpop.f32.mrf.mxu0
      %4657 = vdwg.mxu0
      %v4658 = vadd.f32 %v3149, %v4532
      %v4659 = vadd.f32 %v3152, %v4535
      %v4660 = vadd.f32 %v3157, %v4540
      %v4661 = vadd.f32 %v3160, %v4543
      %v4662 = vadd.f32 %v3165, %v4548
      %v4663 = vadd.f32 %v3168, %v4551
      %v4664 = vadd.f32 %v3173, %v4556
      %v4665 = vadd.f32 %v3176, %v4559
      %v4666 = vadd.f32 %v3181, %v4564
      %v4667 = vadd.f32 %v3184, %v4567
      %v4668 = vadd.f32 %v3189, %v4572
      %v4669 = vadd.f32 %v3192, %v4575
      %v4670 = vadd.f32 %v3197, %v4580
      %v4671 = vadd.f32 %v3200, %v4583
      %v4672 = vadd.f32 %v3205, %v4588
      %v4673 = vadd.f32 %v3208, %v4591
      %v4674 = vadd.f32 %v3213, %v4596
      %v4675 = vadd.f32 %v3216, %v4599
      %v4676 = vadd.f32 %v3221, %v4604
      %v4677 = vadd.f32 %v3224, %v4607
      %v4678 = vadd.f32 %v3229, %v4612
      %v4679 = vadd.f32 %v3232, %v4615
      %v4680 = vadd.f32 %v3237, %v4620
      %v4681 = vadd.f32 %v3240, %v4623
      %v4682 = vadd.f32 %v3245, %v4628
      %v4683 = vadd.f32 %v3248, %v4631
      %v4684 = vadd.f32 %v3253, %v4636
      %v4685 = vadd.f32 %v3256, %v4639
      %v4686 = vadd.f32 %v3261, %v4644
      %v4687 = vadd.f32 %v3264, %v4647
      %v4688 = vadd.f32 %v3269, %v4652
      %v4689 = vadd.f32 %v3272, %v4655
      %s4690 = scalar_lea.vmem %s4, 192
      %v4691 = vld [vmem:[%s4690] sm:$0xff]
      %v4692 = vld [vmem:[%s4690 + $0x8] sm:$0xff]
      %v4693 = vld [vmem:[%s4690 + $0x10] sm:$0xff]
      %v4694 = vld [vmem:[%s4690 + $0x18] sm:$0xff]
      %v4695 = vld [vmem:[%s4690 + $0x20] sm:$0xff]
      %v4696 = vld [vmem:[%s4690 + $0x28] sm:$0xff]
      %v4697 = vld [vmem:[%s4690 + $0x30] sm:$0xff]
      %v4698 = vld [vmem:[%s4690 + $0x38] sm:$0xff]
      %4699 = vrot.lane.b32.xlu0 %v508, 104
      %v4700 = vpop.permute.xlu0 %4699
      %4701 = vrot.lane.b32.xlu0 %v509, 104
      %v4702 = vpop.permute.xlu0 %4701
      %4703 = vrot.lane.b32.xlu0 %v510, 104
      %v4704 = vpop.permute.xlu0 %4703
      %4705 = vrot.lane.b32.xlu0 %v511, 104
      %v4706 = vpop.permute.xlu0 %4705
      %4707 = vrot.lane.b32.xlu0 %v508, 72
      %v4708 = vpop.permute.xlu0 %4707
      %4709 = vrot.lane.b32.xlu0 %v509, 72
      %v4710 = vpop.permute.xlu0 %4709
      %4711 = vrot.lane.b32.xlu0 %v510, 72
      %v4712 = vpop.permute.xlu0 %4711
      %4713 = vrot.lane.b32.xlu0 %v511, 72
      %v4714 = vpop.permute.xlu0 %4713
      %v4716 = vsel %vm544, %v4700, 0
      %v4719 = vsel %vm544, %v4702, 0
      %v4722 = vsel %vm544, %v4704, 0
      %v4725 = vsel %vm544, %v4706, 0
      %v4728 = vsel %vm544, %v4708, 0
      %v4731 = vsel %vm544, %v4710, 0
      %v4734 = vsel %vm544, %v4712, 0
      %v4737 = vsel %vm544, %v4714, 0
      %4739 = vmatprep.subr.bf16.mxu0 0
      %4740 = vmatpush1.bf16.xpose.msra.mxu0 0
      %4741 = vmatprep.subr.bf16.mxu0 0
      %4742 = vmatpush1.bf16.xpose.msra.mxu0 0
      %4743 = vmatprep.subr.bf16.mxu0 0
      %4744 = vmatpush1.bf16.xpose.msra.mxu0 0
      %4745 = vmatprep.subr.bf16.mxu0 0
      %4746 = vmatpush1.bf16.xpose.msra.mxu0 0
      %4747 = vmatprep.subr.bf16.mxu0 0
      %4748 = vmatpush1.bf16.xpose.msra.mxu0 %v4737
      %4749 = vmatprep.subr.bf16.mxu0 0
      %4750 = vmatpush1.bf16.xpose.msra.mxu0 %v4734
      %4751 = vmatprep.subr.bf16.mxu0 0
      %4752 = vmatpush1.bf16.xpose.msra.mxu0 %v4731
      %4753 = vmatprep.subr.bf16.mxu0 0
      %4754 = vmatpush1.bf16.xpose.msra.mxu0 %v4728
      %4755 = vmatprep.subr.bf16.mxu0 0
      %4756 = vmatpush2.bf16.xpose.msra.mxu0 0
      %4757 = vmatprep.subr.bf16.mxu0 0
      %4758 = vmatpush2.bf16.xpose.msra.mxu0 0
      %4759 = vmatprep.subr.bf16.mxu0 0
      %4760 = vmatpush2.bf16.xpose.msra.mxu0 0
      %4761 = vmatprep.subr.bf16.mxu0 0
      %4762 = vmatpush2.bf16.xpose.msra.mxu0 0
      %4763 = vmatprep.subr.bf16.mxu0 0
      %4764 = vmatpush2.bf16.xpose.msra.mxu0 0
      %4765 = vmatprep.subr.bf16.mxu0 0
      %4766 = vmatpush2.bf16.xpose.msra.mxu0 0
      %4767 = vmatprep.subr.bf16.mxu0 0
      %4768 = vmatpush2.bf16.xpose.msra.mxu0 0
      %4769 = vmatprep.subr.bf16.mxu0 0
      %4770 = vmatpush2.bf16.xpose.msra.mxu0 0
      %4771 = vmatprep.mubr.bf16.mxu0 0
      %4772 = vmatmul.mubr.bf16.gmra.mxu0 %v4716
      %v4773 = vpop.f32.mrf.mxu0
      %v4774 = vadd.f32 %v4691, %v4773
      %v4775 = vpop.f32.mrf.mxu0
      %v4776 = vpop.f32.mrf.mxu0
      %v4777 = vadd.f32 %v4692, %v4776
      %v4778 = vpop.f32.mrf.mxu0
      %4779 = vmatprep.mubr.bf16.mxu0 0
      %4780 = vmatmul.mubr.bf16.gmra.mxu0 %v4719
      %v4781 = vpop.f32.mrf.mxu0
      %v4782 = vadd.f32 %v4693, %v4781
      %v4783 = vpop.f32.mrf.mxu0
      %v4784 = vpop.f32.mrf.mxu0
      %v4785 = vadd.f32 %v4694, %v4784
      %v4786 = vpop.f32.mrf.mxu0
      %4787 = vmatprep.mubr.bf16.mxu0 0
      %4788 = vmatmul.mubr.bf16.gmra.mxu0 %v4722
      %v4789 = vpop.f32.mrf.mxu0
      %v4790 = vadd.f32 %v4695, %v4789
      %v4791 = vpop.f32.mrf.mxu0
      %v4792 = vpop.f32.mrf.mxu0
      %v4793 = vadd.f32 %v4696, %v4792
      %v4794 = vpop.f32.mrf.mxu0
      %4795 = vmatprep.mubr.bf16.mxu0 0
      %4796 = vmatmul.mubr.bf16.gmra.mxu0 %v4725
      %v4797 = vpop.f32.mrf.mxu0
      %v4798 = vadd.f32 %v4697, %v4797
      %v4799 = vpop.f32.mrf.mxu0
      %v4800 = vpop.f32.mrf.mxu0
      %v4801 = vadd.f32 %v4698, %v4800
      %v4802 = vpop.f32.mrf.mxu0
      %4803 = vdwg.mxu0
      %4804 = vrot.lane.b32.xlu0 %v512, 104
      %v4805 = vpop.permute.xlu0 %4804
      %4806 = vrot.lane.b32.xlu0 %v513, 104
      %v4807 = vpop.permute.xlu0 %4806
      %4808 = vrot.lane.b32.xlu0 %v514, 104
      %v4809 = vpop.permute.xlu0 %4808
      %4810 = vrot.lane.b32.xlu0 %v515, 104
      %v4811 = vpop.permute.xlu0 %4810
      %4812 = vrot.lane.b32.xlu0 %v512, 72
      %v4813 = vpop.permute.xlu0 %4812
      %4814 = vrot.lane.b32.xlu0 %v513, 72
      %v4815 = vpop.permute.xlu0 %4814
      %4816 = vrot.lane.b32.xlu0 %v514, 72
      %v4817 = vpop.permute.xlu0 %4816
      %4818 = vrot.lane.b32.xlu0 %v515, 72
      %v4819 = vpop.permute.xlu0 %4818
      %v4821 = vsel %vm544, %v4805, 0
      %v4824 = vsel %vm544, %v4807, 0
      %v4827 = vsel %vm544, %v4809, 0
      %v4830 = vsel %vm544, %v4811, 0
      %v4833 = vsel %vm544, %v4813, 0
      %v4836 = vsel %vm544, %v4815, 0
      %v4839 = vsel %vm544, %v4817, 0
      %v4842 = vsel %vm544, %v4819, 0
      %4844 = vmatprep.subr.bf16.mxu0 0
      %4845 = vmatpush1.bf16.xpose.msra.mxu0 0
      %4846 = vmatprep.subr.bf16.mxu0 0
      %4847 = vmatpush1.bf16.xpose.msra.mxu0 0
      %4848 = vmatprep.subr.bf16.mxu0 0
      %4849 = vmatpush1.bf16.xpose.msra.mxu0 0
      %4850 = vmatprep.subr.bf16.mxu0 0
      %4851 = vmatpush1.bf16.xpose.msra.mxu0 0
      %4852 = vmatprep.subr.bf16.mxu0 0
      %4853 = vmatpush1.bf16.xpose.msra.mxu0 %v4842
      %4854 = vmatprep.subr.bf16.mxu0 0
      %4855 = vmatpush1.bf16.xpose.msra.mxu0 %v4839
      %4856 = vmatprep.subr.bf16.mxu0 0
      %4857 = vmatpush1.bf16.xpose.msra.mxu0 %v4836
      %4858 = vmatprep.subr.bf16.mxu0 0
      %4859 = vmatpush1.bf16.xpose.msra.mxu0 %v4833
      %4860 = vmatprep.subr.bf16.mxu0 0
      %4861 = vmatpush2.bf16.xpose.msra.mxu0 0
      %4862 = vmatprep.subr.bf16.mxu0 0
      %4863 = vmatpush2.bf16.xpose.msra.mxu0 0
      %4864 = vmatprep.subr.bf16.mxu0 0
      %4865 = vmatpush2.bf16.xpose.msra.mxu0 0
      %4866 = vmatprep.subr.bf16.mxu0 0
      %4867 = vmatpush2.bf16.xpose.msra.mxu0 0
      %4868 = vmatprep.subr.bf16.mxu0 0
      %4869 = vmatpush2.bf16.xpose.msra.mxu0 0
      %4870 = vmatprep.subr.bf16.mxu0 0
      %4871 = vmatpush2.bf16.xpose.msra.mxu0 0
      %4872 = vmatprep.subr.bf16.mxu0 0
      %4873 = vmatpush2.bf16.xpose.msra.mxu0 0
      %4874 = vmatprep.subr.bf16.mxu0 0
      %4875 = vmatpush2.bf16.xpose.msra.mxu0 0
      %4876 = vmatprep.mubr.bf16.mxu0 0
      %4877 = vmatmul.mubr.bf16.gmra.mxu0 %v4821
      %v4878 = vpop.f32.mrf.mxu0
      %v4879 = vadd.f32 %v4691, %v4878
      %v4880 = vpop.f32.mrf.mxu0
      %v4881 = vpop.f32.mrf.mxu0
      %v4882 = vadd.f32 %v4692, %v4881
      %v4883 = vpop.f32.mrf.mxu0
      %4884 = vmatprep.mubr.bf16.mxu0 0
      %4885 = vmatmul.mubr.bf16.gmra.mxu0 %v4824
      %v4886 = vpop.f32.mrf.mxu0
      %v4887 = vadd.f32 %v4693, %v4886
      %v4888 = vpop.f32.mrf.mxu0
      %v4889 = vpop.f32.mrf.mxu0
      %v4890 = vadd.f32 %v4694, %v4889
      %v4891 = vpop.f32.mrf.mxu0
      %4892 = vmatprep.mubr.bf16.mxu0 0
      %4893 = vmatmul.mubr.bf16.gmra.mxu0 %v4827
      %v4894 = vpop.f32.mrf.mxu0
      %v4895 = vadd.f32 %v4695, %v4894
      %v4896 = vpop.f32.mrf.mxu0
      %v4897 = vpop.f32.mrf.mxu0
      %v4898 = vadd.f32 %v4696, %v4897
      %v4899 = vpop.f32.mrf.mxu0
      %4900 = vmatprep.mubr.bf16.mxu0 0
      %4901 = vmatmul.mubr.bf16.gmra.mxu0 %v4830
      %v4902 = vpop.f32.mrf.mxu0
      %v4903 = vadd.f32 %v4697, %v4902
      %v4904 = vpop.f32.mrf.mxu0
      %v4905 = vpop.f32.mrf.mxu0
      %v4906 = vadd.f32 %v4698, %v4905
      %v4907 = vpop.f32.mrf.mxu0
      %4908 = vdwg.mxu0
      %4909 = vrot.lane.b32.xlu0 %v516, 104
      %v4910 = vpop.permute.xlu0 %4909
      %4911 = vrot.lane.b32.xlu0 %v517, 104
      %v4912 = vpop.permute.xlu0 %4911
      %4913 = vrot.lane.b32.xlu0 %v518, 104
      %v4914 = vpop.permute.xlu0 %4913
      %4915 = vrot.lane.b32.xlu0 %v519, 104
      %v4916 = vpop.permute.xlu0 %4915
      %4917 = vrot.lane.b32.xlu0 %v516, 72
      %v4918 = vpop.permute.xlu0 %4917
      %4919 = vrot.lane.b32.xlu0 %v517, 72
      %v4920 = vpop.permute.xlu0 %4919
      %4921 = vrot.lane.b32.xlu0 %v518, 72
      %v4922 = vpop.permute.xlu0 %4921
      %4923 = vrot.lane.b32.xlu0 %v519, 72
      %v4924 = vpop.permute.xlu0 %4923
      %v4926 = vsel %vm544, %v4910, 0
      %v4929 = vsel %vm544, %v4912, 0
      %v4932 = vsel %vm544, %v4914, 0
      %v4935 = vsel %vm544, %v4916, 0
      %v4938 = vsel %vm544, %v4918, 0
      %v4941 = vsel %vm544, %v4920, 0
      %v4944 = vsel %vm544, %v4922, 0
      %v4947 = vsel %vm544, %v4924, 0
      %4949 = vmatprep.subr.bf16.mxu0 0
      %4950 = vmatpush1.bf16.xpose.msra.mxu0 0
      %4951 = vmatprep.subr.bf16.mxu0 0
      %4952 = vmatpush1.bf16.xpose.msra.mxu0 0
      %4953 = vmatprep.subr.bf16.mxu0 0
      %4954 = vmatpush1.bf16.xpose.msra.mxu0 0
      %4955 = vmatprep.subr.bf16.mxu0 0
      %4956 = vmatpush1.bf16.xpose.msra.mxu0 0
      %4957 = vmatprep.subr.bf16.mxu0 0
      %4958 = vmatpush1.bf16.xpose.msra.mxu0 %v4947
      %4959 = vmatprep.subr.bf16.mxu0 0
      %4960 = vmatpush1.bf16.xpose.msra.mxu0 %v4944
      %4961 = vmatprep.subr.bf16.mxu0 0
      %4962 = vmatpush1.bf16.xpose.msra.mxu0 %v4941
      %4963 = vmatprep.subr.bf16.mxu0 0
      %4964 = vmatpush1.bf16.xpose.msra.mxu0 %v4938
      %4965 = vmatprep.subr.bf16.mxu0 0
      %4966 = vmatpush2.bf16.xpose.msra.mxu0 0
      %4967 = vmatprep.subr.bf16.mxu0 0
      %4968 = vmatpush2.bf16.xpose.msra.mxu0 0
      %4969 = vmatprep.subr.bf16.mxu0 0
      %4970 = vmatpush2.bf16.xpose.msra.mxu0 0
      %4971 = vmatprep.subr.bf16.mxu0 0
      %4972 = vmatpush2.bf16.xpose.msra.mxu0 0
      %4973 = vmatprep.subr.bf16.mxu0 0
      %4974 = vmatpush2.bf16.xpose.msra.mxu0 0
      %4975 = vmatprep.subr.bf16.mxu0 0
      %4976 = vmatpush2.bf16.xpose.msra.mxu0 0
      %4977 = vmatprep.subr.bf16.mxu0 0
      %4978 = vmatpush2.bf16.xpose.msra.mxu0 0
      %4979 = vmatprep.subr.bf16.mxu0 0
      %4980 = vmatpush2.bf16.xpose.msra.mxu0 0
      %4981 = vmatprep.mubr.bf16.mxu0 0
      %4982 = vmatmul.mubr.bf16.gmra.mxu0 %v4926
      %v4983 = vpop.f32.mrf.mxu0
      %v4984 = vadd.f32 %v4691, %v4983
      %v4985 = vpop.f32.mrf.mxu0
      %v4986 = vpop.f32.mrf.mxu0
      %v4987 = vadd.f32 %v4692, %v4986
      %v4988 = vpop.f32.mrf.mxu0
      %4989 = vmatprep.mubr.bf16.mxu0 0
      %4990 = vmatmul.mubr.bf16.gmra.mxu0 %v4929
      %v4991 = vpop.f32.mrf.mxu0
      %v4992 = vadd.f32 %v4693, %v4991
      %v4993 = vpop.f32.mrf.mxu0
      %v4994 = vpop.f32.mrf.mxu0
      %v4995 = vadd.f32 %v4694, %v4994
      %v4996 = vpop.f32.mrf.mxu0
      %4997 = vmatprep.mubr.bf16.mxu0 0
      %4998 = vmatmul.mubr.bf16.gmra.mxu0 %v4932
      %v4999 = vpop.f32.mrf.mxu0
      %v5000 = vadd.f32 %v4695, %v4999
      %v5001 = vpop.f32.mrf.mxu0
      %v5002 = vpop.f32.mrf.mxu0
      %v5003 = vadd.f32 %v4696, %v5002
      %v5004 = vpop.f32.mrf.mxu0
      %5005 = vmatprep.mubr.bf16.mxu0 0
      %5006 = vmatmul.mubr.bf16.gmra.mxu0 %v4935
      %v5007 = vpop.f32.mrf.mxu0
      %v5008 = vadd.f32 %v4697, %v5007
      %v5009 = vpop.f32.mrf.mxu0
      %v5010 = vpop.f32.mrf.mxu0
      %v5011 = vadd.f32 %v4698, %v5010
      %v5012 = vpop.f32.mrf.mxu0
      %5013 = vdwg.mxu0
      %5014 = vrot.lane.b32.xlu0 %v520, 104
      %v5015 = vpop.permute.xlu0 %5014
      %5016 = vrot.lane.b32.xlu0 %v521, 104
      %v5017 = vpop.permute.xlu0 %5016
      %5018 = vrot.lane.b32.xlu0 %v522, 104
      %v5019 = vpop.permute.xlu0 %5018
      %5020 = vrot.lane.b32.xlu0 %v523, 104
      %v5021 = vpop.permute.xlu0 %5020
      %5022 = vrot.lane.b32.xlu0 %v520, 72
      %v5023 = vpop.permute.xlu0 %5022
      %5024 = vrot.lane.b32.xlu0 %v521, 72
      %v5025 = vpop.permute.xlu0 %5024
      %5026 = vrot.lane.b32.xlu0 %v522, 72
      %v5027 = vpop.permute.xlu0 %5026
      %5028 = vrot.lane.b32.xlu0 %v523, 72
      %v5029 = vpop.permute.xlu0 %5028
      %v5031 = vsel %vm544, %v5015, 0
      %v5034 = vsel %vm544, %v5017, 0
      %v5037 = vsel %vm544, %v5019, 0
      %v5040 = vsel %vm544, %v5021, 0
      %v5043 = vsel %vm544, %v5023, 0
      %v5046 = vsel %vm544, %v5025, 0
      %v5049 = vsel %vm544, %v5027, 0
      %v5052 = vsel %vm544, %v5029, 0
      %5054 = vmatprep.subr.bf16.mxu0 0
      %5055 = vmatpush1.bf16.xpose.msra.mxu0 0
      %5056 = vmatprep.subr.bf16.mxu0 0
      %5057 = vmatpush1.bf16.xpose.msra.mxu0 0
      %5058 = vmatprep.subr.bf16.mxu0 0
      %5059 = vmatpush1.bf16.xpose.msra.mxu0 0
      %5060 = vmatprep.subr.bf16.mxu0 0
      %5061 = vmatpush1.bf16.xpose.msra.mxu0 0
      %5062 = vmatprep.subr.bf16.mxu0 0
      %5063 = vmatpush1.bf16.xpose.msra.mxu0 %v5052
      %5064 = vmatprep.subr.bf16.mxu0 0
      %5065 = vmatpush1.bf16.xpose.msra.mxu0 %v5049
      %5066 = vmatprep.subr.bf16.mxu0 0
      %5067 = vmatpush1.bf16.xpose.msra.mxu0 %v5046
      %5068 = vmatprep.subr.bf16.mxu0 0
      %5069 = vmatpush1.bf16.xpose.msra.mxu0 %v5043
      %5070 = vmatprep.subr.bf16.mxu0 0
      %5071 = vmatpush2.bf16.xpose.msra.mxu0 0
      %5072 = vmatprep.subr.bf16.mxu0 0
      %5073 = vmatpush2.bf16.xpose.msra.mxu0 0
      %5074 = vmatprep.subr.bf16.mxu0 0
      %5075 = vmatpush2.bf16.xpose.msra.mxu0 0
      %5076 = vmatprep.subr.bf16.mxu0 0
      %5077 = vmatpush2.bf16.xpose.msra.mxu0 0
      %5078 = vmatprep.subr.bf16.mxu0 0
      %5079 = vmatpush2.bf16.xpose.msra.mxu0 0
      %5080 = vmatprep.subr.bf16.mxu0 0
      %5081 = vmatpush2.bf16.xpose.msra.mxu0 0
      %5082 = vmatprep.subr.bf16.mxu0 0
      %5083 = vmatpush2.bf16.xpose.msra.mxu0 0
      %5084 = vmatprep.subr.bf16.mxu0 0
      %5085 = vmatpush2.bf16.xpose.msra.mxu0 0
      %5086 = vmatprep.mubr.bf16.mxu0 0
      %5087 = vmatmul.mubr.bf16.gmra.mxu0 %v5031
      %v5088 = vpop.f32.mrf.mxu0
      %v5089 = vadd.f32 %v4691, %v5088
      %v5090 = vpop.f32.mrf.mxu0
      %v5091 = vpop.f32.mrf.mxu0
      %v5092 = vadd.f32 %v4692, %v5091
      %v5093 = vpop.f32.mrf.mxu0
      %5094 = vmatprep.mubr.bf16.mxu0 0
      %5095 = vmatmul.mubr.bf16.gmra.mxu0 %v5034
      %v5096 = vpop.f32.mrf.mxu0
      %v5097 = vadd.f32 %v4693, %v5096
      %v5098 = vpop.f32.mrf.mxu0
      %v5099 = vpop.f32.mrf.mxu0
      %v5100 = vadd.f32 %v4694, %v5099
      %v5101 = vpop.f32.mrf.mxu0
      %5102 = vmatprep.mubr.bf16.mxu0 0
      %5103 = vmatmul.mubr.bf16.gmra.mxu0 %v5037
      %v5104 = vpop.f32.mrf.mxu0
      %v5105 = vadd.f32 %v4695, %v5104
      %v5106 = vpop.f32.mrf.mxu0
      %v5107 = vpop.f32.mrf.mxu0
      %v5108 = vadd.f32 %v4696, %v5107
      %v5109 = vpop.f32.mrf.mxu0
      %5110 = vmatprep.mubr.bf16.mxu0 0
      %5111 = vmatmul.mubr.bf16.gmra.mxu0 %v5040
      %v5112 = vpop.f32.mrf.mxu0
      %v5113 = vadd.f32 %v4697, %v5112
      %v5114 = vpop.f32.mrf.mxu0
      %v5115 = vpop.f32.mrf.mxu0
      %v5116 = vadd.f32 %v4698, %v5115
      %v5117 = vpop.f32.mrf.mxu0
      %5118 = vdwg.mxu0
      %v5119 = vsel %vm937, %v4774, -inf
      %5120 = vmax.xlane.f32.xlu0 %v5119
      %v5121 = vpop.xlane.xlu0 %5120
      %v5122 = vsel %vm937, %v4777, -inf
      %5123 = vmax.xlane.f32.xlu0 %v5122
      %v5124 = vpop.xlane.xlu0 %5123
      %v5125 = vsel %vm937, %v4782, -inf
      %5126 = vmax.xlane.f32.xlu0 %v5125
      %v5127 = vpop.xlane.xlu0 %5126
      %v5128 = vsel %vm937, %v4785, -inf
      %5129 = vmax.xlane.f32.xlu0 %v5128
      %v5130 = vpop.xlane.xlu0 %5129
      %v5131 = vsel %vm937, %v4790, -inf
      %5132 = vmax.xlane.f32.xlu0 %v5131
      %v5133 = vpop.xlane.xlu0 %5132
      %v5134 = vsel %vm937, %v4793, -inf
      %5135 = vmax.xlane.f32.xlu0 %v5134
      %v5136 = vpop.xlane.xlu0 %5135
      %v5137 = vsel %vm937, %v4798, -inf
      %5138 = vmax.xlane.f32.xlu0 %v5137
      %v5139 = vpop.xlane.xlu0 %5138
      %v5140 = vsel %vm937, %v4801, -inf
      %5141 = vmax.xlane.f32.xlu0 %v5140
      %v5142 = vpop.xlane.xlu0 %5141
      %v5143 = vsel %vm937, %v4879, -inf
      %5144 = vmax.xlane.f32.xlu0 %v5143
      %v5145 = vpop.xlane.xlu0 %5144
      %v5146 = vsel %vm937, %v4882, -inf
      %5147 = vmax.xlane.f32.xlu0 %v5146
      %v5148 = vpop.xlane.xlu0 %5147
      %v5149 = vsel %vm937, %v4887, -inf
      %5150 = vmax.xlane.f32.xlu0 %v5149
      %v5151 = vpop.xlane.xlu0 %5150
      %v5152 = vsel %vm937, %v4890, -inf
      %5153 = vmax.xlane.f32.xlu0 %v5152
      %v5154 = vpop.xlane.xlu0 %5153
      %v5155 = vsel %vm937, %v4895, -inf
      %5156 = vmax.xlane.f32.xlu0 %v5155
      %v5157 = vpop.xlane.xlu0 %5156
      %v5158 = vsel %vm937, %v4898, -inf
      %5159 = vmax.xlane.f32.xlu0 %v5158
      %v5160 = vpop.xlane.xlu0 %5159
      %v5161 = vsel %vm937, %v4903, -inf
      %5162 = vmax.xlane.f32.xlu0 %v5161
      %v5163 = vpop.xlane.xlu0 %5162
      %v5164 = vsel %vm937, %v4906, -inf
      %5165 = vmax.xlane.f32.xlu0 %v5164
      %v5166 = vpop.xlane.xlu0 %5165
      %v5167 = vsel %vm937, %v4984, -inf
      %5168 = vmax.xlane.f32.xlu0 %v5167
      %v5169 = vpop.xlane.xlu0 %5168
      %v5170 = vsel %vm937, %v4987, -inf
      %5171 = vmax.xlane.f32.xlu0 %v5170
      %v5172 = vpop.xlane.xlu0 %5171
      %v5173 = vsel %vm937, %v4992, -inf
      %5174 = vmax.xlane.f32.xlu0 %v5173
      %v5175 = vpop.xlane.xlu0 %5174
      %v5176 = vsel %vm937, %v4995, -inf
      %5177 = vmax.xlane.f32.xlu0 %v5176
      %v5178 = vpop.xlane.xlu0 %5177
      %v5179 = vsel %vm937, %v5000, -inf
      %5180 = vmax.xlane.f32.xlu0 %v5179
      %v5181 = vpop.xlane.xlu0 %5180
      %v5182 = vsel %vm937, %v5003, -inf
      %5183 = vmax.xlane.f32.xlu0 %v5182
      %v5184 = vpop.xlane.xlu0 %5183
      %v5185 = vsel %vm937, %v5008, -inf
      %5186 = vmax.xlane.f32.xlu0 %v5185
      %v5187 = vpop.xlane.xlu0 %5186
      %v5188 = vsel %vm937, %v5011, -inf
      %5189 = vmax.xlane.f32.xlu0 %v5188
      %v5190 = vpop.xlane.xlu0 %5189
      %v5191 = vsel %vm937, %v5089, -inf
      %5192 = vmax.xlane.f32.xlu0 %v5191
      %v5193 = vpop.xlane.xlu0 %5192
      %v5194 = vsel %vm937, %v5092, -inf
      %5195 = vmax.xlane.f32.xlu0 %v5194
      %v5196 = vpop.xlane.xlu0 %5195
      %v5197 = vsel %vm937, %v5097, -inf
      %5198 = vmax.xlane.f32.xlu0 %v5197
      %v5199 = vpop.xlane.xlu0 %5198
      %v5200 = vsel %vm937, %v5100, -inf
      %5201 = vmax.xlane.f32.xlu0 %v5200
      %v5202 = vpop.xlane.xlu0 %5201
      %v5203 = vsel %vm937, %v5105, -inf
      %5204 = vmax.xlane.f32.xlu0 %v5203
      %v5205 = vpop.xlane.xlu0 %5204
      %v5206 = vsel %vm937, %v5108, -inf
      %5207 = vmax.xlane.f32.xlu0 %v5206
      %v5208 = vpop.xlane.xlu0 %5207
      %v5209 = vsel %vm937, %v5113, -inf
      %5210 = vmax.xlane.f32.xlu0 %v5209
      %v5211 = vpop.xlane.xlu0 %5210
      %v5212 = vsel %vm937, %v5116, -inf
      %5213 = vmax.xlane.f32.xlu0 %v5212
      %v5214 = vpop.xlane.xlu0 %5213
      %v5215 = vsub.f32 %v4774, %v5121
      %v5216 = vsub.f32 %v4777, %v5124
      %v5217 = vsub.f32 %v4782, %v5127
      %v5218 = vsub.f32 %v4785, %v5130
      %v5219 = vsub.f32 %v4790, %v5133
      %v5220 = vsub.f32 %v4793, %v5136
      %v5221 = vsub.f32 %v4798, %v5139
      %v5222 = vsub.f32 %v4801, %v5142
      %v5223 = vsub.f32 %v4879, %v5145
      %v5224 = vsub.f32 %v4882, %v5148
      %v5225 = vsub.f32 %v4887, %v5151
      %v5226 = vsub.f32 %v4890, %v5154
      %v5227 = vsub.f32 %v4895, %v5157
      %v5228 = vsub.f32 %v4898, %v5160
      %v5229 = vsub.f32 %v4903, %v5163
      %v5230 = vsub.f32 %v4906, %v5166
      %v5231 = vsub.f32 %v4984, %v5169
      %v5232 = vsub.f32 %v4987, %v5172
      %v5233 = vsub.f32 %v4992, %v5175
      %v5234 = vsub.f32 %v4995, %v5178
      %v5235 = vsub.f32 %v5000, %v5181
      %v5236 = vsub.f32 %v5003, %v5184
      %v5237 = vsub.f32 %v5008, %v5187
      %v5238 = vsub.f32 %v5011, %v5190
      %v5239 = vsub.f32 %v5089, %v5193
      %v5240 = vsub.f32 %v5092, %v5196
      %v5241 = vsub.f32 %v5097, %v5199
      %v5242 = vsub.f32 %v5100, %v5202
      %v5243 = vsub.f32 %v5105, %v5205
      %v5244 = vsub.f32 %v5108, %v5208
      %v5245 = vsub.f32 %v5113, %v5211
      %v5246 = vsub.f32 %v5116, %v5214
      %v5247 = vmul.f32 %v5215, 1.442695
      %v5248 = vpow.pop %v5247
      %v5249 = vmul.f32 %v5216, 1.442695
      %v5250 = vpow.pop %v5249
      %v5251 = vmul.f32 %v5217, 1.442695
      %v5252 = vpow.pop %v5251
      %v5253 = vmul.f32 %v5218, 1.442695
      %v5254 = vpow.pop %v5253
      %v5255 = vmul.f32 %v5219, 1.442695
      %v5256 = vpow.pop %v5255
      %v5257 = vmul.f32 %v5220, 1.442695
      %v5258 = vpow.pop %v5257
      %v5259 = vmul.f32 %v5221, 1.442695
      %v5260 = vpow.pop %v5259
      %v5261 = vmul.f32 %v5222, 1.442695
      %v5262 = vpow.pop %v5261
      %v5263 = vmul.f32 %v5223, 1.442695
      %v5264 = vpow.pop %v5263
      %v5265 = vmul.f32 %v5224, 1.442695
      %v5266 = vpow.pop %v5265
      %v5267 = vmul.f32 %v5225, 1.442695
      %v5268 = vpow.pop %v5267
      %v5269 = vmul.f32 %v5226, 1.442695
      %v5270 = vpow.pop %v5269
      %v5271 = vmul.f32 %v5227, 1.442695
      %v5272 = vpow.pop %v5271
      %v5273 = vmul.f32 %v5228, 1.442695
      %v5274 = vpow.pop %v5273
      %v5275 = vmul.f32 %v5229, 1.442695
      %v5276 = vpow.pop %v5275
      %v5277 = vmul.f32 %v5230, 1.442695
      %v5278 = vpow.pop %v5277
      %v5279 = vmul.f32 %v5231, 1.442695
      %v5280 = vpow.pop %v5279
      %v5281 = vmul.f32 %v5232, 1.442695
      %v5282 = vpow.pop %v5281
      %v5283 = vmul.f32 %v5233, 1.442695
      %v5284 = vpow.pop %v5283
      %v5285 = vmul.f32 %v5234, 1.442695
      %v5286 = vpow.pop %v5285
      %v5287 = vmul.f32 %v5235, 1.442695
      %v5288 = vpow.pop %v5287
      %v5289 = vmul.f32 %v5236, 1.442695
      %v5290 = vpow.pop %v5289
      %v5291 = vmul.f32 %v5237, 1.442695
      %v5292 = vpow.pop %v5291
      %v5293 = vmul.f32 %v5238, 1.442695
      %v5294 = vpow.pop %v5293
      %v5295 = vmul.f32 %v5239, 1.442695
      %v5296 = vpow.pop %v5295
      %v5297 = vmul.f32 %v5240, 1.442695
      %v5298 = vpow.pop %v5297
      %v5299 = vmul.f32 %v5241, 1.442695
      %v5300 = vpow.pop %v5299
      %v5301 = vmul.f32 %v5242, 1.442695
      %v5302 = vpow.pop %v5301
      %v5303 = vmul.f32 %v5243, 1.442695
      %v5304 = vpow.pop %v5303
      %v5305 = vmul.f32 %v5244, 1.442695
      %v5306 = vpow.pop %v5305
      %v5307 = vmul.f32 %v5245, 1.442695
      %v5308 = vpow.pop %v5307
      %v5309 = vmul.f32 %v5246, 1.442695
      %v5310 = vpow.pop %v5309
      %v5311 = vsel %vm937, %v5248, 0.0
      %5312 = vadd.xlane.f32.xlu0 %v5311
      %v5313 = vpop.xlane.xlu0 %5312
      %v5314 = vsel %vm937, %v5250, 0.0
      %5315 = vadd.xlane.f32.xlu0 %v5314
      %v5316 = vpop.xlane.xlu0 %5315
      %v5317 = vsel %vm937, %v5252, 0.0
      %5318 = vadd.xlane.f32.xlu0 %v5317
      %v5319 = vpop.xlane.xlu0 %5318
      %v5320 = vsel %vm937, %v5254, 0.0
      %5321 = vadd.xlane.f32.xlu0 %v5320
      %v5322 = vpop.xlane.xlu0 %5321
      %v5323 = vsel %vm937, %v5256, 0.0
      %5324 = vadd.xlane.f32.xlu0 %v5323
      %v5325 = vpop.xlane.xlu0 %5324
      %v5326 = vsel %vm937, %v5258, 0.0
      %5327 = vadd.xlane.f32.xlu0 %v5326
      %v5328 = vpop.xlane.xlu0 %5327
      %v5329 = vsel %vm937, %v5260, 0.0
      %5330 = vadd.xlane.f32.xlu0 %v5329
      %v5331 = vpop.xlane.xlu0 %5330
      %v5332 = vsel %vm937, %v5262, 0.0
      %5333 = vadd.xlane.f32.xlu0 %v5332
      %v5334 = vpop.xlane.xlu0 %5333
      %v5335 = vsel %vm937, %v5264, 0.0
      %5336 = vadd.xlane.f32.xlu0 %v5335
      %v5337 = vpop.xlane.xlu0 %5336
      %v5338 = vsel %vm937, %v5266, 0.0
      %5339 = vadd.xlane.f32.xlu0 %v5338
      %v5340 = vpop.xlane.xlu0 %5339
      %v5341 = vsel %vm937, %v5268, 0.0
      %5342 = vadd.xlane.f32.xlu0 %v5341
      %v5343 = vpop.xlane.xlu0 %5342
      %v5344 = vsel %vm937, %v5270, 0.0
      %5345 = vadd.xlane.f32.xlu0 %v5344
      %v5346 = vpop.xlane.xlu0 %5345
      %v5347 = vsel %vm937, %v5272, 0.0
      %5348 = vadd.xlane.f32.xlu0 %v5347
      %v5349 = vpop.xlane.xlu0 %5348
      %v5350 = vsel %vm937, %v5274, 0.0
      %5351 = vadd.xlane.f32.xlu0 %v5350
      %v5352 = vpop.xlane.xlu0 %5351
      %v5353 = vsel %vm937, %v5276, 0.0
      %5354 = vadd.xlane.f32.xlu0 %v5353
      %v5355 = vpop.xlane.xlu0 %5354
      %v5356 = vsel %vm937, %v5278, 0.0
      %5357 = vadd.xlane.f32.xlu0 %v5356
      %v5358 = vpop.xlane.xlu0 %5357
      %v5359 = vsel %vm937, %v5280, 0.0
      %5360 = vadd.xlane.f32.xlu0 %v5359
      %v5361 = vpop.xlane.xlu0 %5360
      %v5362 = vsel %vm937, %v5282, 0.0
      %5363 = vadd.xlane.f32.xlu0 %v5362
      %v5364 = vpop.xlane.xlu0 %5363
      %v5365 = vsel %vm937, %v5284, 0.0
      %5366 = vadd.xlane.f32.xlu0 %v5365
      %v5367 = vpop.xlane.xlu0 %5366
      %v5368 = vsel %vm937, %v5286, 0.0
      %5369 = vadd.xlane.f32.xlu0 %v5368
      %v5370 = vpop.xlane.xlu0 %5369
      %v5371 = vsel %vm937, %v5288, 0.0
      %5372 = vadd.xlane.f32.xlu0 %v5371
      %v5373 = vpop.xlane.xlu0 %5372
      %v5374 = vsel %vm937, %v5290, 0.0
      %5375 = vadd.xlane.f32.xlu0 %v5374
      %v5376 = vpop.xlane.xlu0 %5375
      %v5377 = vsel %vm937, %v5292, 0.0
      %5378 = vadd.xlane.f32.xlu0 %v5377
      %v5379 = vpop.xlane.xlu0 %5378
      %v5380 = vsel %vm937, %v5294, 0.0
      %5381 = vadd.xlane.f32.xlu0 %v5380
      %v5382 = vpop.xlane.xlu0 %5381
      %v5383 = vsel %vm937, %v5296, 0.0
      %5384 = vadd.xlane.f32.xlu0 %v5383
      %v5385 = vpop.xlane.xlu0 %5384
      %v5386 = vsel %vm937, %v5298, 0.0
      %5387 = vadd.xlane.f32.xlu0 %v5386
      %v5388 = vpop.xlane.xlu0 %5387
      %v5389 = vsel %vm937, %v5300, 0.0
      %5390 = vadd.xlane.f32.xlu0 %v5389
      %v5391 = vpop.xlane.xlu0 %5390
      %v5392 = vsel %vm937, %v5302, 0.0
      %5393 = vadd.xlane.f32.xlu0 %v5392
      %v5394 = vpop.xlane.xlu0 %5393
      %v5395 = vsel %vm937, %v5304, 0.0
      %5396 = vadd.xlane.f32.xlu0 %v5395
      %v5397 = vpop.xlane.xlu0 %5396
      %v5398 = vsel %vm937, %v5306, 0.0
      %5399 = vadd.xlane.f32.xlu0 %v5398
      %v5400 = vpop.xlane.xlu0 %5399
      %v5401 = vsel %vm937, %v5308, 0.0
      %5402 = vadd.xlane.f32.xlu0 %v5401
      %v5403 = vpop.xlane.xlu0 %5402
      %v5404 = vsel %vm937, %v5310, 0.0
      %5405 = vadd.xlane.f32.xlu0 %v5404
      %v5406 = vpop.xlane.xlu0 %5405
      %v5407 = vrcp.pop %v5313
      %v5408 = vrcp.pop %v5316
      %v5409 = vrcp.pop %v5319
      %v5410 = vrcp.pop %v5322
      %v5411 = vrcp.pop %v5325
      %v5412 = vrcp.pop %v5328
      %v5413 = vrcp.pop %v5331
      %v5414 = vrcp.pop %v5334
      %v5415 = vrcp.pop %v5337
      %v5416 = vrcp.pop %v5340
      %v5417 = vrcp.pop %v5343
      %v5418 = vrcp.pop %v5346
      %v5419 = vrcp.pop %v5349
      %v5420 = vrcp.pop %v5352
      %v5421 = vrcp.pop %v5355
      %v5422 = vrcp.pop %v5358
      %v5423 = vrcp.pop %v5361
      %v5424 = vrcp.pop %v5364
      %v5425 = vrcp.pop %v5367
      %v5426 = vrcp.pop %v5370
      %v5427 = vrcp.pop %v5373
      %v5428 = vrcp.pop %v5376
      %v5429 = vrcp.pop %v5379
      %v5430 = vrcp.pop %v5382
      %v5431 = vrcp.pop %v5385
      %v5432 = vrcp.pop %v5388
      %v5433 = vrcp.pop %v5391
      %v5434 = vrcp.pop %v5394
      %v5435 = vrcp.pop %v5397
      %v5436 = vrcp.pop %v5400
      %v5437 = vrcp.pop %v5403
      %v5438 = vrcp.pop %v5406
      %v5439 = vmul.f32 %v5248, %v5407
      %v5440 = vmul.f32 %v5250, %v5408
      %v5441 = vmul.f32 %v5252, %v5409
      %v5442 = vmul.f32 %v5254, %v5410
      %v5443 = vmul.f32 %v5256, %v5411
      %v5444 = vmul.f32 %v5258, %v5412
      %v5445 = vmul.f32 %v5260, %v5413
      %v5446 = vmul.f32 %v5262, %v5414
      %v5447 = vmul.f32 %v5264, %v5415
      %v5448 = vmul.f32 %v5266, %v5416
      %v5449 = vmul.f32 %v5268, %v5417
      %v5450 = vmul.f32 %v5270, %v5418
      %v5451 = vmul.f32 %v5272, %v5419
      %v5452 = vmul.f32 %v5274, %v5420
      %v5453 = vmul.f32 %v5276, %v5421
      %v5454 = vmul.f32 %v5278, %v5422
      %v5455 = vmul.f32 %v5280, %v5423
      %v5456 = vmul.f32 %v5282, %v5424
      %v5457 = vmul.f32 %v5284, %v5425
      %v5458 = vmul.f32 %v5286, %v5426
      %v5459 = vmul.f32 %v5288, %v5427
      %v5460 = vmul.f32 %v5290, %v5428
      %v5461 = vmul.f32 %v5292, %v5429
      %v5462 = vmul.f32 %v5294, %v5430
      %v5463 = vmul.f32 %v5296, %v5431
      %v5464 = vmul.f32 %v5298, %v5432
      %v5465 = vmul.f32 %v5300, %v5433
      %v5466 = vmul.f32 %v5302, %v5434
      %v5467 = vmul.f32 %v5304, %v5435
      %v5468 = vmul.f32 %v5306, %v5436
      %v5469 = vmul.f32 %v5308, %v5437
      %v5470 = vmul.f32 %v5310, %v5438
      %v5471 = vpack.c.bf16 %v5440, %v5439
      %v5472 = vpack.c.bf16 %v5442, %v5441
      %v5473 = vpack.c.bf16 %v5444, %v5443
      %v5474 = vpack.c.bf16 %v5446, %v5445
      %v5475 = vpack.c.bf16 %v5448, %v5447
      %v5476 = vpack.c.bf16 %v5450, %v5449
      %v5477 = vpack.c.bf16 %v5452, %v5451
      %v5478 = vpack.c.bf16 %v5454, %v5453
      %v5479 = vpack.c.bf16 %v5456, %v5455
      %v5480 = vpack.c.bf16 %v5458, %v5457
      %v5481 = vpack.c.bf16 %v5460, %v5459
      %v5482 = vpack.c.bf16 %v5462, %v5461
      %v5483 = vpack.c.bf16 %v5464, %v5463
      %v5484 = vpack.c.bf16 %v5466, %v5465
      %v5485 = vpack.c.bf16 %v5468, %v5467
      %v5486 = vpack.c.bf16 %v5470, %v5469
      %5487 = vrot.lane.b32.xlu0 %v508, 40
      %v5488 = vpop.permute.xlu0 %5487
      %5489 = vrot.lane.b32.xlu0 %v509, 40
      %v5490 = vpop.permute.xlu0 %5489
      %5491 = vrot.lane.b32.xlu0 %v510, 40
      %v5492 = vpop.permute.xlu0 %5491
      %5493 = vrot.lane.b32.xlu0 %v511, 40
      %v5494 = vpop.permute.xlu0 %5493
      %v5500 = vsel %vm937, %v5471, 0
      %v5503 = vsel %vm937, %v5472, 0
      %v5506 = vsel %vm937, %v5473, 0
      %v5509 = vsel %vm937, %v5474, 0
      %5511 = vmatprep.subr.bf16.mxu0 0
      %5512 = vmatpush1.bf16.msra.mxu0 0
      %5513 = vmatprep.subr.bf16.mxu0 0
      %5514 = vmatpush1.bf16.msra.mxu0 0
      %5515 = vmatprep.subr.bf16.mxu0 0
      %5516 = vmatpush1.bf16.msra.mxu0 0
      %5517 = vmatprep.subr.bf16.mxu0 0
      %5518 = vmatpush1.bf16.msra.mxu0 0
      %5519 = vmatprep.subr.bf16.mxu0 0
      %5520 = vmatpush1.bf16.msra.mxu0 %v5494
      %5521 = vmatprep.subr.bf16.mxu0 0
      %5522 = vmatpush1.bf16.msra.mxu0 %v5492
      %5523 = vmatprep.subr.bf16.mxu0 0
      %5524 = vmatpush1.bf16.msra.mxu0 %v5490
      %5525 = vmatprep.subr.bf16.mxu0 0
      %5526 = vmatpush1.bf16.msra.mxu0 %v5488
      %5527 = vmatprep.subr.bf16.mxu0 0
      %5528 = vmatpush2.bf16.msra.mxu0 0
      %5529 = vmatprep.subr.bf16.mxu0 0
      %5530 = vmatpush2.bf16.msra.mxu0 0
      %5531 = vmatprep.subr.bf16.mxu0 0
      %5532 = vmatpush2.bf16.msra.mxu0 0
      %5533 = vmatprep.subr.bf16.mxu0 0
      %5534 = vmatpush2.bf16.msra.mxu0 0
      %5535 = vmatprep.subr.bf16.mxu0 0
      %5536 = vmatpush2.bf16.msra.mxu0 0
      %5537 = vmatprep.subr.bf16.mxu0 0
      %5538 = vmatpush2.bf16.msra.mxu0 0
      %5539 = vmatprep.subr.bf16.mxu0 0
      %5540 = vmatpush2.bf16.msra.mxu0 0
      %5541 = vmatprep.subr.bf16.mxu0 0
      %5542 = vmatpush2.bf16.msra.mxu0 0
      %5543 = vmatprep.mubr.bf16.mxu0 0
      %5544 = vmatmul.mubr.bf16.gmra.mxu0 %v5500
      %v5545 = vpop.f32.mrf.mxu0
      %v5546 = vadd.f32 0.0, %v5545
      %v5547 = vpop.f32.mrf.mxu0
      %v5548 = vpop.f32.mrf.mxu0
      %v5549 = vadd.f32 0.0, %v5548
      %v5550 = vpop.f32.mrf.mxu0
      %5551 = vmatprep.mubr.bf16.mxu0 0
      %5552 = vmatmul.mubr.bf16.gmra.mxu0 %v5503
      %v5553 = vpop.f32.mrf.mxu0
      %v5554 = vadd.f32 0.0, %v5553
      %v5555 = vpop.f32.mrf.mxu0
      %v5556 = vpop.f32.mrf.mxu0
      %v5557 = vadd.f32 0.0, %v5556
      %v5558 = vpop.f32.mrf.mxu0
      %5559 = vmatprep.mubr.bf16.mxu0 0
      %5560 = vmatmul.mubr.bf16.gmra.mxu0 %v5506
      %v5561 = vpop.f32.mrf.mxu0
      %v5562 = vadd.f32 0.0, %v5561
      %v5563 = vpop.f32.mrf.mxu0
      %v5564 = vpop.f32.mrf.mxu0
      %v5565 = vadd.f32 0.0, %v5564
      %v5566 = vpop.f32.mrf.mxu0
      %5567 = vmatprep.mubr.bf16.mxu0 0
      %5568 = vmatmul.mubr.bf16.gmra.mxu0 %v5509
      %v5569 = vpop.f32.mrf.mxu0
      %v5570 = vadd.f32 0.0, %v5569
      %v5571 = vpop.f32.mrf.mxu0
      %v5572 = vpop.f32.mrf.mxu0
      %v5573 = vadd.f32 0.0, %v5572
      %v5574 = vpop.f32.mrf.mxu0
      %5575 = vdwg.mxu0
      %5576 = vrot.lane.b32.xlu0 %v512, 40
      %v5577 = vpop.permute.xlu0 %5576
      %5578 = vrot.lane.b32.xlu0 %v513, 40
      %v5579 = vpop.permute.xlu0 %5578
      %5580 = vrot.lane.b32.xlu0 %v514, 40
      %v5581 = vpop.permute.xlu0 %5580
      %5582 = vrot.lane.b32.xlu0 %v515, 40
      %v5583 = vpop.permute.xlu0 %5582
      %v5589 = vsel %vm937, %v5475, 0
      %v5592 = vsel %vm937, %v5476, 0
      %v5595 = vsel %vm937, %v5477, 0
      %v5598 = vsel %vm937, %v5478, 0
      %5600 = vmatprep.subr.bf16.mxu0 0
      %5601 = vmatpush1.bf16.msra.mxu0 0
      %5602 = vmatprep.subr.bf16.mxu0 0
      %5603 = vmatpush1.bf16.msra.mxu0 0
      %5604 = vmatprep.subr.bf16.mxu0 0
      %5605 = vmatpush1.bf16.msra.mxu0 0
      %5606 = vmatprep.subr.bf16.mxu0 0
      %5607 = vmatpush1.bf16.msra.mxu0 0
      %5608 = vmatprep.subr.bf16.mxu0 0
      %5609 = vmatpush1.bf16.msra.mxu0 %v5583
      %5610 = vmatprep.subr.bf16.mxu0 0
      %5611 = vmatpush1.bf16.msra.mxu0 %v5581
      %5612 = vmatprep.subr.bf16.mxu0 0
      %5613 = vmatpush1.bf16.msra.mxu0 %v5579
      %5614 = vmatprep.subr.bf16.mxu0 0
      %5615 = vmatpush1.bf16.msra.mxu0 %v5577
      %5616 = vmatprep.subr.bf16.mxu0 0
      %5617 = vmatpush2.bf16.msra.mxu0 0
      %5618 = vmatprep.subr.bf16.mxu0 0
      %5619 = vmatpush2.bf16.msra.mxu0 0
      %5620 = vmatprep.subr.bf16.mxu0 0
      %5621 = vmatpush2.bf16.msra.mxu0 0
      %5622 = vmatprep.subr.bf16.mxu0 0
      %5623 = vmatpush2.bf16.msra.mxu0 0
      %5624 = vmatprep.subr.bf16.mxu0 0
      %5625 = vmatpush2.bf16.msra.mxu0 0
      %5626 = vmatprep.subr.bf16.mxu0 0
      %5627 = vmatpush2.bf16.msra.mxu0 0
      %5628 = vmatprep.subr.bf16.mxu0 0
      %5629 = vmatpush2.bf16.msra.mxu0 0
      %5630 = vmatprep.subr.bf16.mxu0 0
      %5631 = vmatpush2.bf16.msra.mxu0 0
      %5632 = vmatprep.mubr.bf16.mxu0 0
      %5633 = vmatmul.mubr.bf16.gmra.mxu0 %v5589
      %v5634 = vpop.f32.mrf.mxu0
      %v5635 = vadd.f32 0.0, %v5634
      %v5636 = vpop.f32.mrf.mxu0
      %v5637 = vpop.f32.mrf.mxu0
      %v5638 = vadd.f32 0.0, %v5637
      %v5639 = vpop.f32.mrf.mxu0
      %5640 = vmatprep.mubr.bf16.mxu0 0
      %5641 = vmatmul.mubr.bf16.gmra.mxu0 %v5592
      %v5642 = vpop.f32.mrf.mxu0
      %v5643 = vadd.f32 0.0, %v5642
      %v5644 = vpop.f32.mrf.mxu0
      %v5645 = vpop.f32.mrf.mxu0
      %v5646 = vadd.f32 0.0, %v5645
      %v5647 = vpop.f32.mrf.mxu0
      %5648 = vmatprep.mubr.bf16.mxu0 0
      %5649 = vmatmul.mubr.bf16.gmra.mxu0 %v5595
      %v5650 = vpop.f32.mrf.mxu0
      %v5651 = vadd.f32 0.0, %v5650
      %v5652 = vpop.f32.mrf.mxu0
      %v5653 = vpop.f32.mrf.mxu0
      %v5654 = vadd.f32 0.0, %v5653
      %v5655 = vpop.f32.mrf.mxu0
      %5656 = vmatprep.mubr.bf16.mxu0 0
      %5657 = vmatmul.mubr.bf16.gmra.mxu0 %v5598
      %v5658 = vpop.f32.mrf.mxu0
      %v5659 = vadd.f32 0.0, %v5658
      %v5660 = vpop.f32.mrf.mxu0
      %v5661 = vpop.f32.mrf.mxu0
      %v5662 = vadd.f32 0.0, %v5661
      %v5663 = vpop.f32.mrf.mxu0
      %5664 = vdwg.mxu0
      %5665 = vrot.lane.b32.xlu0 %v516, 40
      %v5666 = vpop.permute.xlu0 %5665
      %5667 = vrot.lane.b32.xlu0 %v517, 40
      %v5668 = vpop.permute.xlu0 %5667
      %5669 = vrot.lane.b32.xlu0 %v518, 40
      %v5670 = vpop.permute.xlu0 %5669
      %5671 = vrot.lane.b32.xlu0 %v519, 40
      %v5672 = vpop.permute.xlu0 %5671
      %v5678 = vsel %vm937, %v5479, 0
      %v5681 = vsel %vm937, %v5480, 0
      %v5684 = vsel %vm937, %v5481, 0
      %v5687 = vsel %vm937, %v5482, 0
      %5689 = vmatprep.subr.bf16.mxu0 0
      %5690 = vmatpush1.bf16.msra.mxu0 0
      %5691 = vmatprep.subr.bf16.mxu0 0
      %5692 = vmatpush1.bf16.msra.mxu0 0
      %5693 = vmatprep.subr.bf16.mxu0 0
      %5694 = vmatpush1.bf16.msra.mxu0 0
      %5695 = vmatprep.subr.bf16.mxu0 0
      %5696 = vmatpush1.bf16.msra.mxu0 0
      %5697 = vmatprep.subr.bf16.mxu0 0
      %5698 = vmatpush1.bf16.msra.mxu0 %v5672
      %5699 = vmatprep.subr.bf16.mxu0 0
      %5700 = vmatpush1.bf16.msra.mxu0 %v5670
      %5701 = vmatprep.subr.bf16.mxu0 0
      %5702 = vmatpush1.bf16.msra.mxu0 %v5668
      %5703 = vmatprep.subr.bf16.mxu0 0
      %5704 = vmatpush1.bf16.msra.mxu0 %v5666
      %5705 = vmatprep.subr.bf16.mxu0 0
      %5706 = vmatpush2.bf16.msra.mxu0 0
      %5707 = vmatprep.subr.bf16.mxu0 0
      %5708 = vmatpush2.bf16.msra.mxu0 0
      %5709 = vmatprep.subr.bf16.mxu0 0
      %5710 = vmatpush2.bf16.msra.mxu0 0
      %5711 = vmatprep.subr.bf16.mxu0 0
      %5712 = vmatpush2.bf16.msra.mxu0 0
      %5713 = vmatprep.subr.bf16.mxu0 0
      %5714 = vmatpush2.bf16.msra.mxu0 0
      %5715 = vmatprep.subr.bf16.mxu0 0
      %5716 = vmatpush2.bf16.msra.mxu0 0
      %5717 = vmatprep.subr.bf16.mxu0 0
      %5718 = vmatpush2.bf16.msra.mxu0 0
      %5719 = vmatprep.subr.bf16.mxu0 0
      %5720 = vmatpush2.bf16.msra.mxu0 0
      %5721 = vmatprep.mubr.bf16.mxu0 0
      %5722 = vmatmul.mubr.bf16.gmra.mxu0 %v5678
      %v5723 = vpop.f32.mrf.mxu0
      %v5724 = vadd.f32 0.0, %v5723
      %v5725 = vpop.f32.mrf.mxu0
      %v5726 = vpop.f32.mrf.mxu0
      %v5727 = vadd.f32 0.0, %v5726
      %v5728 = vpop.f32.mrf.mxu0
      %5729 = vmatprep.mubr.bf16.mxu0 0
      %5730 = vmatmul.mubr.bf16.gmra.mxu0 %v5681
      %v5731 = vpop.f32.mrf.mxu0
      %v5732 = vadd.f32 0.0, %v5731
      %v5733 = vpop.f32.mrf.mxu0
      %v5734 = vpop.f32.mrf.mxu0
      %v5735 = vadd.f32 0.0, %v5734
      %v5736 = vpop.f32.mrf.mxu0
      %5737 = vmatprep.mubr.bf16.mxu0 0
      %5738 = vmatmul.mubr.bf16.gmra.mxu0 %v5684
      %v5739 = vpop.f32.mrf.mxu0
      %v5740 = vadd.f32 0.0, %v5739
      %v5741 = vpop.f32.mrf.mxu0
      %v5742 = vpop.f32.mrf.mxu0
      %v5743 = vadd.f32 0.0, %v5742
      %v5744 = vpop.f32.mrf.mxu0
      %5745 = vmatprep.mubr.bf16.mxu0 0
      %5746 = vmatmul.mubr.bf16.gmra.mxu0 %v5687
      %v5747 = vpop.f32.mrf.mxu0
      %v5748 = vadd.f32 0.0, %v5747
      %v5749 = vpop.f32.mrf.mxu0
      %v5750 = vpop.f32.mrf.mxu0
      %v5751 = vadd.f32 0.0, %v5750
      %v5752 = vpop.f32.mrf.mxu0
      %5753 = vdwg.mxu0
      %5754 = vrot.lane.b32.xlu0 %v520, 40
      %v5755 = vpop.permute.xlu0 %5754
      %5756 = vrot.lane.b32.xlu0 %v521, 40
      %v5757 = vpop.permute.xlu0 %5756
      %5758 = vrot.lane.b32.xlu0 %v522, 40
      %v5759 = vpop.permute.xlu0 %5758
      %5760 = vrot.lane.b32.xlu0 %v523, 40
      %v5761 = vpop.permute.xlu0 %5760
      %v5767 = vsel %vm937, %v5483, 0
      %v5770 = vsel %vm937, %v5484, 0
      %v5773 = vsel %vm937, %v5485, 0
      %v5776 = vsel %vm937, %v5486, 0
      %5778 = vmatprep.subr.bf16.mxu0 0
      %5779 = vmatpush1.bf16.msra.mxu0 0
      %5780 = vmatprep.subr.bf16.mxu0 0
      %5781 = vmatpush1.bf16.msra.mxu0 0
      %5782 = vmatprep.subr.bf16.mxu0 0
      %5783 = vmatpush1.bf16.msra.mxu0 0
      %5784 = vmatprep.subr.bf16.mxu0 0
      %5785 = vmatpush1.bf16.msra.mxu0 0
      %5786 = vmatprep.subr.bf16.mxu0 0
      %5787 = vmatpush1.bf16.msra.mxu0 %v5761
      %5788 = vmatprep.subr.bf16.mxu0 0
      %5789 = vmatpush1.bf16.msra.mxu0 %v5759
      %5790 = vmatprep.subr.bf16.mxu0 0
      %5791 = vmatpush1.bf16.msra.mxu0 %v5757
      %5792 = vmatprep.subr.bf16.mxu0 0
      %5793 = vmatpush1.bf16.msra.mxu0 %v5755
      %5794 = vmatprep.subr.bf16.mxu0 0
      %5795 = vmatpush2.bf16.msra.mxu0 0
      %5796 = vmatprep.subr.bf16.mxu0 0
      %5797 = vmatpush2.bf16.msra.mxu0 0
      %5798 = vmatprep.subr.bf16.mxu0 0
      %5799 = vmatpush2.bf16.msra.mxu0 0
      %5800 = vmatprep.subr.bf16.mxu0 0
      %5801 = vmatpush2.bf16.msra.mxu0 0
      %5802 = vmatprep.subr.bf16.mxu0 0
      %5803 = vmatpush2.bf16.msra.mxu0 0
      %5804 = vmatprep.subr.bf16.mxu0 0
      %5805 = vmatpush2.bf16.msra.mxu0 0
      %5806 = vmatprep.subr.bf16.mxu0 0
      %5807 = vmatpush2.bf16.msra.mxu0 0
      %5808 = vmatprep.subr.bf16.mxu0 0
      %5809 = vmatpush2.bf16.msra.mxu0 0
      %5810 = vmatprep.mubr.bf16.mxu0 0
      %5811 = vmatmul.mubr.bf16.gmra.mxu0 %v5767
      %v5812 = vpop.f32.mrf.mxu0
      %v5813 = vadd.f32 0.0, %v5812
      %v5814 = vpop.f32.mrf.mxu0
      %v5815 = vpop.f32.mrf.mxu0
      %v5816 = vadd.f32 0.0, %v5815
      %v5817 = vpop.f32.mrf.mxu0
      %5818 = vmatprep.mubr.bf16.mxu0 0
      %5819 = vmatmul.mubr.bf16.gmra.mxu0 %v5770
      %v5820 = vpop.f32.mrf.mxu0
      %v5821 = vadd.f32 0.0, %v5820
      %v5822 = vpop.f32.mrf.mxu0
      %v5823 = vpop.f32.mrf.mxu0
      %v5824 = vadd.f32 0.0, %v5823
      %v5825 = vpop.f32.mrf.mxu0
      %5826 = vmatprep.mubr.bf16.mxu0 0
      %5827 = vmatmul.mubr.bf16.gmra.mxu0 %v5773
      %v5828 = vpop.f32.mrf.mxu0
      %v5829 = vadd.f32 0.0, %v5828
      %v5830 = vpop.f32.mrf.mxu0
      %v5831 = vpop.f32.mrf.mxu0
      %v5832 = vadd.f32 0.0, %v5831
      %v5833 = vpop.f32.mrf.mxu0
      %5834 = vmatprep.mubr.bf16.mxu0 0
      %5835 = vmatmul.mubr.bf16.gmra.mxu0 %v5776
      %v5836 = vpop.f32.mrf.mxu0
      %v5837 = vadd.f32 0.0, %v5836
      %v5838 = vpop.f32.mrf.mxu0
      %v5839 = vpop.f32.mrf.mxu0
      %v5840 = vadd.f32 0.0, %v5839
      %v5841 = vpop.f32.mrf.mxu0
      %5842 = vdwg.mxu0
      %v5843 = vpack.c.bf16 %v5549, %v5546
      %v5844 = vpack.c.bf16 %v5557, %v5554
      %v5845 = vpack.c.bf16 %v5565, %v5562
      %v5846 = vpack.c.bf16 %v5573, %v5570
      %v5847 = vpack.c.bf16 %v5638, %v5635
      %v5848 = vpack.c.bf16 %v5646, %v5643
      %v5849 = vpack.c.bf16 %v5654, %v5651
      %v5850 = vpack.c.bf16 %v5662, %v5659
      %v5851 = vpack.c.bf16 %v5727, %v5724
      %v5852 = vpack.c.bf16 %v5735, %v5732
      %v5853 = vpack.c.bf16 %v5743, %v5740
      %v5854 = vpack.c.bf16 %v5751, %v5748
      %v5855 = vpack.c.bf16 %v5816, %v5813
      %v5856 = vpack.c.bf16 %v5824, %v5821
      %v5857 = vpack.c.bf16 %v5832, %v5829
      %v5858 = vpack.c.bf16 %v5840, %v5837
      %s5859 = scalar_lea.vmem %s2, 12
      %v5860 = vld [vmem:[%s5859] sm:$0xf]
      %v5862 = vsel %vm544, %v5843, 0
      %v5865 = vsel %vm544, %v5844, 0
      %v5868 = vsel %vm544, %v5845, 0
      %v5871 = vsel %vm544, %v5846, 0
      %v5874 = vsel %vm544, %v5847, 0
      %v5877 = vsel %vm544, %v5848, 0
      %v5880 = vsel %vm544, %v5849, 0
      %v5883 = vsel %vm544, %v5850, 0
      %v5886 = vsel %vm544, %v5851, 0
      %v5889 = vsel %vm544, %v5852, 0
      %v5892 = vsel %vm544, %v5853, 0
      %v5895 = vsel %vm544, %v5854, 0
      %v5898 = vsel %vm544, %v5855, 0
      %v5901 = vsel %vm544, %v5856, 0
      %v5904 = vsel %vm544, %v5857, 0
      %v5907 = vsel %vm544, %v5858, 0
      %v5910 = vsel %vm2898, %v5860, 0
      %5912 = vmatprep.subr.bf16.mxu0 0
      %5913 = vmatpush1.bf16.msra.mxu0 0
      %5914 = vmatprep.subr.bf16.mxu0 0
      %5915 = vmatpush1.bf16.msra.mxu0 0
      %5916 = vmatprep.subr.bf16.mxu0 0
      %5917 = vmatpush1.bf16.msra.mxu0 0
      %5918 = vmatprep.subr.bf16.mxu0 0
      %5919 = vmatpush1.bf16.msra.mxu0 0
      %5920 = vmatprep.subr.bf16.mxu0 0
      %5921 = vmatpush1.bf16.msra.mxu0 0
      %5922 = vmatprep.subr.bf16.mxu0 0
      %5923 = vmatpush1.bf16.msra.mxu0 0
      %5924 = vmatprep.subr.bf16.mxu0 0
      %5925 = vmatpush1.bf16.msra.mxu0 0
      %5926 = vmatprep.subr.bf16.mxu0 0
      %5927 = vmatpush1.bf16.msra.mxu0 %v5910
      %5928 = vmatprep.subr.bf16.mxu0 0
      %5929 = vmatpush2.bf16.msra.mxu0 0
      %5930 = vmatprep.subr.bf16.mxu0 0
      %5931 = vmatpush2.bf16.msra.mxu0 0
      %5932 = vmatprep.subr.bf16.mxu0 0
      %5933 = vmatpush2.bf16.msra.mxu0 0
      %5934 = vmatprep.subr.bf16.mxu0 0
      %5935 = vmatpush2.bf16.msra.mxu0 0
      %5936 = vmatprep.subr.bf16.mxu0 0
      %5937 = vmatpush2.bf16.msra.mxu0 0
      %5938 = vmatprep.subr.bf16.mxu0 0
      %5939 = vmatpush2.bf16.msra.mxu0 0
      %5940 = vmatprep.subr.bf16.mxu0 0
      %5941 = vmatpush2.bf16.msra.mxu0 0
      %5942 = vmatprep.subr.bf16.mxu0 0
      %5943 = vmatpush2.bf16.msra.mxu0 0
      %5944 = vmatprep.mubr.bf16.mxu0 0
      %5945 = vmatmul.mubr.bf16.gmra.mxu0 %v5862
      %v5946 = vpop.f32.mrf.mxu0
      %v5947 = vadd.f32 0.0, %v5946
      %v5948 = vpop.f32.mrf.mxu0
      %v5949 = vpop.f32.mrf.mxu0
      %v5950 = vadd.f32 0.0, %v5949
      %v5951 = vpop.f32.mrf.mxu0
      %5952 = vmatprep.mubr.bf16.mxu0 0
      %5953 = vmatmul.mubr.bf16.gmra.mxu0 %v5865
      %v5954 = vpop.f32.mrf.mxu0
      %v5955 = vadd.f32 0.0, %v5954
      %v5956 = vpop.f32.mrf.mxu0
      %v5957 = vpop.f32.mrf.mxu0
      %v5958 = vadd.f32 0.0, %v5957
      %v5959 = vpop.f32.mrf.mxu0
      %5960 = vmatprep.mubr.bf16.mxu0 0
      %5961 = vmatmul.mubr.bf16.gmra.mxu0 %v5868
      %v5962 = vpop.f32.mrf.mxu0
      %v5963 = vadd.f32 0.0, %v5962
      %v5964 = vpop.f32.mrf.mxu0
      %v5965 = vpop.f32.mrf.mxu0
      %v5966 = vadd.f32 0.0, %v5965
      %v5967 = vpop.f32.mrf.mxu0
      %5968 = vmatprep.mubr.bf16.mxu0 0
      %5969 = vmatmul.mubr.bf16.gmra.mxu0 %v5871
      %v5970 = vpop.f32.mrf.mxu0
      %v5971 = vadd.f32 0.0, %v5970
      %v5972 = vpop.f32.mrf.mxu0
      %v5973 = vpop.f32.mrf.mxu0
      %v5974 = vadd.f32 0.0, %v5973
      %v5975 = vpop.f32.mrf.mxu0
      %5976 = vmatprep.mubr.bf16.mxu0 0
      %5977 = vmatmul.mubr.bf16.gmra.mxu0 %v5874
      %v5978 = vpop.f32.mrf.mxu0
      %v5979 = vadd.f32 0.0, %v5978
      %v5980 = vpop.f32.mrf.mxu0
      %v5981 = vpop.f32.mrf.mxu0
      %v5982 = vadd.f32 0.0, %v5981
      %v5983 = vpop.f32.mrf.mxu0
      %5984 = vmatprep.mubr.bf16.mxu0 0
      %5985 = vmatmul.mubr.bf16.gmra.mxu0 %v5877
      %v5986 = vpop.f32.mrf.mxu0
      %v5987 = vadd.f32 0.0, %v5986
      %v5988 = vpop.f32.mrf.mxu0
      %v5989 = vpop.f32.mrf.mxu0
      %v5990 = vadd.f32 0.0, %v5989
      %v5991 = vpop.f32.mrf.mxu0
      %5992 = vmatprep.mubr.bf16.mxu0 0
      %5993 = vmatmul.mubr.bf16.gmra.mxu0 %v5880
      %v5994 = vpop.f32.mrf.mxu0
      %v5995 = vadd.f32 0.0, %v5994
      %v5996 = vpop.f32.mrf.mxu0
      %v5997 = vpop.f32.mrf.mxu0
      %v5998 = vadd.f32 0.0, %v5997
      %v5999 = vpop.f32.mrf.mxu0
      %6000 = vmatprep.mubr.bf16.mxu0 0
      %6001 = vmatmul.mubr.bf16.gmra.mxu0 %v5883
      %v6002 = vpop.f32.mrf.mxu0
      %v6003 = vadd.f32 0.0, %v6002
      %v6004 = vpop.f32.mrf.mxu0
      %v6005 = vpop.f32.mrf.mxu0
      %v6006 = vadd.f32 0.0, %v6005
      %v6007 = vpop.f32.mrf.mxu0
      %6008 = vmatprep.mubr.bf16.mxu0 0
      %6009 = vmatmul.mubr.bf16.gmra.mxu0 %v5886
      %v6010 = vpop.f32.mrf.mxu0
      %v6011 = vadd.f32 0.0, %v6010
      %v6012 = vpop.f32.mrf.mxu0
      %v6013 = vpop.f32.mrf.mxu0
      %v6014 = vadd.f32 0.0, %v6013
      %v6015 = vpop.f32.mrf.mxu0
      %6016 = vmatprep.mubr.bf16.mxu0 0
      %6017 = vmatmul.mubr.bf16.gmra.mxu0 %v5889
      %v6018 = vpop.f32.mrf.mxu0
      %v6019 = vadd.f32 0.0, %v6018
      %v6020 = vpop.f32.mrf.mxu0
      %v6021 = vpop.f32.mrf.mxu0
      %v6022 = vadd.f32 0.0, %v6021
      %v6023 = vpop.f32.mrf.mxu0
      %6024 = vmatprep.mubr.bf16.mxu0 0
      %6025 = vmatmul.mubr.bf16.gmra.mxu0 %v5892
      %v6026 = vpop.f32.mrf.mxu0
      %v6027 = vadd.f32 0.0, %v6026
      %v6028 = vpop.f32.mrf.mxu0
      %v6029 = vpop.f32.mrf.mxu0
      %v6030 = vadd.f32 0.0, %v6029
      %v6031 = vpop.f32.mrf.mxu0
      %6032 = vmatprep.mubr.bf16.mxu0 0
      %6033 = vmatmul.mubr.bf16.gmra.mxu0 %v5895
      %v6034 = vpop.f32.mrf.mxu0
      %v6035 = vadd.f32 0.0, %v6034
      %v6036 = vpop.f32.mrf.mxu0
      %v6037 = vpop.f32.mrf.mxu0
      %v6038 = vadd.f32 0.0, %v6037
      %v6039 = vpop.f32.mrf.mxu0
      %6040 = vmatprep.mubr.bf16.mxu0 0
      %6041 = vmatmul.mubr.bf16.gmra.mxu0 %v5898
      %v6042 = vpop.f32.mrf.mxu0
      %v6043 = vadd.f32 0.0, %v6042
      %v6044 = vpop.f32.mrf.mxu0
      %v6045 = vpop.f32.mrf.mxu0
      %v6046 = vadd.f32 0.0, %v6045
      %v6047 = vpop.f32.mrf.mxu0
      %6048 = vmatprep.mubr.bf16.mxu0 0
      %6049 = vmatmul.mubr.bf16.gmra.mxu0 %v5901
      %v6050 = vpop.f32.mrf.mxu0
      %v6051 = vadd.f32 0.0, %v6050
      %v6052 = vpop.f32.mrf.mxu0
      %v6053 = vpop.f32.mrf.mxu0
      %v6054 = vadd.f32 0.0, %v6053
      %v6055 = vpop.f32.mrf.mxu0
      %6056 = vmatprep.mubr.bf16.mxu0 0
      %6057 = vmatmul.mubr.bf16.gmra.mxu0 %v5904
      %v6058 = vpop.f32.mrf.mxu0
      %v6059 = vadd.f32 0.0, %v6058
      %v6060 = vpop.f32.mrf.mxu0
      %v6061 = vpop.f32.mrf.mxu0
      %v6062 = vadd.f32 0.0, %v6061
      %v6063 = vpop.f32.mrf.mxu0
      %6064 = vmatprep.mubr.bf16.mxu0 0
      %6065 = vmatmul.mubr.bf16.gmra.mxu0 %v5907
      %v6066 = vpop.f32.mrf.mxu0
      %v6067 = vadd.f32 0.0, %v6066
      %v6068 = vpop.f32.mrf.mxu0
      %v6069 = vpop.f32.mrf.mxu0
      %v6070 = vadd.f32 0.0, %v6069
      %v6071 = vpop.f32.mrf.mxu0
      %6072 = vdwg.mxu0
      %v6073 = vadd.f32 %v4658, %v5947
      %v6074 = vadd.f32 %v4659, %v5950
      %v6075 = vadd.f32 %v4660, %v5955
      %v6076 = vadd.f32 %v4661, %v5958
      %v6077 = vadd.f32 %v4662, %v5963
      %v6078 = vadd.f32 %v4663, %v5966
      %v6079 = vadd.f32 %v4664, %v5971
      %v6080 = vadd.f32 %v4665, %v5974
      %v6081 = vadd.f32 %v4666, %v5979
      %v6082 = vadd.f32 %v4667, %v5982
      %v6083 = vadd.f32 %v4668, %v5987
      %v6084 = vadd.f32 %v4669, %v5990
      %v6085 = vadd.f32 %v4670, %v5995
      %v6086 = vadd.f32 %v4671, %v5998
      %v6087 = vadd.f32 %v4672, %v6003
      %v6088 = vadd.f32 %v4673, %v6006
      %v6089 = vadd.f32 %v4674, %v6011
      %v6090 = vadd.f32 %v4675, %v6014
      %v6091 = vadd.f32 %v4676, %v6019
      %v6092 = vadd.f32 %v4677, %v6022
      %v6093 = vadd.f32 %v4678, %v6027
      %v6094 = vadd.f32 %v4679, %v6030
      %v6095 = vadd.f32 %v4680, %v6035
      %v6096 = vadd.f32 %v4681, %v6038
      %v6097 = vadd.f32 %v4682, %v6043
      %v6098 = vadd.f32 %v4683, %v6046
      %v6099 = vadd.f32 %v4684, %v6051
      %v6100 = vadd.f32 %v4685, %v6054
      %v6101 = vadd.f32 %v4686, %v6059
      %v6102 = vadd.f32 %v4687, %v6062
      %v6103 = vadd.f32 %v4688, %v6067
      %v6104 = vadd.f32 %v4689, %v6070
      %v6105 = vld [vmem:[%s3] sm:$0x1]
      %v6107 = vlaneseq
      %v6108 = vshrl.u32 %v6107, 7
      %v6109 = vsub.s32 0, %v6108
      %v6110 = vrot.slane %v6105, %v6109
      %v6112 = vadd.f32 %v6073, %v6110
      %v6113 = vadd.f32 %v6074, %v6110
      %v6114 = vadd.f32 %v6075, %v6110
      %v6115 = vadd.f32 %v6076, %v6110
      %v6116 = vadd.f32 %v6077, %v6110
      %v6117 = vadd.f32 %v6078, %v6110
      %v6118 = vadd.f32 %v6079, %v6110
      %v6119 = vadd.f32 %v6080, %v6110
      %v6120 = vadd.f32 %v6081, %v6110
      %v6121 = vadd.f32 %v6082, %v6110
      %v6122 = vadd.f32 %v6083, %v6110
      %v6123 = vadd.f32 %v6084, %v6110
      %v6124 = vadd.f32 %v6085, %v6110
      %v6125 = vadd.f32 %v6086, %v6110
      %v6126 = vadd.f32 %v6087, %v6110
      %v6127 = vadd.f32 %v6088, %v6110
      %v6128 = vadd.f32 %v6089, %v6110
      %v6129 = vadd.f32 %v6090, %v6110
      %v6130 = vadd.f32 %v6091, %v6110
      %v6131 = vadd.f32 %v6092, %v6110
      %v6132 = vadd.f32 %v6093, %v6110
      %v6133 = vadd.f32 %v6094, %v6110
      %v6134 = vadd.f32 %v6095, %v6110
      %v6135 = vadd.f32 %v6096, %v6110
      %v6136 = vadd.f32 %v6097, %v6110
      %v6137 = vadd.f32 %v6098, %v6110
      %v6138 = vadd.f32 %v6099, %v6110
      %v6139 = vadd.f32 %v6100, %v6110
      %v6140 = vadd.f32 %v6101, %v6110
      %v6141 = vadd.f32 %v6102, %v6110
      %v6142 = vadd.f32 %v6103, %v6110
      %v6143 = vadd.f32 %v6104, %v6110
      %6144 = vst.msk [vmem:[%s231] sm:$0xff] %vm298, %v6112
      %6145 = vst.msk [vmem:[%s231 + $0x8] sm:$0xff] %vm298, %v6113
      %6146 = vst.msk [vmem:[%s231 + $0x10] sm:$0xff] %vm298, %v6114
      %6147 = vst.msk [vmem:[%s231 + $0x18] sm:$0xff] %vm298, %v6115
      %6148 = vst.msk [vmem:[%s231 + $0x20] sm:$0xff] %vm298, %v6116
      %6149 = vst.msk [vmem:[%s231 + $0x28] sm:$0xff] %vm298, %v6117
      %6150 = vst.msk [vmem:[%s231 + $0x30] sm:$0xff] %vm298, %v6118
      %6151 = vst.msk [vmem:[%s231 + $0x38] sm:$0xff] %vm298, %v6119
      %6152 = vst.msk [vmem:[%s231 + $0x40] sm:$0xff] %vm298, %v6120
      %6153 = vst.msk [vmem:[%s231 + $0x48] sm:$0xff] %vm298, %v6121
      %6154 = vst.msk [vmem:[%s231 + $0x50] sm:$0xff] %vm298, %v6122
      %6155 = vst.msk [vmem:[%s231 + $0x58] sm:$0xff] %vm298, %v6123
      %6156 = vst.msk [vmem:[%s231 + $0x60] sm:$0xff] %vm298, %v6124
      %6157 = vst.msk [vmem:[%s231 + $0x68] sm:$0xff] %vm298, %v6125
      %6158 = vst.msk [vmem:[%s231 + $0x70] sm:$0xff] %vm298, %v6126
      %6159 = vst.msk [vmem:[%s231 + $0x78] sm:$0xff] %vm298, %v6127
      %6160 = vst.msk [vmem:[%s231 + $0x80] sm:$0xff] %vm298, %v6128
      %6161 = vst.msk [vmem:[%s231 + $0x88] sm:$0xff] %vm298, %v6129
      %6162 = vst.msk [vmem:[%s231 + $0x90] sm:$0xff] %vm298, %v6130
      %6163 = vst.msk [vmem:[%s231 + $0x98] sm:$0xff] %vm298, %v6131
      %6164 = vst.msk [vmem:[%s231 + $0xa0] sm:$0xff] %vm298, %v6132
      %6165 = vst.msk [vmem:[%s231 + $0xa8] sm:$0xff] %vm298, %v6133
      %6166 = vst.msk [vmem:[%s231 + $0xb0] sm:$0xff] %vm298, %v6134
      %6167 = vst.msk [vmem:[%s231 + $0xb8] sm:$0xff] %vm298, %v6135
      %6168 = vst.msk [vmem:[%s231 + $0xc0] sm:$0xff] %vm298, %v6136
      %6169 = vst.msk [vmem:[%s231 + $0xc8] sm:$0xff] %vm298, %v6137
      %6170 = vst.msk [vmem:[%s231 + $0xd0] sm:$0xff] %vm298, %v6138
      %6171 = vst.msk [vmem:[%s231 + $0xd8] sm:$0xff] %vm298, %v6139
      %6172 = vst.msk [vmem:[%s231 + $0xe0] sm:$0xff] %vm298, %v6140
      %6173 = vst.msk [vmem:[%s231 + $0xe8] sm:$0xff] %vm298, %v6141
      %6174 = vst.msk [vmem:[%s231 + $0xf0] sm:$0xff] %vm298, %v6142
      %6175 = vst.msk [vmem:[%s231 + $0xf8] sm:$0xff] %vm298, %v6143
      %s6176 = smul.u32 4, %s16
      %p6177 = scmp.lt.s32.totalorder %s6176, 7
      %s6178 = scalar_select %p6177, %s6176, 7
      %s6179 = smul.addr %s6178, 8
      %s6180 = smul.addr %s6179, 8
      %s6181 = scalar_lea.vmem %s5, %s6180
      // Predicated region
      $region41: #{tpu_custom_call.1} parent=39 // pred_check
        %p6182 = pneg %p144
      $region42: #{tpu_custom_call.1} parent=39 // pred_check_branch
        %6184 = sbr.rel (%p6182) target = $region44
      $region43: #{tpu_custom_call.1} parent=39 // pred_region
        %s6185 = smul.u32 4, %s16
      $region44: #{tpu_custom_call.1} parent=39 // pred_fallthru
        _
    $region40: #{tpu_custom_call.1} parent=5 // pred_fallthru
      _
    %p6186 = scmp.le.s32.totalorder 2, %s11
    // Predicated region
    $region45: #{tpu_custom_call.1} parent=5 // pred_check
      %p6187 = pneg %p6186
    $region46: #{tpu_custom_call.1} parent=5 // pred_check_branch
      %6189 = sbr.rel (%p6187) target = $region48
    $region47: #{tpu_custom_call.1} parent=5 // pred_region
      %s6190 = ssub.s32 %s11, 2
      // Predicated region
      $region49: #{tpu_custom_call.1} parent=47 // pred_check
        %p6191 = pneg %p150
      $region50: #{tpu_custom_call.1} parent=47 // pred_check_branch
        %6193 = sbr.rel (%p6191) target = $region52
      $region51: #{tpu_custom_call.1} parent=47 // pred_region
        %s6194 = smul.u32 4, %s17
        %p6195 = scmp.lt.s32.totalorder %s6194, 7
        %s6196 = scalar_select %p6195, %s6194, 7
        %s6197 = smul.addr %s6196, 8
        %s6198 = smul.addr %s6197, 8
        %s6199 = scalar_lea.vmem %s5, %s6198
      $region52: #{tpu_custom_call.1} parent=47 // pred_fallthru
        _
    $region48: #{tpu_custom_call.1} parent=5 // pred_fallthru
      _
  $region6: #{tpu_custom_call.1} parent=0 // loop_footer
    %s15 = sadd.s32 1, %s11
  $region7: #{tpu_custom_call.1} parent=0 // loop_footer_branch
    %10 = sbr.rel target = $region3
  $region8: #{tpu_custom_call.1} parent=0 // loop_exit
    _

</llo_original>
